<compile_context>
chip_gen: v6e
topology: v6e:2x2x1
jax: 0.10.0
libtpu: 0.0.40
codegen_flags: <defaults>
</compile_context>

<pallas_src>
import jax
import jax.numpy as jnp
from jax import lax
from jax.experimental import pallas as pl
from jax.experimental.pallas import tpu as pltpu  # noqa: F401  (kept for TPU-specific tuning hooks)

# ---------------- config (small, consistent with the module) ----------------
HIDDEN = 32                 # config.hidden_size
N_HEADS = 4                 # config.num_attention_heads
HEAD = HIDDEN // N_HEADS    # 8
PARTIAL_ROTARY = 0.5        # config.partial_rotary_factor
ROT = int(PARTIAL_ROTARY * HEAD)   # rotary_dim = 4 (even)
R2 = ROT // 2
N_INNER = 4 * HIDDEN        # n_inner default = 4 * hidden_size
N_LAYERS = 2                # config.num_hidden_layers
VOCAB = 128                 # config.vocab_size
SEQ = 8
EPS = 1e-5                  # config.layer_norm_eps
SCALE = HEAD ** -0.5
ROPE_THETA = 10000.0
NEG_INF = -1e30             # all score math stays in f32


def _gelu_new(x):
    # "gelu_new" (tanh approximation) used by Phi.
    return 0.5 * x * (1.0 + jnp.tanh(0.7978845608028654 * (x + 0.044715 * x * x * x)))


# ------------------------------- fused kernel --------------------------------
def phi_fused_kernel(h0_ref, cosf_ref, sinf_ref, rotp_ref, mask_ref,
                     lnw_ref, lnb_ref,
                     wq_ref, bq_ref, wk_ref, bk_ref, wv_ref, bv_ref,
                     wd_ref, bd_ref, w1_ref, b1_ref, w2_ref, b2_ref,
                     flnw_ref, flnb_ref,
                     out_ref):
    # ---- layer-invariant values, loaded once (hoisted out of the layer loop) --
    h = h0_ref[...]                               # (S, H) residual stream
    cosf = cosf_ref[...][None, :, :]              # (1, S, D) expanded cos table
    sinf = sinf_ref[...][None, :, :]              # (1, S, D) expanded sin table
    rotp = rotp_ref[...]                          # (N, D, D) signed rotate-half matrix
    mask = mask_ref[...][None, :, :]              # (1, S, S) additive causal mask

    def layer_norm(x, w, b):
        mu = jnp.mean(x, axis=-1, keepdims=True)
        var = jnp.mean((x - mu) ** 2, axis=-1, keepdims=True)
        return (x - mu) * lax.rsqrt(var + EPS) * w + b

    def rope(t):
        # partial neox RoPE as a masked-rotation matmul:
        #   (t @ P)[j] = -t[j+R2] for j<R2, +t[j-R2] for R2<=j<ROT, 0 elsewhere
        tr = jnp.einsum('nsd,nde->nse', t, rotp,
                        preferred_element_type=jnp.float32)
        return t * cosf + tr * sinf

    # ---- fully-unrolled static layer loop (N_LAYERS is a small compile-time const)
    for i in range(N_LAYERS):
        xln = layer_norm(h, lnw_ref[i], lnb_ref[i])                      # (S, H)
        xb = jnp.broadcast_to(xln[None, :, :], (N_HEADS, SEQ, HIDDEN))   # (N, S, H)

        # head-major QKV projections (leading-axis split, no lane slicing)
        q = jnp.einsum('nsh,nhd->nsd', xb, wq_ref[i],
                       preferred_element_type=jnp.float32) + bq_ref[i]   # (N, S, D)
        k = jnp.einsum('nsh,nhd->nsd', xb, wk_ref[i],
                       preferred_element_type=jnp.float32) + bk_ref[i]
        v = jnp.einsum('nsh,nhd->nsd', xb, wv_ref[i],
                       preferred_element_type=jnp.float32) + bv_ref[i]

        q = rope(q)
        k = rope(k)

        # causal multi-head self-attention, exact softmax
        s = jnp.einsum('nqd,nkd->nqk', q, k,
                       preferred_element_type=jnp.float32) * SCALE + mask  # (N, S, S)
        s = s - jnp.max(s, axis=-1, keepdims=True)
        p = jnp.exp(s)
        p = p / jnp.sum(p, axis=-1, keepdims=True)
        o = jnp.einsum('nqk,nkd->nqd', p, v,
                       preferred_element_type=jnp.float32)                 # (N, S, D)

        # dense (RowParallelLinear): contract head_dim per head, sum heads
        attn_out = jnp.sum(
            jnp.einsum('nsd,ndh->nsh', o, wd_ref[i],
                       preferred_element_type=jnp.float32),
            axis=0) + bd_ref[i]                                            # (S, H)

        # MLP branch from the SAME layernormed input (parallel residual)
        h1 = jnp.dot(xln, w1_ref[i], preferred_element_type=jnp.float32) + b1_ref[i]
        mlp_out = jnp.dot(_gelu_new(h1), w2_ref[i],
                          preferred_element_type=jnp.float32) + b2_ref[i]

        h = attn_out + mlp_out + h

    # final_layernorm — single write of the output
    out_ref[...] = layer_norm(h, flnw_ref[...], flnb_ref[...])


# ------------------------------ wrappers -------------------------------------
def _rope_tables(positions):
    """Expanded (S, HEAD) cos/sin tables + signed rotate-half matrix for partial neox RoPE."""
    inv_freq = 1.0 / (ROPE_THETA ** (jnp.arange(0, ROT, 2, dtype=jnp.float32) / ROT))
    angles = positions.astype(jnp.float32)[:, None] * inv_freq[None, :]      # (S, R2)
    cos, sin = jnp.cos(angles), jnp.sin(angles)
    j = jnp.arange(HEAD, dtype=jnp.int32)
    cos_full = jnp.take(cos, j % R2, axis=1)                                 # (S, HEAD)
    sin_full = jnp.take(sin, j % R2, axis=1)
    in_rot = (j < ROT)[None, :]
    cosf = jnp.where(in_rot, cos_full, 1.0)
    sinf = jnp.where(in_rot, sin_full, 0.0)
    # (t @ P)[j] = -t[j+R2] for j<R2 ; +t[j-R2] for R2<=j<ROT ; 0 otherwise.
    P = jnp.zeros((HEAD, HEAD), jnp.float32)
    for jj in range(R2):
        P = P.at[jj + R2, jj].set(-1.0)
    for jj in range(R2, ROT):
        P = P.at[jj - R2, jj].set(1.0)
    rotp = jnp.broadcast_to(P, (N_HEADS, HEAD, HEAD))
    return cosf, sinf, rotp


def _pack_params(params):
    """Stack per-layer weights and re-layout QKV / dense head-major for the kernel."""
    layers = params["layers"]

    def stack(fn):
        return jnp.stack([fn(p) for p in layers], axis=0)

    def heads_in(w):           # (HIDDEN, HIDDEN) -> (N_HEADS, HIDDEN, HEAD)
        return w.reshape(HIDDEN, N_HEADS, HEAD).transpose(1, 0, 2)

    def heads_bias(b):         # (1, HIDDEN) -> (N_HEADS, 1, HEAD)
        return b.reshape(N_HEADS, HEAD)[:, None, :]

    return dict(
        lnw=stack(lambda p: p["ln_w"]),
        lnb=stack(lambda p: p["ln_b"]),
        wq=stack(lambda p: heads_in(p["wqkv"][:, :HIDDEN])),
        wk=stack(lambda p: heads_in(p["wqkv"][:, HIDDEN:2 * HIDDEN])),
        wv=stack(lambda p: heads_in(p["wqkv"][:, 2 * HIDDEN:])),
        bq=stack(lambda p: heads_bias(p["bqkv"][:, :HIDDEN])),
        bk=stack(lambda p: heads_bias(p["bqkv"][:, HIDDEN:2 * HIDDEN])),
        bv=stack(lambda p: heads_bias(p["bqkv"][:, 2 * HIDDEN:])),
        wd=stack(lambda p: p["wd"].reshape(N_HEADS, HEAD, HIDDEN)),
        bd=stack(lambda p: p["bd"]),
        w1=stack(lambda p: p["w1"]),
        b1=stack(lambda p: p["b1"]),
        w2=stack(lambda p: p["w2"]),
        b2=stack(lambda p: p["b2"]),
    )


def phi_model_forward(input_ids, positions, params):
    # embedding lookup (VocabParallelEmbedding gather) — glue outside the kernel
    hidden = jnp.take(params["embed"], input_ids, axis=0)                 # (S, H)
    cosf, sinf, rotp = _rope_tables(positions)
    rows = jnp.arange(SEQ, dtype=jnp.int32)[:, None]
    cols = jnp.arange(SEQ, dtype=jnp.int32)[None, :]
    mask = jnp.where(rows >= cols, 0.0, NEG_INF).astype(jnp.float32)      # additive causal mask
    st = _pack_params(params)

    # Single invocation, no grid: every operand is a full VMEM block (total
    # footprint << default scoped VMEM), the layer loop is unrolled in-kernel.
    return pl.pallas_call(
        phi_fused_kernel,
        out_shape=jax.ShapeDtypeStruct((SEQ, HIDDEN), jnp.float32),
    )(hidden, cosf, sinf, rotp, mask,
      st["lnw"], st["lnb"],
      st["wq"], st["bq"], st["wk"], st["bk"], st["wv"], st["bv"],
      st["wd"], st["bd"], st["w1"], st["b1"], st["w2"], st["b2"],
      params["final_ln_w"], params["final_ln_b"])


phi_model_forward_jit = jax.jit(phi_model_forward)


# ------------------------- pure-JAX reference --------------------------------
def _ref_layer(x, cos, sin, p):
    mu = x.mean(-1, keepdims=True)
    var = ((x - mu) ** 2).mean(-1, keepdims=True)
    xln = (x - mu) / jnp.sqrt(var + EPS) * p["ln_w"] + p["ln_b"]
    qkv = xln @ p["wqkv"] + p["bqkv"]
    q, k, v = qkv[:, :HIDDEN], qkv[:, HIDDEN:2 * HIDDEN], qkv[:, 2 * HIDDEN:]

    def rope(t):
        t = t.reshape(SEQ, N_HEADS, HEAD)
        t1, t2, tp = t[..., :R2], t[..., R2:ROT], t[..., ROT:]
        c, s = cos[:, None, :], sin[:, None, :]
        return jnp.concatenate([t1 * c - t2 * s, t2 * c + t1 * s, tp], -1)

    qh, kh = rope(q), rope(k)
    vh = v.reshape(SEQ, N_HEADS, HEAD)
    scores = jnp.einsum("qnd,knd->nqk", qh, kh) * SCALE
    cmask = jnp.tril(jnp.ones((SEQ, SEQ), bool))
    scores = jnp.where(cmask[None], scores, NEG_INF)
    attn = jax.nn.softmax(scores, -1)
    o = jnp.einsum("nqk,knd->qnd", attn, vh).reshape(SEQ, HIDDEN)
    attn_out = o @ p["wd"] + p["bd"]
    h1 = xln @ p["w1"] + p["b1"]
    mlp_out = _gelu_new(h1) @ p["w2"] + p["b2"]
    return attn_out + mlp_out + x


def _ref_model(input_ids, positions, params):
    hidden = params["embed"][input_ids]
    inv_freq = 1.0 / (ROPE_THETA ** (jnp.arange(0, ROT, 2, dtype=jnp.float32) / ROT))
    angles = positions.astype(jnp.float32)[:, None] * inv_freq[None, :]
    cos, sin = jnp.cos(angles), jnp.sin(angles)
    for i in range(N_LAYERS):
        hidden = _ref_layer(hidden, cos, sin, params["layers"][i])
    mu = hidden.mean(-1, keepdims=True)
    var = ((hidden - mu) ** 2).mean(-1, keepdims=True)
    return (hidden - mu) / jnp.sqrt(var + EPS) * params["final_ln_w"] + params["final_ln_b"]


# ------------------------------ params init ----------------------------------
def init_params(key):
    def nrm(k, shape, scale=0.05):
        return (scale * jax.random.normal(k, shape)).astype(jnp.float32)

    keys = jax.random.split(key, 3 + N_LAYERS)
    params = {
        "embed": nrm(keys[0], (VOCAB, HIDDEN)),
        "final_ln_w": (1.0 + nrm(keys[1], (1, HIDDEN))).astype(jnp.float32),
        "final_ln_b": nrm(keys[2], (1, HIDDEN)),
        "layers": [],
    }
    for i in range(N_LAYERS):
        lk = jax.random.split(keys[3 + i], 9)
        params["layers"].append({
            "ln_w": (1.0 + nrm(lk[0], (1, HIDDEN))).astype(jnp.float32),
            "ln_b": nrm(lk[1], (1, HIDDEN)),
            "wqkv": nrm(lk[2], (HIDDEN, 3 * HIDDEN)),
            "bqkv": nrm(lk[3], (1, 3 * HIDDEN)),
            "wd": nrm(lk[4], (HIDDEN, HIDDEN)),
            "bd": nrm(lk[5], (1, HIDDEN)),
            "w1": nrm(lk[6], (HIDDEN, N_INNER)),
            "b1": nrm(lk[7], (1, N_INNER)),
            "w2": nrm(lk[8], (N_INNER, HIDDEN)),
            "b2": jnp.zeros((1, HIDDEN), jnp.float32),
        })
    return params


# --------------------------------- main --------------------------------------
if __name__ == "__main__":
    key = jax.random.PRNGKey(0)
    k_param, k_ids = jax.random.split(key)
    params = init_params(k_param)

    input_ids = jax.random.randint(k_ids, (SEQ,), 0, VOCAB, dtype=jnp.int32)
    positions = jnp.arange(SEQ, dtype=jnp.int32)

    out = phi_model_forward_jit(input_ids, positions, params)
    out = jax.block_until_ready(out)

    ref = _ref_model(input_ids, positions, params)
    assert out.shape == (SEQ, HIDDEN)
    assert jnp.allclose(out, ref, atol=1e-4, rtol=1e-4), "mismatch vs reference"

    print("KERNEL_OK")
</pallas_src>

<mosaic_0001>
module attributes {stable_mosaic.version = 11 : i64} {
  func.func @phi_fused_kernel(%arg0: memref<8x32xf32, #tpu.memory_space<vmem>>, %arg1: memref<8x8xf32, #tpu.memory_space<vmem>>, %arg2: memref<8x8xf32, #tpu.memory_space<vmem>>, %arg3: memref<4x8x8xf32, #tpu.memory_space<vmem>>, %arg4: memref<8x8xf32, #tpu.memory_space<vmem>>, %arg5: memref<2x1x32xf32, #tpu.memory_space<vmem>>, %arg6: memref<2x1x32xf32, #tpu.memory_space<vmem>>, %arg7: memref<2x4x32x8xf32, #tpu.memory_space<vmem>>, %arg8: memref<2x4x1x8xf32, #tpu.memory_space<vmem>>, %arg9: memref<2x4x32x8xf32, #tpu.memory_space<vmem>>, %arg10: memref<2x4x1x8xf32, #tpu.memory_space<vmem>>, %arg11: memref<2x4x32x8xf32, #tpu.memory_space<vmem>>, %arg12: memref<2x4x1x8xf32, #tpu.memory_space<vmem>>, %arg13: memref<2x4x8x32xf32, #tpu.memory_space<vmem>>, %arg14: memref<2x1x32xf32, #tpu.memory_space<vmem>>, %arg15: memref<2x32x128xf32, #tpu.memory_space<vmem>>, %arg16: memref<2x1x128xf32, #tpu.memory_space<vmem>>, %arg17: memref<2x128x32xf32, #tpu.memory_space<vmem>>, %arg18: memref<2x1x32xf32, #tpu.memory_space<vmem>>, %arg19: memref<1x32xf32, #tpu.memory_space<vmem>>, %arg20: memref<1x32xf32, #tpu.memory_space<vmem>>, %arg21: memref<8x32xf32, #tpu.memory_space<vmem>>) attributes {dimension_semantics = [], scalar_prefetch = 0 : i64, scratch_operands = 0 : i64, tpu.core_type = #tpu.core_type<tc>} {
    %c0 = arith.constant 0 : index
    %c0_0 = arith.constant 0 : index
    %0 = vector.load %arg0[%c0, %c0_0] : memref<8x32xf32, #tpu.memory_space<vmem>>, vector<8x32xf32>
    %c0_1 = arith.constant 0 : index
    %c0_2 = arith.constant 0 : index
    %1 = vector.load %arg1[%c0_1, %c0_2] : memref<8x8xf32, #tpu.memory_space<vmem>>, vector<8x8xf32>
    %2 = vector.shape_cast %1 : vector<8x8xf32> to vector<1x8x8xf32>
    %c0_3 = arith.constant 0 : index
    %c0_4 = arith.constant 0 : index
    %3 = vector.load %arg2[%c0_3, %c0_4] : memref<8x8xf32, #tpu.memory_space<vmem>>, vector<8x8xf32>
    %4 = vector.shape_cast %3 : vector<8x8xf32> to vector<1x8x8xf32>
    %c0_5 = arith.constant 0 : index
    %c0_6 = arith.constant 0 : index
    %c0_7 = arith.constant 0 : index
    %5 = vector.load %arg3[%c0_5, %c0_6, %c0_7] : memref<4x8x8xf32, #tpu.memory_space<vmem>>, vector<4x8x8xf32>
    %c0_8 = arith.constant 0 : index
    %c0_9 = arith.constant 0 : index
    %6 = vector.load %arg4[%c0_8, %c0_9] : memref<8x8xf32, #tpu.memory_space<vmem>>, vector<8x8xf32>
    %7 = vector.shape_cast %6 : vector<8x8xf32> to vector<1x8x8xf32>
    %c0_10 = arith.constant 0 : index
    %c0_11 = arith.constant 0 : index
    %c0_12 = arith.constant 0 : index
    %8 = vector.load %arg5[%c0_10, %c0_11, %c0_12] : memref<2x1x32xf32, #tpu.memory_space<vmem>>, vector<1x1x32xf32>
    %9 = vector.shape_cast %8 : vector<1x1x32xf32> to vector<1x32xf32>
    %c0_13 = arith.constant 0 : index
    %c0_14 = arith.constant 0 : index
    %c0_15 = arith.constant 0 : index
    %10 = vector.load %arg6[%c0_13, %c0_14, %c0_15] : memref<2x1x32xf32, #tpu.memory_space<vmem>>, vector<1x1x32xf32>
    %11 = vector.shape_cast %10 : vector<1x1x32xf32> to vector<1x32xf32>
    %cst = arith.constant dense<0.000000e+00> : vector<8xf32>
    %12 = vector.multi_reduction <add>, %0, %cst [1] : vector<8x32xf32> to vector<8xf32>
    %13 = vector.shape_cast %12 : vector<8xf32> to vector<8x1xf32>
    %cst_16 = arith.constant 3.200000e+01 : f32
    %14 = vector.broadcast %cst_16 : f32 to vector<8x1xf32>
    %15 = arith.divf %13, %14 : vector<8x1xf32>
    %16 = vector.broadcast %15 : vector<8x1xf32> to vector<8x32xf32>
    %17 = arith.subf %0, %16 : vector<8x32xf32>
    %18 = arith.mulf %17, %17 : vector<8x32xf32>
    %cst_17 = arith.constant dense<0.000000e+00> : vector<8xf32>
    %19 = vector.multi_reduction <add>, %18, %cst_17 [1] : vector<8x32xf32> to vector<8xf32>
    %20 = vector.shape_cast %19 : vector<8xf32> to vector<8x1xf32>
    %cst_18 = arith.constant 3.200000e+01 : f32
    %21 = vector.broadcast %cst_18 : f32 to vector<8x1xf32>
    %22 = arith.divf %20, %21 : vector<8x1xf32>
    %23 = vector.broadcast %15 : vector<8x1xf32> to vector<8x32xf32>
    %24 = arith.subf %0, %23 : vector<8x32xf32>
    %cst_19 = arith.constant 9.99999974E-6 : f32
    %25 = vector.broadcast %cst_19 : f32 to vector<8x1xf32>
    %26 = arith.addf %22, %25 : vector<8x1xf32>
    %27 = math.rsqrt %26 : vector<8x1xf32>
    %28 = vector.broadcast %27 : vector<8x1xf32> to vector<8x32xf32>
    %29 = arith.mulf %24, %28 : vector<8x32xf32>
    %30 = vector.broadcast %9 : vector<1x32xf32> to vector<8x32xf32>
    %31 = arith.mulf %29, %30 : vector<8x32xf32>
    %32 = vector.broadcast %11 : vector<1x32xf32> to vector<8x32xf32>
    %33 = arith.addf %31, %32 : vector<8x32xf32>
    %34 = vector.shape_cast %33 : vector<8x32xf32> to vector<1x8x32xf32>
    %35 = vector.shape_cast %34 : vector<1x8x32xf32> to vector<1x8x32xf32>
    %36 = vector.broadcast %35 : vector<1x8x32xf32> to vector<4x8x32xf32>
    %c0_20 = arith.constant 0 : index
    %c0_21 = arith.constant 0 : index
    %c0_22 = arith.constant 0 : index
    %c0_23 = arith.constant 0 : index
    %37 = vector.load %arg7[%c0_20, %c0_21, %c0_22, %c0_23] : memref<2x4x32x8xf32, #tpu.memory_space<vmem>>, vector<1x4x32x8xf32>
    %38 = vector.shape_cast %37 : vector<1x4x32x8xf32> to vector<4x32x8xf32>
    "tpu.trace_start"() <{level = 10 : i32, message = "nsh,nhd->nsd"}> : () -> ()
    %cst_24 = arith.constant dense<0.000000e+00> : vector<4x8x8xf32>
    %39 = tpu.matmul %36, %38, %cst_24 {dimension_numbers = #tpu.dot_dimension_numbers<[2], [1], [1], [2], [0, 0, 0, 1, 1, 2], [0], [0]>} : vector<4x8x32xf32>, vector<4x32x8xf32>, vector<4x8x8xf32> -> vector<4x8x8xf32>
    "tpu.trace_stop"() : () -> ()
    %c0_25 = arith.constant 0 : index
    %c0_26 = arith.constant 0 : index
    %c0_27 = arith.constant 0 : index
    %c0_28 = arith.constant 0 : index
    %40 = vector.load %arg8[%c0_25, %c0_26, %c0_27, %c0_28] : memref<2x4x1x8xf32, #tpu.memory_space<vmem>>, vector<1x4x1x8xf32>
    %41 = vector.shape_cast %40 : vector<1x4x1x8xf32> to vector<4x1x8xf32>
    %42 = vector.broadcast %41 : vector<4x1x8xf32> to vector<4x8x8xf32>
    %43 = arith.addf %39, %42 : vector<4x8x8xf32>
    %c0_29 = arith.constant 0 : index
    %c0_30 = arith.constant 0 : index
    %c0_31 = arith.constant 0 : index
    %c0_32 = arith.constant 0 : index
    %44 = vector.load %arg9[%c0_29, %c0_30, %c0_31, %c0_32] : memref<2x4x32x8xf32, #tpu.memory_space<vmem>>, vector<1x4x32x8xf32>
    %45 = vector.shape_cast %44 : vector<1x4x32x8xf32> to vector<4x32x8xf32>
    "tpu.trace_start"() <{level = 10 : i32, message = "nsh,nhd->nsd"}> : () -> ()
    %cst_33 = arith.constant dense<0.000000e+00> : vector<4x8x8xf32>
    %46 = tpu.matmul %36, %45, %cst_33 {dimension_numbers = #tpu.dot_dimension_numbers<[2], [1], [1], [2], [0, 0, 0, 1, 1, 2], [0], [0]>} : vector<4x8x32xf32>, vector<4x32x8xf32>, vector<4x8x8xf32> -> vector<4x8x8xf32>
    "tpu.trace_stop"() : () -> ()
    %c0_34 = arith.constant 0 : index
    %c0_35 = arith.constant 0 : index
    %c0_36 = arith.constant 0 : index
    %c0_37 = arith.constant 0 : index
    %47 = vector.load %arg10[%c0_34, %c0_35, %c0_36, %c0_37] : memref<2x4x1x8xf32, #tpu.memory_space<vmem>>, vector<1x4x1x8xf32>
    %48 = vector.shape_cast %47 : vector<1x4x1x8xf32> to vector<4x1x8xf32>
    %49 = vector.broadcast %48 : vector<4x1x8xf32> to vector<4x8x8xf32>
    %50 = arith.addf %46, %49 : vector<4x8x8xf32>
    %c0_38 = arith.constant 0 : index
    %c0_39 = arith.constant 0 : index
    %c0_40 = arith.constant 0 : index
    %c0_41 = arith.constant 0 : index
    %51 = vector.load %arg11[%c0_38, %c0_39, %c0_40, %c0_41] : memref<2x4x32x8xf32, #tpu.memory_space<vmem>>, vector<1x4x32x8xf32>
    %52 = vector.shape_cast %51 : vector<1x4x32x8xf32> to vector<4x32x8xf32>
    "tpu.trace_start"() <{level = 10 : i32, message = "nsh,nhd->nsd"}> : () -> ()
    %cst_42 = arith.constant dense<0.000000e+00> : vector<4x8x8xf32>
    %53 = tpu.matmul %36, %52, %cst_42 {dimension_numbers = #tpu.dot_dimension_numbers<[2], [1], [1], [2], [0, 0, 0, 1, 1, 2], [0], [0]>} : vector<4x8x32xf32>, vector<4x32x8xf32>, vector<4x8x8xf32> -> vector<4x8x8xf32>
    "tpu.trace_stop"() : () -> ()
    %c0_43 = arith.constant 0 : index
    %c0_44 = arith.constant 0 : index
    %c0_45 = arith.constant 0 : index
    %c0_46 = arith.constant 0 : index
    %54 = vector.load %arg12[%c0_43, %c0_44, %c0_45, %c0_46] : memref<2x4x1x8xf32, #tpu.memory_space<vmem>>, vector<1x4x1x8xf32>
    %55 = vector.shape_cast %54 : vector<1x4x1x8xf32> to vector<4x1x8xf32>
    %56 = vector.broadcast %55 : vector<4x1x8xf32> to vector<4x8x8xf32>
    %57 = arith.addf %53, %56 : vector<4x8x8xf32>
    "tpu.trace_start"() <{level = 10 : i32, message = "nsd,nde->nse"}> : () -> ()
    %cst_47 = arith.constant dense<0.000000e+00> : vector<4x8x8xf32>
    %58 = tpu.matmul %43, %5, %cst_47 {dimension_numbers = #tpu.dot_dimension_numbers<[2], [1], [1], [2], [0, 0, 0, 1, 1, 2], [0], [0]>} : vector<4x8x8xf32>, vector<4x8x8xf32>, vector<4x8x8xf32> -> vector<4x8x8xf32>
    "tpu.trace_stop"() : () -> ()
    %59 = vector.broadcast %2 : vector<1x8x8xf32> to vector<4x8x8xf32>
    %60 = arith.mulf %43, %59 : vector<4x8x8xf32>
    %61 = vector.broadcast %4 : vector<1x8x8xf32> to vector<4x8x8xf32>
    %62 = arith.mulf %58, %61 : vector<4x8x8xf32>
    %63 = arith.addf %60, %62 : vector<4x8x8xf32>
    "tpu.trace_start"() <{level = 10 : i32, message = "nsd,nde->nse"}> : () -> ()
    %cst_48 = arith.constant dense<0.000000e+00> : vector<4x8x8xf32>
    %64 = tpu.matmul %50, %5, %cst_48 {dimension_numbers = #tpu.dot_dimension_numbers<[2], [1], [1], [2], [0, 0, 0, 1, 1, 2], [0], [0]>} : vector<4x8x8xf32>, vector<4x8x8xf32>, vector<4x8x8xf32> -> vector<4x8x8xf32>
    "tpu.trace_stop"() : () -> ()
    %65 = vector.broadcast %2 : vector<1x8x8xf32> to vector<4x8x8xf32>
    %66 = arith.mulf %50, %65 : vector<4x8x8xf32>
    %67 = vector.broadcast %4 : vector<1x8x8xf32> to vector<4x8x8xf32>
    %68 = arith.mulf %64, %67 : vector<4x8x8xf32>
    %69 = arith.addf %66, %68 : vector<4x8x8xf32>
    "tpu.trace_start"() <{level = 10 : i32, message = "nqd,nkd->nqk"}> : () -> ()
    %cst_49 = arith.constant dense<0.000000e+00> : vector<4x8x8xf32>
    %70 = tpu.matmul %63, %69, %cst_49 {dimension_numbers = #tpu.dot_dimension_numbers<[2], [2], [1], [1], [0, 0, 0, 1, 1, 1], [0], [0]>} : vector<4x8x8xf32>, vector<4x8x8xf32>, vector<4x8x8xf32> -> vector<4x8x8xf32>
    "tpu.trace_stop"() : () -> ()
    %cst_50 = arith.constant 0.353553385 : f32
    %71 = vector.broadcast %cst_50 : f32 to vector<4x8x8xf32>
    %72 = arith.mulf %70, %71 : vector<4x8x8xf32>
    %73 = vector.broadcast %7 : vector<1x8x8xf32> to vector<4x8x8xf32>
    %74 = arith.addf %72, %73 : vector<4x8x8xf32>
    %cst_51 = arith.constant dense<0xFF800000> : vector<4x8xf32>
    %75 = vector.multi_reduction <maximumf>, %74, %cst_51 [2] : vector<4x8x8xf32> to vector<4x8xf32>
    %76 = vector.shape_cast %75 : vector<4x8xf32> to vector<4x8x1xf32>
    %77 = vector.broadcast %76 : vector<4x8x1xf32> to vector<4x8x8xf32>
    %78 = arith.subf %74, %77 : vector<4x8x8xf32>
    %79 = math.exp %78 : vector<4x8x8xf32>
    %cst_52 = arith.constant dense<0.000000e+00> : vector<4x8xf32>
    %80 = vector.multi_reduction <add>, %79, %cst_52 [2] : vector<4x8x8xf32> to vector<4x8xf32>
    %81 = vector.shape_cast %80 : vector<4x8xf32> to vector<4x8x1xf32>
    %82 = vector.broadcast %81 : vector<4x8x1xf32> to vector<4x8x8xf32>
    %83 = arith.divf %79, %82 : vector<4x8x8xf32>
    "tpu.trace_start"() <{level = 10 : i32, message = "nqk,nkd->nqd"}> : () -> ()
    %cst_53 = arith.constant dense<0.000000e+00> : vector<4x8x8xf32>
    %84 = tpu.matmul %83, %57, %cst_53 {dimension_numbers = #tpu.dot_dimension_numbers<[2], [1], [1], [2], [0, 0, 0, 1, 1, 2], [0], [0]>} : vector<4x8x8xf32>, vector<4x8x8xf32>, vector<4x8x8xf32> -> vector<4x8x8xf32>
    "tpu.trace_stop"() : () -> ()
    %c0_54 = arith.constant 0 : index
    %c0_55 = arith.constant 0 : index
    %c0_56 = arith.constant 0 : index
    %c0_57 = arith.constant 0 : index
    %85 = vector.load %arg13[%c0_54, %c0_55, %c0_56, %c0_57] : memref<2x4x8x32xf32, #tpu.memory_space<vmem>>, vector<1x4x8x32xf32>
    %86 = vector.shape_cast %85 : vector<1x4x8x32xf32> to vector<4x8x32xf32>
    "tpu.trace_start"() <{level = 10 : i32, message = "nsd,ndh->nsh"}> : () -> ()
    %cst_58 = arith.constant dense<0.000000e+00> : vector<4x8x32xf32>
    %87 = tpu.matmul %84, %86, %cst_58 {dimension_numbers = #tpu.dot_dimension_numbers<[2], [1], [1], [2], [0, 0, 0, 1, 1, 2], [0], [0]>} : vector<4x8x8xf32>, vector<4x8x32xf32>, vector<4x8x32xf32> -> vector<4x8x32xf32>
    "tpu.trace_stop"() : () -> ()
    %cst_59 = arith.constant dense<0.000000e+00> : vector<8x32xf32>
    %88 = vector.multi_reduction <add>, %87, %cst_59 [0] : vector<4x8x32xf32> to vector<8x32xf32>
    %c0_60 = arith.constant 0 : index
    %c0_61 = arith.constant 0 : index
    %c0_62 = arith.constant 0 : index
    %89 = vector.load %arg14[%c0_60, %c0_61, %c0_62] : memref<2x1x32xf32, #tpu.memory_space<vmem>>, vector<1x1x32xf32>
    %90 = vector.shape_cast %89 : vector<1x1x32xf32> to vector<1x32xf32>
    %91 = vector.broadcast %90 : vector<1x32xf32> to vector<8x32xf32>
    %92 = arith.addf %88, %91 : vector<8x32xf32>
    %c0_63 = arith.constant 0 : index
    %c0_64 = arith.constant 0 : index
    %c0_65 = arith.constant 0 : index
    %93 = vector.load %arg15[%c0_63, %c0_64, %c0_65] : memref<2x32x128xf32, #tpu.memory_space<vmem>>, vector<1x32x128xf32>
    %94 = vector.shape_cast %93 : vector<1x32x128xf32> to vector<32x128xf32>
    %cst_66 = arith.constant dense<0.000000e+00> : vector<8x128xf32>
    %95 = tpu.matmul %33, %94, %cst_66 {dimension_numbers = #tpu.dot_dimension_numbers<[1], [0], [0], [1], [0, 0, 1, 1], [], []>} : vector<8x32xf32>, vector<32x128xf32>, vector<8x128xf32> -> vector<8x128xf32>
    %c0_67 = arith.constant 0 : index
    %c0_68 = arith.constant 0 : index
    %c0_69 = arith.constant 0 : index
    %96 = vector.load %arg16[%c0_67, %c0_68, %c0_69] : memref<2x1x128xf32, #tpu.memory_space<vmem>>, vector<1x1x128xf32>
    %97 = vector.shape_cast %96 : vector<1x1x128xf32> to vector<1x128xf32>
    %98 = vector.broadcast %97 : vector<1x128xf32> to vector<8x128xf32>
    %99 = arith.addf %95, %98 : vector<8x128xf32>
    %cst_70 = arith.constant 5.000000e-01 : f32
    %100 = vector.broadcast %cst_70 : f32 to vector<8x128xf32>
    %101 = arith.mulf %100, %99 : vector<8x128xf32>
    %cst_71 = arith.constant 4.471500e-02 : f32
    %102 = vector.broadcast %cst_71 : f32 to vector<8x128xf32>
    %103 = arith.mulf %102, %99 : vector<8x128xf32>
    %104 = arith.mulf %103, %99 : vector<8x128xf32>
    %105 = arith.mulf %104, %99 : vector<8x128xf32>
    %106 = arith.addf %99, %105 : vector<8x128xf32>
    %cst_72 = arith.constant 0.797884583 : f32
    %107 = vector.broadcast %cst_72 : f32 to vector<8x128xf32>
    %108 = arith.mulf %107, %106 : vector<8x128xf32>
    %109 = math.tanh %108 : vector<8x128xf32>
    %cst_73 = arith.constant 1.000000e+00 : f32
    %110 = vector.broadcast %cst_73 : f32 to vector<8x128xf32>
    %111 = arith.addf %110, %109 : vector<8x128xf32>
    %112 = arith.mulf %101, %111 : vector<8x128xf32>
    %c0_74 = arith.constant 0 : index
    %c0_75 = arith.constant 0 : index
    %c0_76 = arith.constant 0 : index
    %113 = vector.load %arg17[%c0_74, %c0_75, %c0_76] : memref<2x128x32xf32, #tpu.memory_space<vmem>>, vector<1x128x32xf32>
    %114 = vector.shape_cast %113 : vector<1x128x32xf32> to vector<128x32xf32>
    %cst_77 = arith.constant dense<0.000000e+00> : vector<8x32xf32>
    %115 = tpu.matmul %112, %114, %cst_77 {dimension_numbers = #tpu.dot_dimension_numbers<[1], [0], [0], [1], [0, 0, 1, 1], [], []>} : vector<8x128xf32>, vector<128x32xf32>, vector<8x32xf32> -> vector<8x32xf32>
    %c0_78 = arith.constant 0 : index
    %c0_79 = arith.constant 0 : index
    %c0_80 = arith.constant 0 : index
    %116 = vector.load %arg18[%c0_78, %c0_79, %c0_80] : memref<2x1x32xf32, #tpu.memory_space<vmem>>, vector<1x1x32xf32>
    %117 = vector.shape_cast %116 : vector<1x1x32xf32> to vector<1x32xf32>
    %118 = vector.broadcast %117 : vector<1x32xf32> to vector<8x32xf32>
    %119 = arith.addf %115, %118 : vector<8x32xf32>
    %120 = arith.addf %92, %119 : vector<8x32xf32>
    %121 = arith.addf %120, %0 : vector<8x32xf32>
    %c1 = arith.constant 1 : index
    %c0_81 = arith.constant 0 : index
    %c0_82 = arith.constant 0 : index
    %122 = vector.load %arg5[%c1, %c0_81, %c0_82] : memref<2x1x32xf32, #tpu.memory_space<vmem>>, vector<1x1x32xf32>
    %123 = vector.shape_cast %122 : vector<1x1x32xf32> to vector<1x32xf32>
    %c1_83 = arith.constant 1 : index
    %c0_84 = arith.constant 0 : index
    %c0_85 = arith.constant 0 : index
    %124 = vector.load %arg6[%c1_83, %c0_84, %c0_85] : memref<2x1x32xf32, #tpu.memory_space<vmem>>, vector<1x1x32xf32>
    %125 = vector.shape_cast %124 : vector<1x1x32xf32> to vector<1x32xf32>
    %cst_86 = arith.constant dense<0.000000e+00> : vector<8xf32>
    %126 = vector.multi_reduction <add>, %121, %cst_86 [1] : vector<8x32xf32> to vector<8xf32>
    %127 = vector.shape_cast %126 : vector<8xf32> to vector<8x1xf32>
    %cst_87 = arith.constant 3.200000e+01 : f32
    %128 = vector.broadcast %cst_87 : f32 to vector<8x1xf32>
    %129 = arith.divf %127, %128 : vector<8x1xf32>
    %130 = vector.broadcast %129 : vector<8x1xf32> to vector<8x32xf32>
    %131 = arith.subf %121, %130 : vector<8x32xf32>
    %132 = arith.mulf %131, %131 : vector<8x32xf32>
    %cst_88 = arith.constant dense<0.000000e+00> : vector<8xf32>
    %133 = vector.multi_reduction <add>, %132, %cst_88 [1] : vector<8x32xf32> to vector<8xf32>
    %134 = vector.shape_cast %133 : vector<8xf32> to vector<8x1xf32>
    %cst_89 = arith.constant 3.200000e+01 : f32
    %135 = vector.broadcast %cst_89 : f32 to vector<8x1xf32>
    %136 = arith.divf %134, %135 : vector<8x1xf32>
    %137 = vector.broadcast %129 : vector<8x1xf32> to vector<8x32xf32>
    %138 = arith.subf %121, %137 : vector<8x32xf32>
    %cst_90 = arith.constant 9.99999974E-6 : f32
    %139 = vector.broadcast %cst_90 : f32 to vector<8x1xf32>
    %140 = arith.addf %136, %139 : vector<8x1xf32>
    %141 = math.rsqrt %140 : vector<8x1xf32>
    %142 = vector.broadcast %141 : vector<8x1xf32> to vector<8x32xf32>
    %143 = arith.mulf %138, %142 : vector<8x32xf32>
    %144 = vector.broadcast %123 : vector<1x32xf32> to vector<8x32xf32>
    %145 = arith.mulf %143, %144 : vector<8x32xf32>
    %146 = vector.broadcast %125 : vector<1x32xf32> to vector<8x32xf32>
    %147 = arith.addf %145, %146 : vector<8x32xf32>
    %148 = vector.shape_cast %147 : vector<8x32xf32> to vector<1x8x32xf32>
    %149 = vector.shape_cast %148 : vector<1x8x32xf32> to vector<1x8x32xf32>
    %150 = vector.broadcast %149 : vector<1x8x32xf32> to vector<4x8x32xf32>
    %c1_91 = arith.constant 1 : index
    %c0_92 = arith.constant 0 : index
    %c0_93 = arith.constant 0 : index
    %c0_94 = arith.constant 0 : index
    %151 = vector.load %arg7[%c1_91, %c0_92, %c0_93, %c0_94] : memref<2x4x32x8xf32, #tpu.memory_space<vmem>>, vector<1x4x32x8xf32>
    %152 = vector.shape_cast %151 : vector<1x4x32x8xf32> to vector<4x32x8xf32>
    "tpu.trace_start"() <{level = 10 : i32, message = "nsh,nhd->nsd"}> : () -> ()
    %cst_95 = arith.constant dense<0.000000e+00> : vector<4x8x8xf32>
    %153 = tpu.matmul %150, %152, %cst_95 {dimension_numbers = #tpu.dot_dimension_numbers<[2], [1], [1], [2], [0, 0, 0, 1, 1, 2], [0], [0]>} : vector<4x8x32xf32>, vector<4x32x8xf32>, vector<4x8x8xf32> -> vector<4x8x8xf32>
    "tpu.trace_stop"() : () -> ()
    %c1_96 = arith.constant 1 : index
    %c0_97 = arith.constant 0 : index
    %c0_98 = arith.constant 0 : index
    %c0_99 = arith.constant 0 : index
    %154 = vector.load %arg8[%c1_96, %c0_97, %c0_98, %c0_99] : memref<2x4x1x8xf32, #tpu.memory_space<vmem>>, vector<1x4x1x8xf32>
    %155 = vector.shape_cast %154 : vector<1x4x1x8xf32> to vector<4x1x8xf32>
    %156 = vector.broadcast %155 : vector<4x1x8xf32> to vector<4x8x8xf32>
    %157 = arith.addf %153, %156 : vector<4x8x8xf32>
    %c1_100 = arith.constant 1 : index
    %c0_101 = arith.constant 0 : index
    %c0_102 = arith.constant 0 : index
    %c0_103 = arith.constant 0 : index
    %158 = vector.load %arg9[%c1_100, %c0_101, %c0_102, %c0_103] : memref<2x4x32x8xf32, #tpu.memory_space<vmem>>, vector<1x4x32x8xf32>
    %159 = vector.shape_cast %158 : vector<1x4x32x8xf32> to vector<4x32x8xf32>
    "tpu.trace_start"() <{level = 10 : i32, message = "nsh,nhd->nsd"}> : () -> ()
    %cst_104 = arith.constant dense<0.000000e+00> : vector<4x8x8xf32>
    %160 = tpu.matmul %150, %159, %cst_104 {dimension_numbers = #tpu.dot_dimension_numbers<[2], [1], [1], [2], [0, 0, 0, 1, 1, 2], [0], [0]>} : vector<4x8x32xf32>, vector<4x32x8xf32>, vector<4x8x8xf32> -> vector<4x8x8xf32>
    "tpu.trace_stop"() : () -> ()
    %c1_105 = arith.constant 1 : index
    %c0_106 = arith.constant 0 : index
    %c0_107 = arith.constant 0 : index
    %c0_108 = arith.constant 0 : index
    %161 = vector.load %arg10[%c1_105, %c0_106, %c0_107, %c0_108] : memref<2x4x1x8xf32, #tpu.memory_space<vmem>>, vector<1x4x1x8xf32>
    %162 = vector.shape_cast %161 : vector<1x4x1x8xf32> to vector<4x1x8xf32>
    %163 = vector.broadcast %162 : vector<4x1x8xf32> to vector<4x8x8xf32>
    %164 = arith.addf %160, %163 : vector<4x8x8xf32>
    %c1_109 = arith.constant 1 : index
    %c0_110 = arith.constant 0 : index
    %c0_111 = arith.constant 0 : index
    %c0_112 = arith.constant 0 : index
    %165 = vector.load %arg11[%c1_109, %c0_110, %c0_111, %c0_112] : memref<2x4x32x8xf32, #tpu.memory_space<vmem>>, vector<1x4x32x8xf32>
    %166 = vector.shape_cast %165 : vector<1x4x32x8xf32> to vector<4x32x8xf32>
    "tpu.trace_start"() <{level = 10 : i32, message = "nsh,nhd->nsd"}> : () -> ()
    %cst_113 = arith.constant dense<0.000000e+00> : vector<4x8x8xf32>
    %167 = tpu.matmul %150, %166, %cst_113 {dimension_numbers = #tpu.dot_dimension_numbers<[2], [1], [1], [2], [0, 0, 0, 1, 1, 2], [0], [0]>} : vector<4x8x32xf32>, vector<4x32x8xf32>, vector<4x8x8xf32> -> vector<4x8x8xf32>
    "tpu.trace_stop"() : () -> ()
    %c1_114 = arith.constant 1 : index
    %c0_115 = arith.constant 0 : index
    %c0_116 = arith.constant 0 : index
    %c0_117 = arith.constant 0 : index
    %168 = vector.load %arg12[%c1_114, %c0_115, %c0_116, %c0_117] : memref<2x4x1x8xf32, #tpu.memory_space<vmem>>, vector<1x4x1x8xf32>
    %169 = vector.shape_cast %168 : vector<1x4x1x8xf32> to vector<4x1x8xf32>
    %170 = vector.broadcast %169 : vector<4x1x8xf32> to vector<4x8x8xf32>
    %171 = arith.addf %167, %170 : vector<4x8x8xf32>
    "tpu.trace_start"() <{level = 10 : i32, message = "nsd,nde->nse"}> : () -> ()
    %cst_118 = arith.constant dense<0.000000e+00> : vector<4x8x8xf32>
    %172 = tpu.matmul %157, %5, %cst_118 {dimension_numbers = #tpu.dot_dimension_numbers<[2], [1], [1], [2], [0, 0, 0, 1, 1, 2], [0], [0]>} : vector<4x8x8xf32>, vector<4x8x8xf32>, vector<4x8x8xf32> -> vector<4x8x8xf32>
    "tpu.trace_stop"() : () -> ()
    %173 = vector.broadcast %2 : vector<1x8x8xf32> to vector<4x8x8xf32>
    %174 = arith.mulf %157, %173 : vector<4x8x8xf32>
    %175 = vector.broadcast %4 : vector<1x8x8xf32> to vector<4x8x8xf32>
    %176 = arith.mulf %172, %175 : vector<4x8x8xf32>
    %177 = arith.addf %174, %176 : vector<4x8x8xf32>
    "tpu.trace_start"() <{level = 10 : i32, message = "nsd,nde->nse"}> : () -> ()
    %cst_119 = arith.constant dense<0.000000e+00> : vector<4x8x8xf32>
    %178 = tpu.matmul %164, %5, %cst_119 {dimension_numbers = #tpu.dot_dimension_numbers<[2], [1], [1], [2], [0, 0, 0, 1, 1, 2], [0], [0]>} : vector<4x8x8xf32>, vector<4x8x8xf32>, vector<4x8x8xf32> -> vector<4x8x8xf32>
    "tpu.trace_stop"() : () -> ()
    %179 = vector.broadcast %2 : vector<1x8x8xf32> to vector<4x8x8xf32>
    %180 = arith.mulf %164, %179 : vector<4x8x8xf32>
    %181 = vector.broadcast %4 : vector<1x8x8xf32> to vector<4x8x8xf32>
    %182 = arith.mulf %178, %181 : vector<4x8x8xf32>
    %183 = arith.addf %180, %182 : vector<4x8x8xf32>
    "tpu.trace_start"() <{level = 10 : i32, message = "nqd,nkd->nqk"}> : () -> ()
    %cst_120 = arith.constant dense<0.000000e+00> : vector<4x8x8xf32>
    %184 = tpu.matmul %177, %183, %cst_120 {dimension_numbers = #tpu.dot_dimension_numbers<[2], [2], [1], [1], [0, 0, 0, 1, 1, 1], [0], [0]>} : vector<4x8x8xf32>, vector<4x8x8xf32>, vector<4x8x8xf32> -> vector<4x8x8xf32>
    "tpu.trace_stop"() : () -> ()
    %cst_121 = arith.constant 0.353553385 : f32
    %185 = vector.broadcast %cst_121 : f32 to vector<4x8x8xf32>
    %186 = arith.mulf %184, %185 : vector<4x8x8xf32>
    %187 = vector.broadcast %7 : vector<1x8x8xf32> to vector<4x8x8xf32>
    %188 = arith.addf %186, %187 : vector<4x8x8xf32>
    %cst_122 = arith.constant dense<0xFF800000> : vector<4x8xf32>
    %189 = vector.multi_reduction <maximumf>, %188, %cst_122 [2] : vector<4x8x8xf32> to vector<4x8xf32>
    %190 = vector.shape_cast %189 : vector<4x8xf32> to vector<4x8x1xf32>
    %191 = vector.broadcast %190 : vector<4x8x1xf32> to vector<4x8x8xf32>
    %192 = arith.subf %188, %191 : vector<4x8x8xf32>
    %193 = math.exp %192 : vector<4x8x8xf32>
    %cst_123 = arith.constant dense<0.000000e+00> : vector<4x8xf32>
    %194 = vector.multi_reduction <add>, %193, %cst_123 [2] : vector<4x8x8xf32> to vector<4x8xf32>
    %195 = vector.shape_cast %194 : vector<4x8xf32> to vector<4x8x1xf32>
    %196 = vector.broadcast %195 : vector<4x8x1xf32> to vector<4x8x8xf32>
    %197 = arith.divf %193, %196 : vector<4x8x8xf32>
    "tpu.trace_start"() <{level = 10 : i32, message = "nqk,nkd->nqd"}> : () -> ()
    %cst_124 = arith.constant dense<0.000000e+00> : vector<4x8x8xf32>
    %198 = tpu.matmul %197, %171, %cst_124 {dimension_numbers = #tpu.dot_dimension_numbers<[2], [1], [1], [2], [0, 0, 0, 1, 1, 2], [0], [0]>} : vector<4x8x8xf32>, vector<4x8x8xf32>, vector<4x8x8xf32> -> vector<4x8x8xf32>
    "tpu.trace_stop"() : () -> ()
    %c1_125 = arith.constant 1 : index
    %c0_126 = arith.constant 0 : index
    %c0_127 = arith.constant 0 : index
    %c0_128 = arith.constant 0 : index
    %199 = vector.load %arg13[%c1_125, %c0_126, %c0_127, %c0_128] : memref<2x4x8x32xf32, #tpu.memory_space<vmem>>, vector<1x4x8x32xf32>
    %200 = vector.shape_cast %199 : vector<1x4x8x32xf32> to vector<4x8x32xf32>
    "tpu.trace_start"() <{level = 10 : i32, message = "nsd,ndh->nsh"}> : () -> ()
    %cst_129 = arith.constant dense<0.000000e+00> : vector<4x8x32xf32>
    %201 = tpu.matmul %198, %200, %cst_129 {dimension_numbers = #tpu.dot_dimension_numbers<[2], [1], [1], [2], [0, 0, 0, 1, 1, 2], [0], [0]>} : vector<4x8x8xf32>, vector<4x8x32xf32>, vector<4x8x32xf32> -> vector<4x8x32xf32>
    "tpu.trace_stop"() : () -> ()
    %cst_130 = arith.constant dense<0.000000e+00> : vector<8x32xf32>
    %202 = vector.multi_reduction <add>, %201, %cst_130 [0] : vector<4x8x32xf32> to vector<8x32xf32>
    %c1_131 = arith.constant 1 : index
    %c0_132 = arith.constant 0 : index
    %c0_133 = arith.constant 0 : index
    %203 = vector.load %arg14[%c1_131, %c0_132, %c0_133] : memref<2x1x32xf32, #tpu.memory_space<vmem>>, vector<1x1x32xf32>
    %204 = vector.shape_cast %203 : vector<1x1x32xf32> to vector<1x32xf32>
    %205 = vector.broadcast %204 : vector<1x32xf32> to vector<8x32xf32>
    %206 = arith.addf %202, %205 : vector<8x32xf32>
    %c1_134 = arith.constant 1 : index
    %c0_135 = arith.constant 0 : index
    %c0_136 = arith.constant 0 : index
    %207 = vector.load %arg15[%c1_134, %c0_135, %c0_136] : memref<2x32x128xf32, #tpu.memory_space<vmem>>, vector<1x32x128xf32>
    %208 = vector.shape_cast %207 : vector<1x32x128xf32> to vector<32x128xf32>
    %cst_137 = arith.constant dense<0.000000e+00> : vector<8x128xf32>
    %209 = tpu.matmul %147, %208, %cst_137 {dimension_numbers = #tpu.dot_dimension_numbers<[1], [0], [0], [1], [0, 0, 1, 1], [], []>} : vector<8x32xf32>, vector<32x128xf32>, vector<8x128xf32> -> vector<8x128xf32>
    %c1_138 = arith.constant 1 : index
    %c0_139 = arith.constant 0 : index
    %c0_140 = arith.constant 0 : index
    %210 = vector.load %arg16[%c1_138, %c0_139, %c0_140] : memref<2x1x128xf32, #tpu.memory_space<vmem>>, vector<1x1x128xf32>
    %211 = vector.shape_cast %210 : vector<1x1x128xf32> to vector<1x128xf32>
    %212 = vector.broadcast %211 : vector<1x128xf32> to vector<8x128xf32>
    %213 = arith.addf %209, %212 : vector<8x128xf32>
    %cst_141 = arith.constant 5.000000e-01 : f32
    %214 = vector.broadcast %cst_141 : f32 to vector<8x128xf32>
    %215 = arith.mulf %214, %213 : vector<8x128xf32>
    %cst_142 = arith.constant 4.471500e-02 : f32
    %216 = vector.broadcast %cst_142 : f32 to vector<8x128xf32>
    %217 = arith.mulf %216, %213 : vector<8x128xf32>
    %218 = arith.mulf %217, %213 : vector<8x128xf32>
    %219 = arith.mulf %218, %213 : vector<8x128xf32>
    %220 = arith.addf %213, %219 : vector<8x128xf32>
    %cst_143 = arith.constant 0.797884583 : f32
    %221 = vector.broadcast %cst_143 : f32 to vector<8x128xf32>
    %222 = arith.mulf %221, %220 : vector<8x128xf32>
    %223 = math.tanh %222 : vector<8x128xf32>
    %cst_144 = arith.constant 1.000000e+00 : f32
    %224 = vector.broadcast %cst_144 : f32 to vector<8x128xf32>
    %225 = arith.addf %224, %223 : vector<8x128xf32>
    %226 = arith.mulf %215, %225 : vector<8x128xf32>
    %c1_145 = arith.constant 1 : index
    %c0_146 = arith.constant 0 : index
    %c0_147 = arith.constant 0 : index
    %227 = vector.load %arg17[%c1_145, %c0_146, %c0_147] : memref<2x128x32xf32, #tpu.memory_space<vmem>>, vector<1x128x32xf32>
    %228 = vector.shape_cast %227 : vector<1x128x32xf32> to vector<128x32xf32>
    %cst_148 = arith.constant dense<0.000000e+00> : vector<8x32xf32>
    %229 = tpu.matmul %226, %228, %cst_148 {dimension_numbers = #tpu.dot_dimension_numbers<[1], [0], [0], [1], [0, 0, 1, 1], [], []>} : vector<8x128xf32>, vector<128x32xf32>, vector<8x32xf32> -> vector<8x32xf32>
    %c1_149 = arith.constant 1 : index
    %c0_150 = arith.constant 0 : index
    %c0_151 = arith.constant 0 : index
    %230 = vector.load %arg18[%c1_149, %c0_150, %c0_151] : memref<2x1x32xf32, #tpu.memory_space<vmem>>, vector<1x1x32xf32>
    %231 = vector.shape_cast %230 : vector<1x1x32xf32> to vector<1x32xf32>
    %232 = vector.broadcast %231 : vector<1x32xf32> to vector<8x32xf32>
    %233 = arith.addf %229, %232 : vector<8x32xf32>
    %234 = arith.addf %206, %233 : vector<8x32xf32>
    %235 = arith.addf %234, %121 : vector<8x32xf32>
    %c0_152 = arith.constant 0 : index
    %c0_153 = arith.constant 0 : index
    %236 = vector.load %arg19[%c0_152, %c0_153] : memref<1x32xf32, #tpu.memory_space<vmem>>, vector<1x32xf32>
    %c0_154 = arith.constant 0 : index
    %c0_155 = arith.constant 0 : index
    %237 = vector.load %arg20[%c0_154, %c0_155] : memref<1x32xf32, #tpu.memory_space<vmem>>, vector<1x32xf32>
    %cst_156 = arith.constant dense<0.000000e+00> : vector<8xf32>
    %238 = vector.multi_reduction <add>, %235, %cst_156 [1] : vector<8x32xf32> to vector<8xf32>
    %239 = vector.shape_cast %238 : vector<8xf32> to vector<8x1xf32>
    %cst_157 = arith.constant 3.200000e+01 : f32
    %240 = vector.broadcast %cst_157 : f32 to vector<8x1xf32>
    %241 = arith.divf %239, %240 : vector<8x1xf32>
    %242 = vector.broadcast %241 : vector<8x1xf32> to vector<8x32xf32>
    %243 = arith.subf %235, %242 : vector<8x32xf32>
    %244 = arith.mulf %243, %243 : vector<8x32xf32>
    %cst_158 = arith.constant dense<0.000000e+00> : vector<8xf32>
    %245 = vector.multi_reduction <add>, %244, %cst_158 [1] : vector<8x32xf32> to vector<8xf32>
    %246 = vector.shape_cast %245 : vector<8xf32> to vector<8x1xf32>
    %cst_159 = arith.constant 3.200000e+01 : f32
    %247 = vector.broadcast %cst_159 : f32 to vector<8x1xf32>
    %248 = arith.divf %246, %247 : vector<8x1xf32>
    %249 = vector.broadcast %241 : vector<8x1xf32> to vector<8x32xf32>
    %250 = arith.subf %235, %249 : vector<8x32xf32>
    %cst_160 = arith.constant 9.99999974E-6 : f32
    %251 = vector.broadcast %cst_160 : f32 to vector<8x1xf32>
    %252 = arith.addf %248, %251 : vector<8x1xf32>
    %253 = math.rsqrt %252 : vector<8x1xf32>
    %254 = vector.broadcast %253 : vector<8x1xf32> to vector<8x32xf32>
    %255 = arith.mulf %250, %254 : vector<8x32xf32>
    %256 = vector.broadcast %236 : vector<1x32xf32> to vector<8x32xf32>
    %257 = arith.mulf %255, %256 : vector<8x32xf32>
    %258 = vector.broadcast %237 : vector<1x32xf32> to vector<8x32xf32>
    %259 = arith.addf %257, %258 : vector<8x32xf32>
    %c0_161 = arith.constant 0 : index
    %c0_162 = arith.constant 0 : index
    %260 = vector.load %arg21[%c0_161, %c0_162] : memref<8x32xf32, #tpu.memory_space<vmem>>, vector<8x32xf32>
    tpu.vector_store %arg21[%c0_161, %c0_162], %259 {strides = array<i32>} : memref<8x32xf32, #tpu.memory_space<vmem>>, vector<8x32xf32>,
    return
  }
}

</mosaic_0001>

<llo_original>
// kernel: phi_model_forward.1
$region0: #{phi_model_forward.1}
  #allocation0 [shape = 'u32[]', space=smem, size = 0x4, offset = 0x4, fixed_abs, tag = 'smem constant byte address 0x4 - core index']
  #allocation1 [shape = 'u32[144,128]{1,0:T(1,128)}', space=vmem, size = 0x12000, scoped, tag = 'internal scratch']
  %s0 = inlined_call_operand.vmem [shape: f32[8,32], index: 0, kind: input, shape index: {}]
  %s1 = inlined_call_operand.vmem [shape: f32[8,8], index: 1, kind: input, shape index: {}]
  %s2 = inlined_call_operand.vmem [shape: f32[8,8], index: 2, kind: input, shape index: {}]
  %s3 = inlined_call_operand.vmem [shape: f32[4,8,8], index: 3, kind: input, shape index: {}]
  %s4 = inlined_call_operand.vmem [shape: f32[8,8], index: 4, kind: input, shape index: {}]
  %s5 = inlined_call_operand.vmem [shape: f32[2,1,32], index: 5, kind: input, shape index: {}]
  %s6 = inlined_call_operand.vmem [shape: f32[2,1,32], index: 6, kind: input, shape index: {}]
  %s7 = inlined_call_operand.vmem [shape: f32[2,4,32,8], index: 7, kind: input, shape index: {}]
  %s8 = inlined_call_operand.vmem [shape: f32[2,4,1,8], index: 8, kind: input, shape index: {}]
  %s9 = inlined_call_operand.vmem [shape: f32[2,4,32,8], index: 9, kind: input, shape index: {}]
  %s10 = inlined_call_operand.vmem [shape: f32[2,4,1,8], index: 10, kind: input, shape index: {}]
  %s11 = inlined_call_operand.vmem [shape: f32[2,4,32,8], index: 11, kind: input, shape index: {}]
  %s12 = inlined_call_operand.vmem [shape: f32[2,4,1,8], index: 12, kind: input, shape index: {}]
  %s13 = inlined_call_operand.vmem [shape: f32[2,4,8,32], index: 13, kind: input, shape index: {}]
  %s14 = inlined_call_operand.vmem [shape: f32[2,1,32], index: 14, kind: input, shape index: {}]
  %s15 = inlined_call_operand.vmem [shape: f32[2,32,128], index: 15, kind: input, shape index: {}]
  %s16 = inlined_call_operand.vmem [shape: f32[2,1,128], index: 16, kind: input, shape index: {}]
  %s17 = inlined_call_operand.vmem [shape: f32[2,128,32], index: 17, kind: input, shape index: {}]
  %s18 = inlined_call_operand.vmem [shape: f32[2,1,32], index: 18, kind: input, shape index: {}]
  %s19 = inlined_call_operand.vmem [shape: f32[1,32], index: 19, kind: input, shape index: {}]
  %s20 = inlined_call_operand.vmem [shape: f32[1,32], index: 20, kind: input, shape index: {}]
  %s21 = inlined_call_operand.hbm [shape: f32[8,32], index: 21, kind: output, shape index: {}]
  %s22 = sld [smem:[#allocation0]]
  $region94: #{phi_model_forward.1} parent=0
    _
  %s24 = ssub.s32 1, %s22
  %s25 = scalar_select 0, %s24, %s22
  $region1: #{phi_model_forward.1} parent=0
    #allocation2 [shape = 'u8[4096]{0}', space=vmem, size = 0x1000, scoped, tag = 'output window, operand 0, single buffered']
    #allocation3 [shape = 's32[1]{0}', space=sflag, size = 0x4, scoped, tag = 'scoped memory for phi_model_forward.1']
    %26 = vsyncpa [#allocation3], 0
    // Predicated region
    $region2: #{phi_model_forward.1} parent=1 // pred_check
      _
    $region3: #{phi_model_forward.1} parent=1 // pred_check_branch
      %28 = sbr.rel (0) target = $region5
    $region4: #{phi_model_forward.1} parent=1 // pred_region
      _
    $region5: #{phi_model_forward.1} parent=1 // pred_fallthru
      _
    // Predicated region
    $region6: #{phi_model_forward.1} parent=1 // pred_check
      _
    $region7: #{phi_model_forward.1} parent=1 // pred_check_branch
      %30 = sbr.rel (0) target = $region9
    $region8: #{phi_model_forward.1} parent=1 // pred_region
      _
    $region9: #{phi_model_forward.1} parent=1 // pred_fallthru
      _
    // Predicated region
    $region10: #{phi_model_forward.1} parent=1 // pred_check
      _
    $region11: #{phi_model_forward.1} parent=1 // pred_check_branch
      %32 = sbr.rel (0) target = $region13
    $region12: #{phi_model_forward.1} parent=1 // pred_region
      _
    $region13: #{phi_model_forward.1} parent=1 // pred_fallthru
      _
    // Predicated region
    $region14: #{phi_model_forward.1} parent=1 // pred_check
      _
    $region15: #{phi_model_forward.1} parent=1 // pred_check_branch
      %34 = sbr.rel (0) target = $region17
    $region16: #{phi_model_forward.1} parent=1 // pred_region
      _
    $region17: #{phi_model_forward.1} parent=1 // pred_fallthru
      _
    // Predicated region
    $region18: #{phi_model_forward.1} parent=1 // pred_check
      _
    $region19: #{phi_model_forward.1} parent=1 // pred_check_branch
      %36 = sbr.rel (0) target = $region21
    $region20: #{phi_model_forward.1} parent=1 // pred_region
      _
    $region21: #{phi_model_forward.1} parent=1 // pred_fallthru
      _
    // Predicated region
    $region22: #{phi_model_forward.1} parent=1 // pred_check
      _
    $region23: #{phi_model_forward.1} parent=1 // pred_check_branch
      %38 = sbr.rel (0) target = $region25
    $region24: #{phi_model_forward.1} parent=1 // pred_region
      _
    $region25: #{phi_model_forward.1} parent=1 // pred_fallthru
      _
    // Predicated region
    $region26: #{phi_model_forward.1} parent=1 // pred_check
      _
    $region27: #{phi_model_forward.1} parent=1 // pred_check_branch
      %40 = sbr.rel (0) target = $region29
    $region28: #{phi_model_forward.1} parent=1 // pred_region
      _
    $region29: #{phi_model_forward.1} parent=1 // pred_fallthru
      _
    // Predicated region
    $region30: #{phi_model_forward.1} parent=1 // pred_check
      _
    $region31: #{phi_model_forward.1} parent=1 // pred_check_branch
      %42 = sbr.rel (0) target = $region33
    $region32: #{phi_model_forward.1} parent=1 // pred_region
      _
    $region33: #{phi_model_forward.1} parent=1 // pred_fallthru
      _
    // Predicated region
    $region34: #{phi_model_forward.1} parent=1 // pred_check
      _
    $region35: #{phi_model_forward.1} parent=1 // pred_check_branch
      %44 = sbr.rel (0) target = $region37
    $region36: #{phi_model_forward.1} parent=1 // pred_region
      _
    $region37: #{phi_model_forward.1} parent=1 // pred_fallthru
      _
    // Predicated region
    $region38: #{phi_model_forward.1} parent=1 // pred_check
      _
    $region39: #{phi_model_forward.1} parent=1 // pred_check_branch
      %46 = sbr.rel (0) target = $region41
    $region40: #{phi_model_forward.1} parent=1 // pred_region
      _
    $region41: #{phi_model_forward.1} parent=1 // pred_fallthru
      _
    // Predicated region
    $region42: #{phi_model_forward.1} parent=1 // pred_check
      _
    $region43: #{phi_model_forward.1} parent=1 // pred_check_branch
      %48 = sbr.rel (0) target = $region45
    $region44: #{phi_model_forward.1} parent=1 // pred_region
      _
    $region45: #{phi_model_forward.1} parent=1 // pred_fallthru
      _
    // Predicated region
    $region46: #{phi_model_forward.1} parent=1 // pred_check
      _
    $region47: #{phi_model_forward.1} parent=1 // pred_check_branch
      %50 = sbr.rel (0) target = $region49
    $region48: #{phi_model_forward.1} parent=1 // pred_region
      _
    $region49: #{phi_model_forward.1} parent=1 // pred_fallthru
      _
    // Predicated region
    $region50: #{phi_model_forward.1} parent=1 // pred_check
      _
    $region51: #{phi_model_forward.1} parent=1 // pred_check_branch
      %52 = sbr.rel (0) target = $region53
    $region52: #{phi_model_forward.1} parent=1 // pred_region
      _
    $region53: #{phi_model_forward.1} parent=1 // pred_fallthru
      _
    // Predicated region
    $region54: #{phi_model_forward.1} parent=1 // pred_check
      _
    $region55: #{phi_model_forward.1} parent=1 // pred_check_branch
      %54 = sbr.rel (0) target = $region57
    $region56: #{phi_model_forward.1} parent=1 // pred_region
      _
    $region57: #{phi_model_forward.1} parent=1 // pred_fallthru
      _
    // Predicated region
    $region58: #{phi_model_forward.1} parent=1 // pred_check
      _
    $region59: #{phi_model_forward.1} parent=1 // pred_check_branch
      %56 = sbr.rel (0) target = $region61
    $region60: #{phi_model_forward.1} parent=1 // pred_region
      _
    $region61: #{phi_model_forward.1} parent=1 // pred_fallthru
      _
    // Predicated region
    $region62: #{phi_model_forward.1} parent=1 // pred_check
      _
    $region63: #{phi_model_forward.1} parent=1 // pred_check_branch
      %58 = sbr.rel (0) target = $region65
    $region64: #{phi_model_forward.1} parent=1 // pred_region
      _
    $region65: #{phi_model_forward.1} parent=1 // pred_fallthru
      _
    // Predicated region
    $region66: #{phi_model_forward.1} parent=1 // pred_check
      _
    $region67: #{phi_model_forward.1} parent=1 // pred_check_branch
      %60 = sbr.rel (0) target = $region69
    $region68: #{phi_model_forward.1} parent=1 // pred_region
      _
    $region69: #{phi_model_forward.1} parent=1 // pred_fallthru
      _
    // Predicated region
    $region70: #{phi_model_forward.1} parent=1 // pred_check
      _
    $region71: #{phi_model_forward.1} parent=1 // pred_check_branch
      %62 = sbr.rel (0) target = $region73
    $region72: #{phi_model_forward.1} parent=1 // pred_region
      _
    $region73: #{phi_model_forward.1} parent=1 // pred_fallthru
      _
    // Predicated region
    $region74: #{phi_model_forward.1} parent=1 // pred_check
      _
    $region75: #{phi_model_forward.1} parent=1 // pred_check_branch
      %64 = sbr.rel (0) target = $region77
    $region76: #{phi_model_forward.1} parent=1 // pred_region
      _
    $region77: #{phi_model_forward.1} parent=1 // pred_fallthru
      _
    // Predicated region
    $region78: #{phi_model_forward.1} parent=1 // pred_check
      _
    $region79: #{phi_model_forward.1} parent=1 // pred_check_branch
      %66 = sbr.rel (0) target = $region81
    $region80: #{phi_model_forward.1} parent=1 // pred_region
      _
    $region81: #{phi_model_forward.1} parent=1 // pred_fallthru
      _
    // Predicated region
    $region82: #{phi_model_forward.1} parent=1 // pred_check
      _
    $region83: #{phi_model_forward.1} parent=1 // pred_check_branch
      %68 = sbr.rel (0) target = $region85
    $region84: #{phi_model_forward.1} parent=1 // pred_region
      _
    $region85: #{phi_model_forward.1} parent=1 // pred_fallthru
      _
    %v69 = vld [vmem:[%s0] sm:$0xff]
    %v70 = vld [vmem:[%s1] sm:$0xff]
    %v71 = vld [vmem:[%s2] sm:$0xff]
    %v72 = vld [vmem:[%s3] sm:$0xff]
    %v73 = vld [vmem:[%s3 + $0x8] sm:$0xff]
    %v74 = vld [vmem:[%s3 + $0x10] sm:$0xff]
    %v75 = vld [vmem:[%s3 + $0x18] sm:$0xff]
    %v76 = vld [vmem:[%s4] sm:$0xff]
    %v77 = vld [vmem:[%s5] sm:$0x1]
    %v78 = vld [vmem:[%s6] sm:$0x1]
    %vm79 = vcmask 261120
    %v80 = vsel %vm79, %v69, 0.0
    %81 = vadd.xlane.f32.xlu0 %v80
    %v82 = vpop.xlane.xlu0 %81
    %v83 = vrcp.pop 32.0
    %v84 = vmul.f32 %v82, %v83
    %v85 = vsub.f32 %v69, %v84
    %v86 = vmul.f32 %v85, %v85
    %v87 = vsel %vm79, %v86, 0.0
    %88 = vadd.xlane.f32.xlu0 %v87
    %v89 = vpop.xlane.xlu0 %88
    %v90 = vmul.f32 %v89, %v83
    %v91 = vadd.f32 %v90, 1e-05
    %v92 = vrsqrt.pop %v91
    %v93 = vmul.f32 %v85, %v92
    %v95 = vlaneseq
    %v96 = vshrl.u32 %v95, 7
    %v97 = vsub.s32 0, %v96
    %v98 = vrot.slane %v77, %v97
    %v100 = vmul.f32 %v93, %v98
    %v102 = vlaneseq
    %v103 = vshrl.u32 %v102, 7
    %v104 = vsub.s32 0, %v103
    %v105 = vrot.slane %v78, %v104
    %v107 = vadd.f32 %v100, %v105
    %v108 = vld [vmem:[%s7] sm:$0xff]
    %v109 = vld [vmem:[%s7 + $0x8] sm:$0xff]
    %v110 = vld [vmem:[%s7 + $0x10] sm:$0xff]
    %v111 = vld [vmem:[%s7 + $0x18] sm:$0xff]
    %v112 = vld [vmem:[%s7 + $0x20] sm:$0xff]
    %v113 = vld [vmem:[%s7 + $0x28] sm:$0xff]
    %v114 = vld [vmem:[%s7 + $0x30] sm:$0xff]
    %v115 = vld [vmem:[%s7 + $0x38] sm:$0xff]
    %v116 = vld [vmem:[%s7 + $0x40] sm:$0xff]
    %v117 = vld [vmem:[%s7 + $0x48] sm:$0xff]
    %v118 = vld [vmem:[%s7 + $0x50] sm:$0xff]
    %v119 = vld [vmem:[%s7 + $0x58] sm:$0xff]
    %v120 = vld [vmem:[%s7 + $0x60] sm:$0xff]
    %v121 = vld [vmem:[%s7 + $0x68] sm:$0xff]
    %v122 = vld [vmem:[%s7 + $0x70] sm:$0xff]
    %v123 = vld [vmem:[%s7 + $0x78] sm:$0xff]
    %v124 = vld [vmem:[%s8] sm:$0x1]
    %v125 = vld [vmem:[%s8 + $0x1] sm:$0x1]
    %v126 = vld [vmem:[%s8 + $0x2] sm:$0x1]
    %v127 = vld [vmem:[%s8 + $0x3] sm:$0x1]
    %v132 = vlaneseq
    %v133 = vshrl.u32 %v132, 7
    %v134 = vsub.s32 0, %v133
    %v135 = vrot.slane %v124, %v134
    %v136 = vlaneseq
    %v137 = vshrl.u32 %v136, 7
    %v138 = vsub.s32 0, %v137
    %v139 = vrot.slane %v125, %v138
    %v140 = vlaneseq
    %v141 = vshrl.u32 %v140, 7
    %v142 = vsub.s32 0, %v141
    %v143 = vrot.slane %v126, %v142
    %v144 = vlaneseq
    %v145 = vshrl.u32 %v144, 7
    %v146 = vsub.s32 0, %v145
    %v147 = vrot.slane %v127, %v146
    %v153 = vsel %vm79, %v107, 0
    %155 = vmatprep.subr.mxu0 0.0
    %156 = vmatpush1.msra.mxu0 0.0
    %157 = vmatprep.subr.mxu0 0.0
    %158 = vmatpush1.msra.mxu0 0.0
    %159 = vmatprep.subr.mxu0 0.0
    %160 = vmatpush1.msra.mxu0 0.0
    %161 = vmatprep.subr.mxu0 0.0
    %162 = vmatpush1.msra.mxu0 0.0
    %163 = vmatprep.subr.mxu0 0.0
    %164 = vmatpush1.msra.mxu0 0.0
    %165 = vmatprep.subr.mxu0 0.0
    %166 = vmatpush1.msra.mxu0 0.0
    %167 = vmatprep.subr.mxu0 0.0
    %168 = vmatpush1.msra.mxu0 0.0
    %169 = vmatprep.subr.mxu0 0.0
    %170 = vmatpush1.msra.mxu0 0.0
    %171 = vmatprep.subr.mxu0 0.0
    %172 = vmatpush1.msra.mxu0 0.0
    %173 = vmatprep.subr.mxu0 0.0
    %174 = vmatpush1.msra.mxu0 0.0
    %175 = vmatprep.subr.mxu0 0.0
    %176 = vmatpush1.msra.mxu0 0.0
    %177 = vmatprep.subr.mxu0 0.0
    %178 = vmatpush1.msra.mxu0 0.0
    %179 = vmatprep.subr.mxu0 0.0
    %180 = vmatpush1.msra.mxu0 %v111
    %181 = vmatprep.subr.mxu0 0.0
    %182 = vmatpush1.msra.mxu0 %v110
    %183 = vmatprep.subr.mxu0 0.0
    %184 = vmatpush1.msra.mxu0 %v109
    %185 = vmatprep.subr.mxu0 0.0
    %186 = vmatpush1.msra.mxu0 %v108
    %187 = vmatprep.subr.mxu0 0.0
    %188 = vmatpush2.msra.mxu0 0.0
    %189 = vmatprep.subr.mxu0 0.0
    %190 = vmatpush2.msra.mxu0 0.0
    %191 = vmatprep.subr.mxu0 0.0
    %192 = vmatpush2.msra.mxu0 0.0
    %193 = vmatprep.subr.mxu0 0.0
    %194 = vmatpush2.msra.mxu0 0.0
    %195 = vmatprep.subr.mxu0 0.0
    %196 = vmatpush2.msra.mxu0 0.0
    %197 = vmatprep.subr.mxu0 0.0
    %198 = vmatpush2.msra.mxu0 0.0
    %199 = vmatprep.subr.mxu0 0.0
    %200 = vmatpush2.msra.mxu0 0.0
    %201 = vmatprep.subr.mxu0 0.0
    %202 = vmatpush2.msra.mxu0 0.0
    %203 = vmatprep.subr.mxu0 0.0
    %204 = vmatpush2.msra.mxu0 0.0
    %205 = vmatprep.subr.mxu0 0.0
    %206 = vmatpush2.msra.mxu0 0.0
    %207 = vmatprep.subr.mxu0 0.0
    %208 = vmatpush2.msra.mxu0 0.0
    %209 = vmatprep.subr.mxu0 0.0
    %210 = vmatpush2.msra.mxu0 0.0
    %211 = vmatprep.subr.mxu0 0.0
    %212 = vmatpush2.msra.mxu0 0.0
    %213 = vmatprep.subr.mxu0 0.0
    %214 = vmatpush2.msra.mxu0 0.0
    %215 = vmatprep.subr.mxu0 0.0
    %216 = vmatpush2.msra.mxu0 0.0
    %217 = vmatprep.subr.mxu0 0.0
    %218 = vmatpush2.msra.mxu0 0.0
    %219 = vmatprep.mubr.f32.mxu0 0.0
    %220 = vmatmul.mubr.f32.gmra.mxu0 %v153
    %v221 = vpop.f32.mrf.mxu0
    %v222 = vadd.f32 %v135, %v221
    %v223 = vpop.f32.mrf.mxu0
    %224 = vdwg.mxu0
    %225 = vmatprep.subr.mxu0 0.0
    %226 = vmatpush1.msra.mxu0 0.0
    %227 = vmatprep.subr.mxu0 0.0
    %228 = vmatpush1.msra.mxu0 0.0
    %229 = vmatprep.subr.mxu0 0.0
    %230 = vmatpush1.msra.mxu0 0.0
    %231 = vmatprep.subr.mxu0 0.0
    %232 = vmatpush1.msra.mxu0 0.0
    %233 = vmatprep.subr.mxu0 0.0
    %234 = vmatpush1.msra.mxu0 0.0
    %235 = vmatprep.subr.mxu0 0.0
    %236 = vmatpush1.msra.mxu0 0.0
    %237 = vmatprep.subr.mxu0 0.0
    %238 = vmatpush1.msra.mxu0 0.0
    %239 = vmatprep.subr.mxu0 0.0
    %240 = vmatpush1.msra.mxu0 0.0
    %241 = vmatprep.subr.mxu0 0.0
    %242 = vmatpush1.msra.mxu0 0.0
    %243 = vmatprep.subr.mxu0 0.0
    %244 = vmatpush1.msra.mxu0 0.0
    %245 = vmatprep.subr.mxu0 0.0
    %246 = vmatpush1.msra.mxu0 0.0
    %247 = vmatprep.subr.mxu0 0.0
    %248 = vmatpush1.msra.mxu0 0.0
    %249 = vmatprep.subr.mxu0 0.0
    %250 = vmatpush1.msra.mxu0 %v115
    %251 = vmatprep.subr.mxu0 0.0
    %252 = vmatpush1.msra.mxu0 %v114
    %253 = vmatprep.subr.mxu0 0.0
    %254 = vmatpush1.msra.mxu0 %v113
    %255 = vmatprep.subr.mxu0 0.0
    %256 = vmatpush1.msra.mxu0 %v112
    %257 = vmatprep.subr.mxu0 0.0
    %258 = vmatpush2.msra.mxu0 0.0
    %259 = vmatprep.subr.mxu0 0.0
    %260 = vmatpush2.msra.mxu0 0.0
    %261 = vmatprep.subr.mxu0 0.0
    %262 = vmatpush2.msra.mxu0 0.0
    %263 = vmatprep.subr.mxu0 0.0
    %264 = vmatpush2.msra.mxu0 0.0
    %265 = vmatprep.subr.mxu0 0.0
    %266 = vmatpush2.msra.mxu0 0.0
    %267 = vmatprep.subr.mxu0 0.0
    %268 = vmatpush2.msra.mxu0 0.0
    %269 = vmatprep.subr.mxu0 0.0
    %270 = vmatpush2.msra.mxu0 0.0
    %271 = vmatprep.subr.mxu0 0.0
    %272 = vmatpush2.msra.mxu0 0.0
    %273 = vmatprep.subr.mxu0 0.0
    %274 = vmatpush2.msra.mxu0 0.0
    %275 = vmatprep.subr.mxu0 0.0
    %276 = vmatpush2.msra.mxu0 0.0
    %277 = vmatprep.subr.mxu0 0.0
    %278 = vmatpush2.msra.mxu0 0.0
    %279 = vmatprep.subr.mxu0 0.0
    %280 = vmatpush2.msra.mxu0 0.0
    %281 = vmatprep.subr.mxu0 0.0
    %282 = vmatpush2.msra.mxu0 0.0
    %283 = vmatprep.subr.mxu0 0.0
    %284 = vmatpush2.msra.mxu0 0.0
    %285 = vmatprep.subr.mxu0 0.0
    %286 = vmatpush2.msra.mxu0 0.0
    %287 = vmatprep.subr.mxu0 0.0
    %288 = vmatpush2.msra.mxu0 0.0
    %289 = vmatprep.mubr.f32.mxu0 0.0
    %290 = vmatmul.mubr.f32.gmra.mxu0 %v153
    %v291 = vpop.f32.mrf.mxu0
    %v292 = vadd.f32 %v139, %v291
    %v293 = vpop.f32.mrf.mxu0
    %294 = vdwg.mxu0
    %295 = vmatprep.subr.mxu0 0.0
    %296 = vmatpush1.msra.mxu0 0.0
    %297 = vmatprep.subr.mxu0 0.0
    %298 = vmatpush1.msra.mxu0 0.0
    %299 = vmatprep.subr.mxu0 0.0
    %300 = vmatpush1.msra.mxu0 0.0
    %301 = vmatprep.subr.mxu0 0.0
    %302 = vmatpush1.msra.mxu0 0.0
    %303 = vmatprep.subr.mxu0 0.0
    %304 = vmatpush1.msra.mxu0 0.0
    %305 = vmatprep.subr.mxu0 0.0
    %306 = vmatpush1.msra.mxu0 0.0
    %307 = vmatprep.subr.mxu0 0.0
    %308 = vmatpush1.msra.mxu0 0.0
    %309 = vmatprep.subr.mxu0 0.0
    %310 = vmatpush1.msra.mxu0 0.0
    %311 = vmatprep.subr.mxu0 0.0
    %312 = vmatpush1.msra.mxu0 0.0
    %313 = vmatprep.subr.mxu0 0.0
    %314 = vmatpush1.msra.mxu0 0.0
    %315 = vmatprep.subr.mxu0 0.0
    %316 = vmatpush1.msra.mxu0 0.0
    %317 = vmatprep.subr.mxu0 0.0
    %318 = vmatpush1.msra.mxu0 0.0
    %319 = vmatprep.subr.mxu0 0.0
    %320 = vmatpush1.msra.mxu0 %v119
    %321 = vmatprep.subr.mxu0 0.0
    %322 = vmatpush1.msra.mxu0 %v118
    %323 = vmatprep.subr.mxu0 0.0
    %324 = vmatpush1.msra.mxu0 %v117
    %325 = vmatprep.subr.mxu0 0.0
    %326 = vmatpush1.msra.mxu0 %v116
    %327 = vmatprep.subr.mxu0 0.0
    %328 = vmatpush2.msra.mxu0 0.0
    %329 = vmatprep.subr.mxu0 0.0
    %330 = vmatpush2.msra.mxu0 0.0
    %331 = vmatprep.subr.mxu0 0.0
    %332 = vmatpush2.msra.mxu0 0.0
    %333 = vmatprep.subr.mxu0 0.0
    %334 = vmatpush2.msra.mxu0 0.0
    %335 = vmatprep.subr.mxu0 0.0
    %336 = vmatpush2.msra.mxu0 0.0
    %337 = vmatprep.subr.mxu0 0.0
    %338 = vmatpush2.msra.mxu0 0.0
    %339 = vmatprep.subr.mxu0 0.0
    %340 = vmatpush2.msra.mxu0 0.0
    %341 = vmatprep.subr.mxu0 0.0
    %342 = vmatpush2.msra.mxu0 0.0
    %343 = vmatprep.subr.mxu0 0.0
    %344 = vmatpush2.msra.mxu0 0.0
    %345 = vmatprep.subr.mxu0 0.0
    %346 = vmatpush2.msra.mxu0 0.0
    %347 = vmatprep.subr.mxu0 0.0
    %348 = vmatpush2.msra.mxu0 0.0
    %349 = vmatprep.subr.mxu0 0.0
    %350 = vmatpush2.msra.mxu0 0.0
    %351 = vmatprep.subr.mxu0 0.0
    %352 = vmatpush2.msra.mxu0 0.0
    %353 = vmatprep.subr.mxu0 0.0
    %354 = vmatpush2.msra.mxu0 0.0
    %355 = vmatprep.subr.mxu0 0.0
    %356 = vmatpush2.msra.mxu0 0.0
    %357 = vmatprep.subr.mxu0 0.0
    %358 = vmatpush2.msra.mxu0 0.0
    %359 = vmatprep.mubr.f32.mxu0 0.0
    %360 = vmatmul.mubr.f32.gmra.mxu0 %v153
    %v361 = vpop.f32.mrf.mxu0
    %v362 = vadd.f32 %v143, %v361
    %v363 = vpop.f32.mrf.mxu0
    %364 = vdwg.mxu0
    %365 = vmatprep.subr.mxu0 0.0
    %366 = vmatpush1.msra.mxu0 0.0
    %367 = vmatprep.subr.mxu0 0.0
    %368 = vmatpush1.msra.mxu0 0.0
    %369 = vmatprep.subr.mxu0 0.0
    %370 = vmatpush1.msra.mxu0 0.0
    %371 = vmatprep.subr.mxu0 0.0
    %372 = vmatpush1.msra.mxu0 0.0
    %373 = vmatprep.subr.mxu0 0.0
    %374 = vmatpush1.msra.mxu0 0.0
    %375 = vmatprep.subr.mxu0 0.0
    %376 = vmatpush1.msra.mxu0 0.0
    %377 = vmatprep.subr.mxu0 0.0
    %378 = vmatpush1.msra.mxu0 0.0
    %379 = vmatprep.subr.mxu0 0.0
    %380 = vmatpush1.msra.mxu0 0.0
    %381 = vmatprep.subr.mxu0 0.0
    %382 = vmatpush1.msra.mxu0 0.0
    %383 = vmatprep.subr.mxu0 0.0
    %384 = vmatpush1.msra.mxu0 0.0
    %385 = vmatprep.subr.mxu0 0.0
    %386 = vmatpush1.msra.mxu0 0.0
    %387 = vmatprep.subr.mxu0 0.0
    %388 = vmatpush1.msra.mxu0 0.0
    %389 = vmatprep.subr.mxu0 0.0
    %390 = vmatpush1.msra.mxu0 %v123
    %391 = vmatprep.subr.mxu0 0.0
    %392 = vmatpush1.msra.mxu0 %v122
    %393 = vmatprep.subr.mxu0 0.0
    %394 = vmatpush1.msra.mxu0 %v121
    %395 = vmatprep.subr.mxu0 0.0
    %396 = vmatpush1.msra.mxu0 %v120
    %397 = vmatprep.subr.mxu0 0.0
    %398 = vmatpush2.msra.mxu0 0.0
    %399 = vmatprep.subr.mxu0 0.0
    %400 = vmatpush2.msra.mxu0 0.0
    %401 = vmatprep.subr.mxu0 0.0
    %402 = vmatpush2.msra.mxu0 0.0
    %403 = vmatprep.subr.mxu0 0.0
    %404 = vmatpush2.msra.mxu0 0.0
    %405 = vmatprep.subr.mxu0 0.0
    %406 = vmatpush2.msra.mxu0 0.0
    %407 = vmatprep.subr.mxu0 0.0
    %408 = vmatpush2.msra.mxu0 0.0
    %409 = vmatprep.subr.mxu0 0.0
    %410 = vmatpush2.msra.mxu0 0.0
    %411 = vmatprep.subr.mxu0 0.0
    %412 = vmatpush2.msra.mxu0 0.0
    %413 = vmatprep.subr.mxu0 0.0
    %414 = vmatpush2.msra.mxu0 0.0
    %415 = vmatprep.subr.mxu0 0.0
    %416 = vmatpush2.msra.mxu0 0.0
    %417 = vmatprep.subr.mxu0 0.0
    %418 = vmatpush2.msra.mxu0 0.0
    %419 = vmatprep.subr.mxu0 0.0
    %420 = vmatpush2.msra.mxu0 0.0
    %421 = vmatprep.subr.mxu0 0.0
    %422 = vmatpush2.msra.mxu0 0.0
    %423 = vmatprep.subr.mxu0 0.0
    %424 = vmatpush2.msra.mxu0 0.0
    %425 = vmatprep.subr.mxu0 0.0
    %426 = vmatpush2.msra.mxu0 0.0
    %427 = vmatprep.subr.mxu0 0.0
    %428 = vmatpush2.msra.mxu0 0.0
    %429 = vmatprep.mubr.f32.mxu0 0.0
    %430 = vmatmul.mubr.f32.gmra.mxu0 %v153
    %v431 = vpop.f32.mrf.mxu0
    %v432 = vadd.f32 %v147, %v431
    %v433 = vpop.f32.mrf.mxu0
    %434 = vdwg.mxu0
    %v435 = vld [vmem:[%s9] sm:$0xff]
    %v436 = vld [vmem:[%s9 + $0x8] sm:$0xff]
    %v437 = vld [vmem:[%s9 + $0x10] sm:$0xff]
    %v438 = vld [vmem:[%s9 + $0x18] sm:$0xff]
    %v439 = vld [vmem:[%s9 + $0x20] sm:$0xff]
    %v440 = vld [vmem:[%s9 + $0x28] sm:$0xff]
    %v441 = vld [vmem:[%s9 + $0x30] sm:$0xff]
    %v442 = vld [vmem:[%s9 + $0x38] sm:$0xff]
    %v443 = vld [vmem:[%s9 + $0x40] sm:$0xff]
    %v444 = vld [vmem:[%s9 + $0x48] sm:$0xff]
    %v445 = vld [vmem:[%s9 + $0x50] sm:$0xff]
    %v446 = vld [vmem:[%s9 + $0x58] sm:$0xff]
    %v447 = vld [vmem:[%s9 + $0x60] sm:$0xff]
    %v448 = vld [vmem:[%s9 + $0x68] sm:$0xff]
    %v449 = vld [vmem:[%s9 + $0x70] sm:$0xff]
    %v450 = vld [vmem:[%s9 + $0x78] sm:$0xff]
    %v451 = vld [vmem:[%s10] sm:$0x1]
    %v452 = vld [vmem:[%s10 + $0x1] sm:$0x1]
    %v453 = vld [vmem:[%s10 + $0x2] sm:$0x1]
    %v454 = vld [vmem:[%s10 + $0x3] sm:$0x1]
    %v459 = vlaneseq
    %v460 = vshrl.u32 %v459, 7
    %v461 = vsub.s32 0, %v460
    %v462 = vrot.slane %v451, %v461
    %v463 = vlaneseq
    %v464 = vshrl.u32 %v463, 7
    %v465 = vsub.s32 0, %v464
    %v466 = vrot.slane %v452, %v465
    %v467 = vlaneseq
    %v468 = vshrl.u32 %v467, 7
    %v469 = vsub.s32 0, %v468
    %v470 = vrot.slane %v453, %v469
    %v471 = vlaneseq
    %v472 = vshrl.u32 %v471, 7
    %v473 = vsub.s32 0, %v472
    %v474 = vrot.slane %v454, %v473
    %479 = vmatprep.subr.mxu0 0.0
    %480 = vmatpush1.msra.mxu0 0.0
    %481 = vmatprep.subr.mxu0 0.0
    %482 = vmatpush1.msra.mxu0 0.0
    %483 = vmatprep.subr.mxu0 0.0
    %484 = vmatpush1.msra.mxu0 0.0
    %485 = vmatprep.subr.mxu0 0.0
    %486 = vmatpush1.msra.mxu0 0.0
    %487 = vmatprep.subr.mxu0 0.0
    %488 = vmatpush1.msra.mxu0 0.0
    %489 = vmatprep.subr.mxu0 0.0
    %490 = vmatpush1.msra.mxu0 0.0
    %491 = vmatprep.subr.mxu0 0.0
    %492 = vmatpush1.msra.mxu0 0.0
    %493 = vmatprep.subr.mxu0 0.0
    %494 = vmatpush1.msra.mxu0 0.0
    %495 = vmatprep.subr.mxu0 0.0
    %496 = vmatpush1.msra.mxu0 0.0
    %497 = vmatprep.subr.mxu0 0.0
    %498 = vmatpush1.msra.mxu0 0.0
    %499 = vmatprep.subr.mxu0 0.0
    %500 = vmatpush1.msra.mxu0 0.0
    %501 = vmatprep.subr.mxu0 0.0
    %502 = vmatpush1.msra.mxu0 0.0
    %503 = vmatprep.subr.mxu0 0.0
    %504 = vmatpush1.msra.mxu0 %v438
    %505 = vmatprep.subr.mxu0 0.0
    %506 = vmatpush1.msra.mxu0 %v437
    %507 = vmatprep.subr.mxu0 0.0
    %508 = vmatpush1.msra.mxu0 %v436
    %509 = vmatprep.subr.mxu0 0.0
    %510 = vmatpush1.msra.mxu0 %v435
    %511 = vmatprep.subr.mxu0 0.0
    %512 = vmatpush2.msra.mxu0 0.0
    %513 = vmatprep.subr.mxu0 0.0
    %514 = vmatpush2.msra.mxu0 0.0
    %515 = vmatprep.subr.mxu0 0.0
    %516 = vmatpush2.msra.mxu0 0.0
    %517 = vmatprep.subr.mxu0 0.0
    %518 = vmatpush2.msra.mxu0 0.0
    %519 = vmatprep.subr.mxu0 0.0
    %520 = vmatpush2.msra.mxu0 0.0
    %521 = vmatprep.subr.mxu0 0.0
    %522 = vmatpush2.msra.mxu0 0.0
    %523 = vmatprep.subr.mxu0 0.0
    %524 = vmatpush2.msra.mxu0 0.0
    %525 = vmatprep.subr.mxu0 0.0
    %526 = vmatpush2.msra.mxu0 0.0
    %527 = vmatprep.subr.mxu0 0.0
    %528 = vmatpush2.msra.mxu0 0.0
    %529 = vmatprep.subr.mxu0 0.0
    %530 = vmatpush2.msra.mxu0 0.0
    %531 = vmatprep.subr.mxu0 0.0
    %532 = vmatpush2.msra.mxu0 0.0
    %533 = vmatprep.subr.mxu0 0.0
    %534 = vmatpush2.msra.mxu0 0.0
    %535 = vmatprep.subr.mxu0 0.0
    %536 = vmatpush2.msra.mxu0 0.0
    %537 = vmatprep.subr.mxu0 0.0
    %538 = vmatpush2.msra.mxu0 0.0
    %539 = vmatprep.subr.mxu0 0.0
    %540 = vmatpush2.msra.mxu0 0.0
    %541 = vmatprep.subr.mxu0 0.0
    %542 = vmatpush2.msra.mxu0 0.0
    %543 = vmatprep.mubr.f32.mxu0 0.0
    %544 = vmatmul.mubr.f32.gmra.mxu0 %v153
    %v545 = vpop.f32.mrf.mxu0
    %v546 = vadd.f32 %v462, %v545
    %v547 = vpop.f32.mrf.mxu0
    %548 = vdwg.mxu0
    %549 = vmatprep.subr.mxu0 0.0
    %550 = vmatpush1.msra.mxu0 0.0
    %551 = vmatprep.subr.mxu0 0.0
    %552 = vmatpush1.msra.mxu0 0.0
    %553 = vmatprep.subr.mxu0 0.0
    %554 = vmatpush1.msra.mxu0 0.0
    %555 = vmatprep.subr.mxu0 0.0
    %556 = vmatpush1.msra.mxu0 0.0
    %557 = vmatprep.subr.mxu0 0.0
    %558 = vmatpush1.msra.mxu0 0.0
    %559 = vmatprep.subr.mxu0 0.0
    %560 = vmatpush1.msra.mxu0 0.0
    %561 = vmatprep.subr.mxu0 0.0
    %562 = vmatpush1.msra.mxu0 0.0
    %563 = vmatprep.subr.mxu0 0.0
    %564 = vmatpush1.msra.mxu0 0.0
    %565 = vmatprep.subr.mxu0 0.0
    %566 = vmatpush1.msra.mxu0 0.0
    %567 = vmatprep.subr.mxu0 0.0
    %568 = vmatpush1.msra.mxu0 0.0
    %569 = vmatprep.subr.mxu0 0.0
    %570 = vmatpush1.msra.mxu0 0.0
    %571 = vmatprep.subr.mxu0 0.0
    %572 = vmatpush1.msra.mxu0 0.0
    %573 = vmatprep.subr.mxu0 0.0
    %574 = vmatpush1.msra.mxu0 %v442
    %575 = vmatprep.subr.mxu0 0.0
    %576 = vmatpush1.msra.mxu0 %v441
    %577 = vmatprep.subr.mxu0 0.0
    %578 = vmatpush1.msra.mxu0 %v440
    %579 = vmatprep.subr.mxu0 0.0
    %580 = vmatpush1.msra.mxu0 %v439
    %581 = vmatprep.subr.mxu0 0.0
    %582 = vmatpush2.msra.mxu0 0.0
    %583 = vmatprep.subr.mxu0 0.0
    %584 = vmatpush2.msra.mxu0 0.0
    %585 = vmatprep.subr.mxu0 0.0
    %586 = vmatpush2.msra.mxu0 0.0
    %587 = vmatprep.subr.mxu0 0.0
    %588 = vmatpush2.msra.mxu0 0.0
    %589 = vmatprep.subr.mxu0 0.0
    %590 = vmatpush2.msra.mxu0 0.0
    %591 = vmatprep.subr.mxu0 0.0
    %592 = vmatpush2.msra.mxu0 0.0
    %593 = vmatprep.subr.mxu0 0.0
    %594 = vmatpush2.msra.mxu0 0.0
    %595 = vmatprep.subr.mxu0 0.0
    %596 = vmatpush2.msra.mxu0 0.0
    %597 = vmatprep.subr.mxu0 0.0
    %598 = vmatpush2.msra.mxu0 0.0
    %599 = vmatprep.subr.mxu0 0.0
    %600 = vmatpush2.msra.mxu0 0.0
    %601 = vmatprep.subr.mxu0 0.0
    %602 = vmatpush2.msra.mxu0 0.0
    %603 = vmatprep.subr.mxu0 0.0
    %604 = vmatpush2.msra.mxu0 0.0
    %605 = vmatprep.subr.mxu0 0.0
    %606 = vmatpush2.msra.mxu0 0.0
    %607 = vmatprep.subr.mxu0 0.0
    %608 = vmatpush2.msra.mxu0 0.0
    %609 = vmatprep.subr.mxu0 0.0
    %610 = vmatpush2.msra.mxu0 0.0
    %611 = vmatprep.subr.mxu0 0.0
    %612 = vmatpush2.msra.mxu0 0.0
    %613 = vmatprep.mubr.f32.mxu0 0.0
    %614 = vmatmul.mubr.f32.gmra.mxu0 %v153
    %v615 = vpop.f32.mrf.mxu0
    %v616 = vadd.f32 %v466, %v615
    %v617 = vpop.f32.mrf.mxu0
    %618 = vdwg.mxu0
    %619 = vmatprep.subr.mxu0 0.0
    %620 = vmatpush1.msra.mxu0 0.0
    %621 = vmatprep.subr.mxu0 0.0
    %622 = vmatpush1.msra.mxu0 0.0
    %623 = vmatprep.subr.mxu0 0.0
    %624 = vmatpush1.msra.mxu0 0.0
    %625 = vmatprep.subr.mxu0 0.0
    %626 = vmatpush1.msra.mxu0 0.0
    %627 = vmatprep.subr.mxu0 0.0
    %628 = vmatpush1.msra.mxu0 0.0
    %629 = vmatprep.subr.mxu0 0.0
    %630 = vmatpush1.msra.mxu0 0.0
    %631 = vmatprep.subr.mxu0 0.0
    %632 = vmatpush1.msra.mxu0 0.0
    %633 = vmatprep.subr.mxu0 0.0
    %634 = vmatpush1.msra.mxu0 0.0
    %635 = vmatprep.subr.mxu0 0.0
    %636 = vmatpush1.msra.mxu0 0.0
    %637 = vmatprep.subr.mxu0 0.0
    %638 = vmatpush1.msra.mxu0 0.0
    %639 = vmatprep.subr.mxu0 0.0
    %640 = vmatpush1.msra.mxu0 0.0
    %641 = vmatprep.subr.mxu0 0.0
    %642 = vmatpush1.msra.mxu0 0.0
    %643 = vmatprep.subr.mxu0 0.0
    %644 = vmatpush1.msra.mxu0 %v446
    %645 = vmatprep.subr.mxu0 0.0
    %646 = vmatpush1.msra.mxu0 %v445
    %647 = vmatprep.subr.mxu0 0.0
    %648 = vmatpush1.msra.mxu0 %v444
    %649 = vmatprep.subr.mxu0 0.0
    %650 = vmatpush1.msra.mxu0 %v443
    %651 = vmatprep.subr.mxu0 0.0
    %652 = vmatpush2.msra.mxu0 0.0
    %653 = vmatprep.subr.mxu0 0.0
    %654 = vmatpush2.msra.mxu0 0.0
    %655 = vmatprep.subr.mxu0 0.0
    %656 = vmatpush2.msra.mxu0 0.0
    %657 = vmatprep.subr.mxu0 0.0
    %658 = vmatpush2.msra.mxu0 0.0
    %659 = vmatprep.subr.mxu0 0.0
    %660 = vmatpush2.msra.mxu0 0.0
    %661 = vmatprep.subr.mxu0 0.0
    %662 = vmatpush2.msra.mxu0 0.0
    %663 = vmatprep.subr.mxu0 0.0
    %664 = vmatpush2.msra.mxu0 0.0
    %665 = vmatprep.subr.mxu0 0.0
    %666 = vmatpush2.msra.mxu0 0.0
    %667 = vmatprep.subr.mxu0 0.0
    %668 = vmatpush2.msra.mxu0 0.0
    %669 = vmatprep.subr.mxu0 0.0
    %670 = vmatpush2.msra.mxu0 0.0
    %671 = vmatprep.subr.mxu0 0.0
    %672 = vmatpush2.msra.mxu0 0.0
    %673 = vmatprep.subr.mxu0 0.0
    %674 = vmatpush2.msra.mxu0 0.0
    %675 = vmatprep.subr.mxu0 0.0
    %676 = vmatpush2.msra.mxu0 0.0
    %677 = vmatprep.subr.mxu0 0.0
    %678 = vmatpush2.msra.mxu0 0.0
    %679 = vmatprep.subr.mxu0 0.0
    %680 = vmatpush2.msra.mxu0 0.0
    %681 = vmatprep.subr.mxu0 0.0
    %682 = vmatpush2.msra.mxu0 0.0
    %683 = vmatprep.mubr.f32.mxu0 0.0
    %684 = vmatmul.mubr.f32.gmra.mxu0 %v153
    %v685 = vpop.f32.mrf.mxu0
    %v686 = vadd.f32 %v470, %v685
    %v687 = vpop.f32.mrf.mxu0
    %688 = vdwg.mxu0
    %689 = vmatprep.subr.mxu0 0.0
    %690 = vmatpush1.msra.mxu0 0.0
    %691 = vmatprep.subr.mxu0 0.0
    %692 = vmatpush1.msra.mxu0 0.0
    %693 = vmatprep.subr.mxu0 0.0
    %694 = vmatpush1.msra.mxu0 0.0
    %695 = vmatprep.subr.mxu0 0.0
    %696 = vmatpush1.msra.mxu0 0.0
    %697 = vmatprep.subr.mxu0 0.0
    %698 = vmatpush1.msra.mxu0 0.0
    %699 = vmatprep.subr.mxu0 0.0
    %700 = vmatpush1.msra.mxu0 0.0
    %701 = vmatprep.subr.mxu0 0.0
    %702 = vmatpush1.msra.mxu0 0.0
    %703 = vmatprep.subr.mxu0 0.0
    %704 = vmatpush1.msra.mxu0 0.0
    %705 = vmatprep.subr.mxu0 0.0
    %706 = vmatpush1.msra.mxu0 0.0
    %707 = vmatprep.subr.mxu0 0.0
    %708 = vmatpush1.msra.mxu0 0.0
    %709 = vmatprep.subr.mxu0 0.0
    %710 = vmatpush1.msra.mxu0 0.0
    %711 = vmatprep.subr.mxu0 0.0
    %712 = vmatpush1.msra.mxu0 0.0
    %713 = vmatprep.subr.mxu0 0.0
    %714 = vmatpush1.msra.mxu0 %v450
    %715 = vmatprep.subr.mxu0 0.0
    %716 = vmatpush1.msra.mxu0 %v449
    %717 = vmatprep.subr.mxu0 0.0
    %718 = vmatpush1.msra.mxu0 %v448
    %719 = vmatprep.subr.mxu0 0.0
    %720 = vmatpush1.msra.mxu0 %v447
    %721 = vmatprep.subr.mxu0 0.0
    %722 = vmatpush2.msra.mxu0 0.0
    %723 = vmatprep.subr.mxu0 0.0
    %724 = vmatpush2.msra.mxu0 0.0
    %725 = vmatprep.subr.mxu0 0.0
    %726 = vmatpush2.msra.mxu0 0.0
    %727 = vmatprep.subr.mxu0 0.0
    %728 = vmatpush2.msra.mxu0 0.0
    %729 = vmatprep.subr.mxu0 0.0
    %730 = vmatpush2.msra.mxu0 0.0
    %731 = vmatprep.subr.mxu0 0.0
    %732 = vmatpush2.msra.mxu0 0.0
    %733 = vmatprep.subr.mxu0 0.0
    %734 = vmatpush2.msra.mxu0 0.0
    %735 = vmatprep.subr.mxu0 0.0
    %736 = vmatpush2.msra.mxu0 0.0
    %737 = vmatprep.subr.mxu0 0.0
    %738 = vmatpush2.msra.mxu0 0.0
    %739 = vmatprep.subr.mxu0 0.0
    %740 = vmatpush2.msra.mxu0 0.0
    %741 = vmatprep.subr.mxu0 0.0
    %742 = vmatpush2.msra.mxu0 0.0
    %743 = vmatprep.subr.mxu0 0.0
    %744 = vmatpush2.msra.mxu0 0.0
    %745 = vmatprep.subr.mxu0 0.0
    %746 = vmatpush2.msra.mxu0 0.0
    %747 = vmatprep.subr.mxu0 0.0
    %748 = vmatpush2.msra.mxu0 0.0
    %749 = vmatprep.subr.mxu0 0.0
    %750 = vmatpush2.msra.mxu0 0.0
    %751 = vmatprep.subr.mxu0 0.0
    %752 = vmatpush2.msra.mxu0 0.0
    %753 = vmatprep.mubr.f32.mxu0 0.0
    %754 = vmatmul.mubr.f32.gmra.mxu0 %v153
    %v755 = vpop.f32.mrf.mxu0
    %v756 = vadd.f32 %v474, %v755
    %v757 = vpop.f32.mrf.mxu0
    %758 = vdwg.mxu0
    %v759 = vld [vmem:[%s11] sm:$0xff]
    %v760 = vld [vmem:[%s11 + $0x8] sm:$0xff]
    %v761 = vld [vmem:[%s11 + $0x10] sm:$0xff]
    %v762 = vld [vmem:[%s11 + $0x18] sm:$0xff]
    %v763 = vld [vmem:[%s11 + $0x20] sm:$0xff]
    %v764 = vld [vmem:[%s11 + $0x28] sm:$0xff]
    %v765 = vld [vmem:[%s11 + $0x30] sm:$0xff]
    %v766 = vld [vmem:[%s11 + $0x38] sm:$0xff]
    %v767 = vld [vmem:[%s11 + $0x40] sm:$0xff]
    %v768 = vld [vmem:[%s11 + $0x48] sm:$0xff]
    %v769 = vld [vmem:[%s11 + $0x50] sm:$0xff]
    %v770 = vld [vmem:[%s11 + $0x58] sm:$0xff]
    %v771 = vld [vmem:[%s11 + $0x60] sm:$0xff]
    %v772 = vld [vmem:[%s11 + $0x68] sm:$0xff]
    %v773 = vld [vmem:[%s11 + $0x70] sm:$0xff]
    %v774 = vld [vmem:[%s11 + $0x78] sm:$0xff]
    %v775 = vld [vmem:[%s12] sm:$0x1]
    %v776 = vld [vmem:[%s12 + $0x1] sm:$0x1]
    %v777 = vld [vmem:[%s12 + $0x2] sm:$0x1]
    %v778 = vld [vmem:[%s12 + $0x3] sm:$0x1]
    %v783 = vlaneseq
    %v784 = vshrl.u32 %v783, 7
    %v785 = vsub.s32 0, %v784
    %v786 = vrot.slane %v775, %v785
    %v787 = vlaneseq
    %v788 = vshrl.u32 %v787, 7
    %v789 = vsub.s32 0, %v788
    %v790 = vrot.slane %v776, %v789
    %v791 = vlaneseq
    %v792 = vshrl.u32 %v791, 7
    %v793 = vsub.s32 0, %v792
    %v794 = vrot.slane %v777, %v793
    %v795 = vlaneseq
    %v796 = vshrl.u32 %v795, 7
    %v797 = vsub.s32 0, %v796
    %v798 = vrot.slane %v778, %v797
    %803 = vmatprep.subr.mxu0 0.0
    %804 = vmatpush1.msra.mxu0 0.0
    %805 = vmatprep.subr.mxu0 0.0
    %806 = vmatpush1.msra.mxu0 0.0
    %807 = vmatprep.subr.mxu0 0.0
    %808 = vmatpush1.msra.mxu0 0.0
    %809 = vmatprep.subr.mxu0 0.0
    %810 = vmatpush1.msra.mxu0 0.0
    %811 = vmatprep.subr.mxu0 0.0
    %812 = vmatpush1.msra.mxu0 0.0
    %813 = vmatprep.subr.mxu0 0.0
    %814 = vmatpush1.msra.mxu0 0.0
    %815 = vmatprep.subr.mxu0 0.0
    %816 = vmatpush1.msra.mxu0 0.0
    %817 = vmatprep.subr.mxu0 0.0
    %818 = vmatpush1.msra.mxu0 0.0
    %819 = vmatprep.subr.mxu0 0.0
    %820 = vmatpush1.msra.mxu0 0.0
    %821 = vmatprep.subr.mxu0 0.0
    %822 = vmatpush1.msra.mxu0 0.0
    %823 = vmatprep.subr.mxu0 0.0
    %824 = vmatpush1.msra.mxu0 0.0
    %825 = vmatprep.subr.mxu0 0.0
    %826 = vmatpush1.msra.mxu0 0.0
    %827 = vmatprep.subr.mxu0 0.0
    %828 = vmatpush1.msra.mxu0 %v762
    %829 = vmatprep.subr.mxu0 0.0
    %830 = vmatpush1.msra.mxu0 %v761
    %831 = vmatprep.subr.mxu0 0.0
    %832 = vmatpush1.msra.mxu0 %v760
    %833 = vmatprep.subr.mxu0 0.0
    %834 = vmatpush1.msra.mxu0 %v759
    %835 = vmatprep.subr.mxu0 0.0
    %836 = vmatpush2.msra.mxu0 0.0
    %837 = vmatprep.subr.mxu0 0.0
    %838 = vmatpush2.msra.mxu0 0.0
    %839 = vmatprep.subr.mxu0 0.0
    %840 = vmatpush2.msra.mxu0 0.0
    %841 = vmatprep.subr.mxu0 0.0
    %842 = vmatpush2.msra.mxu0 0.0
    %843 = vmatprep.subr.mxu0 0.0
    %844 = vmatpush2.msra.mxu0 0.0
    %845 = vmatprep.subr.mxu0 0.0
    %846 = vmatpush2.msra.mxu0 0.0
    %847 = vmatprep.subr.mxu0 0.0
    %848 = vmatpush2.msra.mxu0 0.0
    %849 = vmatprep.subr.mxu0 0.0
    %850 = vmatpush2.msra.mxu0 0.0
    %851 = vmatprep.subr.mxu0 0.0
    %852 = vmatpush2.msra.mxu0 0.0
    %853 = vmatprep.subr.mxu0 0.0
    %854 = vmatpush2.msra.mxu0 0.0
    %855 = vmatprep.subr.mxu0 0.0
    %856 = vmatpush2.msra.mxu0 0.0
    %857 = vmatprep.subr.mxu0 0.0
    %858 = vmatpush2.msra.mxu0 0.0
    %859 = vmatprep.subr.mxu0 0.0
    %860 = vmatpush2.msra.mxu0 0.0
    %861 = vmatprep.subr.mxu0 0.0
    %862 = vmatpush2.msra.mxu0 0.0
    %863 = vmatprep.subr.mxu0 0.0
    %864 = vmatpush2.msra.mxu0 0.0
    %865 = vmatprep.subr.mxu0 0.0
    %866 = vmatpush2.msra.mxu0 0.0
    %867 = vmatprep.mubr.f32.mxu0 0.0
    %868 = vmatmul.mubr.f32.gmra.mxu0 %v153
    %v869 = vpop.f32.mrf.mxu0
    %v870 = vadd.f32 %v786, %v869
    %v871 = vpop.f32.mrf.mxu0
    %872 = vdwg.mxu0
    %873 = vmatprep.subr.mxu0 0.0
    %874 = vmatpush1.msra.mxu0 0.0
    %875 = vmatprep.subr.mxu0 0.0
    %876 = vmatpush1.msra.mxu0 0.0
    %877 = vmatprep.subr.mxu0 0.0
    %878 = vmatpush1.msra.mxu0 0.0
    %879 = vmatprep.subr.mxu0 0.0
    %880 = vmatpush1.msra.mxu0 0.0
    %881 = vmatprep.subr.mxu0 0.0
    %882 = vmatpush1.msra.mxu0 0.0
    %883 = vmatprep.subr.mxu0 0.0
    %884 = vmatpush1.msra.mxu0 0.0
    %885 = vmatprep.subr.mxu0 0.0
    %886 = vmatpush1.msra.mxu0 0.0
    %887 = vmatprep.subr.mxu0 0.0
    %888 = vmatpush1.msra.mxu0 0.0
    %889 = vmatprep.subr.mxu0 0.0
    %890 = vmatpush1.msra.mxu0 0.0
    %891 = vmatprep.subr.mxu0 0.0
    %892 = vmatpush1.msra.mxu0 0.0
    %893 = vmatprep.subr.mxu0 0.0
    %894 = vmatpush1.msra.mxu0 0.0
    %895 = vmatprep.subr.mxu0 0.0
    %896 = vmatpush1.msra.mxu0 0.0
    %897 = vmatprep.subr.mxu0 0.0
    %898 = vmatpush1.msra.mxu0 %v766
    %899 = vmatprep.subr.mxu0 0.0
    %900 = vmatpush1.msra.mxu0 %v765
    %901 = vmatprep.subr.mxu0 0.0
    %902 = vmatpush1.msra.mxu0 %v764
    %903 = vmatprep.subr.mxu0 0.0
    %904 = vmatpush1.msra.mxu0 %v763
    %905 = vmatprep.subr.mxu0 0.0
    %906 = vmatpush2.msra.mxu0 0.0
    %907 = vmatprep.subr.mxu0 0.0
    %908 = vmatpush2.msra.mxu0 0.0
    %909 = vmatprep.subr.mxu0 0.0
    %910 = vmatpush2.msra.mxu0 0.0
    %911 = vmatprep.subr.mxu0 0.0
    %912 = vmatpush2.msra.mxu0 0.0
    %913 = vmatprep.subr.mxu0 0.0
    %914 = vmatpush2.msra.mxu0 0.0
    %915 = vmatprep.subr.mxu0 0.0
    %916 = vmatpush2.msra.mxu0 0.0
    %917 = vmatprep.subr.mxu0 0.0
    %918 = vmatpush2.msra.mxu0 0.0
    %919 = vmatprep.subr.mxu0 0.0
    %920 = vmatpush2.msra.mxu0 0.0
    %921 = vmatprep.subr.mxu0 0.0
    %922 = vmatpush2.msra.mxu0 0.0
    %923 = vmatprep.subr.mxu0 0.0
    %924 = vmatpush2.msra.mxu0 0.0
    %925 = vmatprep.subr.mxu0 0.0
    %926 = vmatpush2.msra.mxu0 0.0
    %927 = vmatprep.subr.mxu0 0.0
    %928 = vmatpush2.msra.mxu0 0.0
    %929 = vmatprep.subr.mxu0 0.0
    %930 = vmatpush2.msra.mxu0 0.0
    %931 = vmatprep.subr.mxu0 0.0
    %932 = vmatpush2.msra.mxu0 0.0
    %933 = vmatprep.subr.mxu0 0.0
    %934 = vmatpush2.msra.mxu0 0.0
    %935 = vmatprep.subr.mxu0 0.0
    %936 = vmatpush2.msra.mxu0 0.0
    %937 = vmatprep.mubr.f32.mxu0 0.0
    %938 = vmatmul.mubr.f32.gmra.mxu0 %v153
    %v939 = vpop.f32.mrf.mxu0
    %v940 = vadd.f32 %v790, %v939
    %v941 = vpop.f32.mrf.mxu0
    %942 = vdwg.mxu0
    %943 = vmatprep.subr.mxu0 0.0
    %944 = vmatpush1.msra.mxu0 0.0
    %945 = vmatprep.subr.mxu0 0.0
    %946 = vmatpush1.msra.mxu0 0.0
    %947 = vmatprep.subr.mxu0 0.0
    %948 = vmatpush1.msra.mxu0 0.0
    %949 = vmatprep.subr.mxu0 0.0
    %950 = vmatpush1.msra.mxu0 0.0
    %951 = vmatprep.subr.mxu0 0.0
    %952 = vmatpush1.msra.mxu0 0.0
    %953 = vmatprep.subr.mxu0 0.0
    %954 = vmatpush1.msra.mxu0 0.0
    %955 = vmatprep.subr.mxu0 0.0
    %956 = vmatpush1.msra.mxu0 0.0
    %957 = vmatprep.subr.mxu0 0.0
    %958 = vmatpush1.msra.mxu0 0.0
    %959 = vmatprep.subr.mxu0 0.0
    %960 = vmatpush1.msra.mxu0 0.0
    %961 = vmatprep.subr.mxu0 0.0
    %962 = vmatpush1.msra.mxu0 0.0
    %963 = vmatprep.subr.mxu0 0.0
    %964 = vmatpush1.msra.mxu0 0.0
    %965 = vmatprep.subr.mxu0 0.0
    %966 = vmatpush1.msra.mxu0 0.0
    %967 = vmatprep.subr.mxu0 0.0
    %968 = vmatpush1.msra.mxu0 %v770
    %969 = vmatprep.subr.mxu0 0.0
    %970 = vmatpush1.msra.mxu0 %v769
    %971 = vmatprep.subr.mxu0 0.0
    %972 = vmatpush1.msra.mxu0 %v768
    %973 = vmatprep.subr.mxu0 0.0
    %974 = vmatpush1.msra.mxu0 %v767
    %975 = vmatprep.subr.mxu0 0.0
    %976 = vmatpush2.msra.mxu0 0.0
    %977 = vmatprep.subr.mxu0 0.0
    %978 = vmatpush2.msra.mxu0 0.0
    %979 = vmatprep.subr.mxu0 0.0
    %980 = vmatpush2.msra.mxu0 0.0
    %981 = vmatprep.subr.mxu0 0.0
    %982 = vmatpush2.msra.mxu0 0.0
    %983 = vmatprep.subr.mxu0 0.0
    %984 = vmatpush2.msra.mxu0 0.0
    %985 = vmatprep.subr.mxu0 0.0
    %986 = vmatpush2.msra.mxu0 0.0
    %987 = vmatprep.subr.mxu0 0.0
    %988 = vmatpush2.msra.mxu0 0.0
    %989 = vmatprep.subr.mxu0 0.0
    %990 = vmatpush2.msra.mxu0 0.0
    %991 = vmatprep.subr.mxu0 0.0
    %992 = vmatpush2.msra.mxu0 0.0
    %993 = vmatprep.subr.mxu0 0.0
    %994 = vmatpush2.msra.mxu0 0.0
    %995 = vmatprep.subr.mxu0 0.0
    %996 = vmatpush2.msra.mxu0 0.0
    %997 = vmatprep.subr.mxu0 0.0
    %998 = vmatpush2.msra.mxu0 0.0
    %999 = vmatprep.subr.mxu0 0.0
    %1000 = vmatpush2.msra.mxu0 0.0
    %1001 = vmatprep.subr.mxu0 0.0
    %1002 = vmatpush2.msra.mxu0 0.0
    %1003 = vmatprep.subr.mxu0 0.0
    %1004 = vmatpush2.msra.mxu0 0.0
    %1005 = vmatprep.subr.mxu0 0.0
    %1006 = vmatpush2.msra.mxu0 0.0
    %1007 = vmatprep.mubr.f32.mxu0 0.0
    %1008 = vmatmul.mubr.f32.gmra.mxu0 %v153
    %v1009 = vpop.f32.mrf.mxu0
    %v1010 = vadd.f32 %v794, %v1009
    %v1011 = vpop.f32.mrf.mxu0
    %1012 = vdwg.mxu0
    %1013 = vmatprep.subr.mxu0 0.0
    %1014 = vmatpush1.msra.mxu0 0.0
    %1015 = vmatprep.subr.mxu0 0.0
    %1016 = vmatpush1.msra.mxu0 0.0
    %1017 = vmatprep.subr.mxu0 0.0
    %1018 = vmatpush1.msra.mxu0 0.0
    %1019 = vmatprep.subr.mxu0 0.0
    %1020 = vmatpush1.msra.mxu0 0.0
    %1021 = vmatprep.subr.mxu0 0.0
    %1022 = vmatpush1.msra.mxu0 0.0
    %1023 = vmatprep.subr.mxu0 0.0
    %1024 = vmatpush1.msra.mxu0 0.0
    %1025 = vmatprep.subr.mxu0 0.0
    %1026 = vmatpush1.msra.mxu0 0.0
    %1027 = vmatprep.subr.mxu0 0.0
    %1028 = vmatpush1.msra.mxu0 0.0
    %1029 = vmatprep.subr.mxu0 0.0
    %1030 = vmatpush1.msra.mxu0 0.0
    %1031 = vmatprep.subr.mxu0 0.0
    %1032 = vmatpush1.msra.mxu0 0.0
    %1033 = vmatprep.subr.mxu0 0.0
    %1034 = vmatpush1.msra.mxu0 0.0
    %1035 = vmatprep.subr.mxu0 0.0
    %1036 = vmatpush1.msra.mxu0 0.0
    %1037 = vmatprep.subr.mxu0 0.0
    %1038 = vmatpush1.msra.mxu0 %v774
    %1039 = vmatprep.subr.mxu0 0.0
    %1040 = vmatpush1.msra.mxu0 %v773
    %1041 = vmatprep.subr.mxu0 0.0
    %1042 = vmatpush1.msra.mxu0 %v772
    %1043 = vmatprep.subr.mxu0 0.0
    %1044 = vmatpush1.msra.mxu0 %v771
    %1045 = vmatprep.subr.mxu0 0.0
    %1046 = vmatpush2.msra.mxu0 0.0
    %1047 = vmatprep.subr.mxu0 0.0
    %1048 = vmatpush2.msra.mxu0 0.0
    %1049 = vmatprep.subr.mxu0 0.0
    %1050 = vmatpush2.msra.mxu0 0.0
    %1051 = vmatprep.subr.mxu0 0.0
    %1052 = vmatpush2.msra.mxu0 0.0
    %1053 = vmatprep.subr.mxu0 0.0
    %1054 = vmatpush2.msra.mxu0 0.0
    %1055 = vmatprep.subr.mxu0 0.0
    %1056 = vmatpush2.msra.mxu0 0.0
    %1057 = vmatprep.subr.mxu0 0.0
    %1058 = vmatpush2.msra.mxu0 0.0
    %1059 = vmatprep.subr.mxu0 0.0
    %1060 = vmatpush2.msra.mxu0 0.0
    %1061 = vmatprep.subr.mxu0 0.0
    %1062 = vmatpush2.msra.mxu0 0.0
    %1063 = vmatprep.subr.mxu0 0.0
    %1064 = vmatpush2.msra.mxu0 0.0
    %1065 = vmatprep.subr.mxu0 0.0
    %1066 = vmatpush2.msra.mxu0 0.0
    %1067 = vmatprep.subr.mxu0 0.0
    %1068 = vmatpush2.msra.mxu0 0.0
    %1069 = vmatprep.subr.mxu0 0.0
    %1070 = vmatpush2.msra.mxu0 0.0
    %1071 = vmatprep.subr.mxu0 0.0
    %1072 = vmatpush2.msra.mxu0 0.0
    %1073 = vmatprep.subr.mxu0 0.0
    %1074 = vmatpush2.msra.mxu0 0.0
    %1075 = vmatprep.subr.mxu0 0.0
    %1076 = vmatpush2.msra.mxu0 0.0
    %1077 = vmatprep.mubr.f32.mxu0 0.0
    %1078 = vmatmul.mubr.f32.gmra.mxu0 %v153
    %v1079 = vpop.f32.mrf.mxu0
    %v1080 = vadd.f32 %v798, %v1079
    %v1081 = vpop.f32.mrf.mxu0
    %1082 = vdwg.mxu0
    %vm1083 = vcmask 64512
    %v1085 = vsel %vm1083, %v222, 0
    %1087 = vmatprep.subr.mxu0 0.0
    %1088 = vmatpush1.msra.mxu0 0.0
    %1089 = vmatprep.subr.mxu0 0.0
    %1090 = vmatpush1.msra.mxu0 0.0
    %1091 = vmatprep.subr.mxu0 0.0
    %1092 = vmatpush1.msra.mxu0 0.0
    %1093 = vmatprep.subr.mxu0 0.0
    %1094 = vmatpush1.msra.mxu0 0.0
    %1095 = vmatprep.subr.mxu0 0.0
    %1096 = vmatpush1.msra.mxu0 0.0
    %1097 = vmatprep.subr.mxu0 0.0
    %1098 = vmatpush1.msra.mxu0 0.0
    %1099 = vmatprep.subr.mxu0 0.0
    %1100 = vmatpush1.msra.mxu0 0.0
    %1101 = vmatprep.subr.mxu0 0.0
    %1102 = vmatpush1.msra.mxu0 0.0
    %1103 = vmatprep.subr.mxu0 0.0
    %1104 = vmatpush1.msra.mxu0 0.0
    %1105 = vmatprep.subr.mxu0 0.0
    %1106 = vmatpush1.msra.mxu0 0.0
    %1107 = vmatprep.subr.mxu0 0.0
    %1108 = vmatpush1.msra.mxu0 0.0
    %1109 = vmatprep.subr.mxu0 0.0
    %1110 = vmatpush1.msra.mxu0 0.0
    %1111 = vmatprep.subr.mxu0 0.0
    %1112 = vmatpush1.msra.mxu0 0.0
    %1113 = vmatprep.subr.mxu0 0.0
    %1114 = vmatpush1.msra.mxu0 0.0
    %1115 = vmatprep.subr.mxu0 0.0
    %1116 = vmatpush1.msra.mxu0 0.0
    %1117 = vmatprep.subr.mxu0 0.0
    %1118 = vmatpush1.msra.mxu0 %v72
    %1119 = vmatprep.subr.mxu0 0.0
    %1120 = vmatpush2.msra.mxu0 0.0
    %1121 = vmatprep.subr.mxu0 0.0
    %1122 = vmatpush2.msra.mxu0 0.0
    %1123 = vmatprep.subr.mxu0 0.0
    %1124 = vmatpush2.msra.mxu0 0.0
    %1125 = vmatprep.subr.mxu0 0.0
    %1126 = vmatpush2.msra.mxu0 0.0
    %1127 = vmatprep.subr.mxu0 0.0
    %1128 = vmatpush2.msra.mxu0 0.0
    %1129 = vmatprep.subr.mxu0 0.0
    %1130 = vmatpush2.msra.mxu0 0.0
    %1131 = vmatprep.subr.mxu0 0.0
    %1132 = vmatpush2.msra.mxu0 0.0
    %1133 = vmatprep.subr.mxu0 0.0
    %1134 = vmatpush2.msra.mxu0 0.0
    %1135 = vmatprep.subr.mxu0 0.0
    %1136 = vmatpush2.msra.mxu0 0.0
    %1137 = vmatprep.subr.mxu0 0.0
    %1138 = vmatpush2.msra.mxu0 0.0
    %1139 = vmatprep.subr.mxu0 0.0
    %1140 = vmatpush2.msra.mxu0 0.0
    %1141 = vmatprep.subr.mxu0 0.0
    %1142 = vmatpush2.msra.mxu0 0.0
    %1143 = vmatprep.subr.mxu0 0.0
    %1144 = vmatpush2.msra.mxu0 0.0
    %1145 = vmatprep.subr.mxu0 0.0
    %1146 = vmatpush2.msra.mxu0 0.0
    %1147 = vmatprep.subr.mxu0 0.0
    %1148 = vmatpush2.msra.mxu0 0.0
    %1149 = vmatprep.subr.mxu0 0.0
    %1150 = vmatpush2.msra.mxu0 0.0
    %1151 = vmatprep.mubr.f32.mxu0 0.0
    %1152 = vmatmul.mubr.f32.gmra.mxu0 %v1085
    %v1153 = vpop.f32.mrf.mxu0
    %v1154 = vadd.f32 0.0, %v1153
    %v1155 = vpop.f32.mrf.mxu0
    %1156 = vdwg.mxu0
    %v1158 = vsel %vm1083, %v292, 0
    %1160 = vmatprep.subr.mxu0 0.0
    %1161 = vmatpush1.msra.mxu0 0.0
    %1162 = vmatprep.subr.mxu0 0.0
    %1163 = vmatpush1.msra.mxu0 0.0
    %1164 = vmatprep.subr.mxu0 0.0
    %1165 = vmatpush1.msra.mxu0 0.0
    %1166 = vmatprep.subr.mxu0 0.0
    %1167 = vmatpush1.msra.mxu0 0.0
    %1168 = vmatprep.subr.mxu0 0.0
    %1169 = vmatpush1.msra.mxu0 0.0
    %1170 = vmatprep.subr.mxu0 0.0
    %1171 = vmatpush1.msra.mxu0 0.0
    %1172 = vmatprep.subr.mxu0 0.0
    %1173 = vmatpush1.msra.mxu0 0.0
    %1174 = vmatprep.subr.mxu0 0.0
    %1175 = vmatpush1.msra.mxu0 0.0
    %1176 = vmatprep.subr.mxu0 0.0
    %1177 = vmatpush1.msra.mxu0 0.0
    %1178 = vmatprep.subr.mxu0 0.0
    %1179 = vmatpush1.msra.mxu0 0.0
    %1180 = vmatprep.subr.mxu0 0.0
    %1181 = vmatpush1.msra.mxu0 0.0
    %1182 = vmatprep.subr.mxu0 0.0
    %1183 = vmatpush1.msra.mxu0 0.0
    %1184 = vmatprep.subr.mxu0 0.0
    %1185 = vmatpush1.msra.mxu0 0.0
    %1186 = vmatprep.subr.mxu0 0.0
    %1187 = vmatpush1.msra.mxu0 0.0
    %1188 = vmatprep.subr.mxu0 0.0
    %1189 = vmatpush1.msra.mxu0 0.0
    %1190 = vmatprep.subr.mxu0 0.0
    %1191 = vmatpush1.msra.mxu0 %v73
    %1192 = vmatprep.subr.mxu0 0.0
    %1193 = vmatpush2.msra.mxu0 0.0
    %1194 = vmatprep.subr.mxu0 0.0
    %1195 = vmatpush2.msra.mxu0 0.0
    %1196 = vmatprep.subr.mxu0 0.0
    %1197 = vmatpush2.msra.mxu0 0.0
    %1198 = vmatprep.subr.mxu0 0.0
    %1199 = vmatpush2.msra.mxu0 0.0
    %1200 = vmatprep.subr.mxu0 0.0
    %1201 = vmatpush2.msra.mxu0 0.0
    %1202 = vmatprep.subr.mxu0 0.0
    %1203 = vmatpush2.msra.mxu0 0.0
    %1204 = vmatprep.subr.mxu0 0.0
    %1205 = vmatpush2.msra.mxu0 0.0
    %1206 = vmatprep.subr.mxu0 0.0
    %1207 = vmatpush2.msra.mxu0 0.0
    %1208 = vmatprep.subr.mxu0 0.0
    %1209 = vmatpush2.msra.mxu0 0.0
    %1210 = vmatprep.subr.mxu0 0.0
    %1211 = vmatpush2.msra.mxu0 0.0
    %1212 = vmatprep.subr.mxu0 0.0
    %1213 = vmatpush2.msra.mxu0 0.0
    %1214 = vmatprep.subr.mxu0 0.0
    %1215 = vmatpush2.msra.mxu0 0.0
    %1216 = vmatprep.subr.mxu0 0.0
    %1217 = vmatpush2.msra.mxu0 0.0
    %1218 = vmatprep.subr.mxu0 0.0
    %1219 = vmatpush2.msra.mxu0 0.0
    %1220 = vmatprep.subr.mxu0 0.0
    %1221 = vmatpush2.msra.mxu0 0.0
    %1222 = vmatprep.subr.mxu0 0.0
    %1223 = vmatpush2.msra.mxu0 0.0
    %1224 = vmatprep.mubr.f32.mxu0 0.0
    %1225 = vmatmul.mubr.f32.gmra.mxu0 %v1158
    %v1226 = vpop.f32.mrf.mxu0
    %v1227 = vadd.f32 0.0, %v1226
    %v1228 = vpop.f32.mrf.mxu0
    %1229 = vdwg.mxu0
    %v1231 = vsel %vm1083, %v362, 0
    %1233 = vmatprep.subr.mxu0 0.0
    %1234 = vmatpush1.msra.mxu0 0.0
    %1235 = vmatprep.subr.mxu0 0.0
    %1236 = vmatpush1.msra.mxu0 0.0
    %1237 = vmatprep.subr.mxu0 0.0
    %1238 = vmatpush1.msra.mxu0 0.0
    %1239 = vmatprep.subr.mxu0 0.0
    %1240 = vmatpush1.msra.mxu0 0.0
    %1241 = vmatprep.subr.mxu0 0.0
    %1242 = vmatpush1.msra.mxu0 0.0
    %1243 = vmatprep.subr.mxu0 0.0
    %1244 = vmatpush1.msra.mxu0 0.0
    %1245 = vmatprep.subr.mxu0 0.0
    %1246 = vmatpush1.msra.mxu0 0.0
    %1247 = vmatprep.subr.mxu0 0.0
    %1248 = vmatpush1.msra.mxu0 0.0
    %1249 = vmatprep.subr.mxu0 0.0
    %1250 = vmatpush1.msra.mxu0 0.0
    %1251 = vmatprep.subr.mxu0 0.0
    %1252 = vmatpush1.msra.mxu0 0.0
    %1253 = vmatprep.subr.mxu0 0.0
    %1254 = vmatpush1.msra.mxu0 0.0
    %1255 = vmatprep.subr.mxu0 0.0
    %1256 = vmatpush1.msra.mxu0 0.0
    %1257 = vmatprep.subr.mxu0 0.0
    %1258 = vmatpush1.msra.mxu0 0.0
    %1259 = vmatprep.subr.mxu0 0.0
    %1260 = vmatpush1.msra.mxu0 0.0
    %1261 = vmatprep.subr.mxu0 0.0
    %1262 = vmatpush1.msra.mxu0 0.0
    %1263 = vmatprep.subr.mxu0 0.0
    %1264 = vmatpush1.msra.mxu0 %v74
    %1265 = vmatprep.subr.mxu0 0.0
    %1266 = vmatpush2.msra.mxu0 0.0
    %1267 = vmatprep.subr.mxu0 0.0
    %1268 = vmatpush2.msra.mxu0 0.0
    %1269 = vmatprep.subr.mxu0 0.0
    %1270 = vmatpush2.msra.mxu0 0.0
    %1271 = vmatprep.subr.mxu0 0.0
    %1272 = vmatpush2.msra.mxu0 0.0
    %1273 = vmatprep.subr.mxu0 0.0
    %1274 = vmatpush2.msra.mxu0 0.0
    %1275 = vmatprep.subr.mxu0 0.0
    %1276 = vmatpush2.msra.mxu0 0.0
    %1277 = vmatprep.subr.mxu0 0.0
    %1278 = vmatpush2.msra.mxu0 0.0
    %1279 = vmatprep.subr.mxu0 0.0
    %1280 = vmatpush2.msra.mxu0 0.0
    %1281 = vmatprep.subr.mxu0 0.0
    %1282 = vmatpush2.msra.mxu0 0.0
    %1283 = vmatprep.subr.mxu0 0.0
    %1284 = vmatpush2.msra.mxu0 0.0
    %1285 = vmatprep.subr.mxu0 0.0
    %1286 = vmatpush2.msra.mxu0 0.0
    %1287 = vmatprep.subr.mxu0 0.0
    %1288 = vmatpush2.msra.mxu0 0.0
    %1289 = vmatprep.subr.mxu0 0.0
    %1290 = vmatpush2.msra.mxu0 0.0
    %1291 = vmatprep.subr.mxu0 0.0
    %1292 = vmatpush2.msra.mxu0 0.0
    %1293 = vmatprep.subr.mxu0 0.0
    %1294 = vmatpush2.msra.mxu0 0.0
    %1295 = vmatprep.subr.mxu0 0.0
    %1296 = vmatpush2.msra.mxu0 0.0
    %1297 = vmatprep.mubr.f32.mxu0 0.0
    %1298 = vmatmul.mubr.f32.gmra.mxu0 %v1231
    %v1299 = vpop.f32.mrf.mxu0
    %v1300 = vadd.f32 0.0, %v1299
    %v1301 = vpop.f32.mrf.mxu0
    %1302 = vdwg.mxu0
    %v1304 = vsel %vm1083, %v432, 0
    %1306 = vmatprep.subr.mxu0 0.0
    %1307 = vmatpush1.msra.mxu0 0.0
    %1308 = vmatprep.subr.mxu0 0.0
    %1309 = vmatpush1.msra.mxu0 0.0
    %1310 = vmatprep.subr.mxu0 0.0
    %1311 = vmatpush1.msra.mxu0 0.0
    %1312 = vmatprep.subr.mxu0 0.0
    %1313 = vmatpush1.msra.mxu0 0.0
    %1314 = vmatprep.subr.mxu0 0.0
    %1315 = vmatpush1.msra.mxu0 0.0
    %1316 = vmatprep.subr.mxu0 0.0
    %1317 = vmatpush1.msra.mxu0 0.0
    %1318 = vmatprep.subr.mxu0 0.0
    %1319 = vmatpush1.msra.mxu0 0.0
    %1320 = vmatprep.subr.mxu0 0.0
    %1321 = vmatpush1.msra.mxu0 0.0
    %1322 = vmatprep.subr.mxu0 0.0
    %1323 = vmatpush1.msra.mxu0 0.0
    %1324 = vmatprep.subr.mxu0 0.0
    %1325 = vmatpush1.msra.mxu0 0.0
    %1326 = vmatprep.subr.mxu0 0.0
    %1327 = vmatpush1.msra.mxu0 0.0
    %1328 = vmatprep.subr.mxu0 0.0
    %1329 = vmatpush1.msra.mxu0 0.0
    %1330 = vmatprep.subr.mxu0 0.0
    %1331 = vmatpush1.msra.mxu0 0.0
    %1332 = vmatprep.subr.mxu0 0.0
    %1333 = vmatpush1.msra.mxu0 0.0
    %1334 = vmatprep.subr.mxu0 0.0
    %1335 = vmatpush1.msra.mxu0 0.0
    %1336 = vmatprep.subr.mxu0 0.0
    %1337 = vmatpush1.msra.mxu0 %v75
    %1338 = vmatprep.subr.mxu0 0.0
    %1339 = vmatpush2.msra.mxu0 0.0
    %1340 = vmatprep.subr.mxu0 0.0
    %1341 = vmatpush2.msra.mxu0 0.0
    %1342 = vmatprep.subr.mxu0 0.0
    %1343 = vmatpush2.msra.mxu0 0.0
    %1344 = vmatprep.subr.mxu0 0.0
    %1345 = vmatpush2.msra.mxu0 0.0
    %1346 = vmatprep.subr.mxu0 0.0
    %1347 = vmatpush2.msra.mxu0 0.0
    %1348 = vmatprep.subr.mxu0 0.0
    %1349 = vmatpush2.msra.mxu0 0.0
    %1350 = vmatprep.subr.mxu0 0.0
    %1351 = vmatpush2.msra.mxu0 0.0
    %1352 = vmatprep.subr.mxu0 0.0
    %1353 = vmatpush2.msra.mxu0 0.0
    %1354 = vmatprep.subr.mxu0 0.0
    %1355 = vmatpush2.msra.mxu0 0.0
    %1356 = vmatprep.subr.mxu0 0.0
    %1357 = vmatpush2.msra.mxu0 0.0
    %1358 = vmatprep.subr.mxu0 0.0
    %1359 = vmatpush2.msra.mxu0 0.0
    %1360 = vmatprep.subr.mxu0 0.0
    %1361 = vmatpush2.msra.mxu0 0.0
    %1362 = vmatprep.subr.mxu0 0.0
    %1363 = vmatpush2.msra.mxu0 0.0
    %1364 = vmatprep.subr.mxu0 0.0
    %1365 = vmatpush2.msra.mxu0 0.0
    %1366 = vmatprep.subr.mxu0 0.0
    %1367 = vmatpush2.msra.mxu0 0.0
    %1368 = vmatprep.subr.mxu0 0.0
    %1369 = vmatpush2.msra.mxu0 0.0
    %1370 = vmatprep.mubr.f32.mxu0 0.0
    %1371 = vmatmul.mubr.f32.gmra.mxu0 %v1304
    %v1372 = vpop.f32.mrf.mxu0
    %v1373 = vadd.f32 0.0, %v1372
    %v1374 = vpop.f32.mrf.mxu0
    %1375 = vdwg.mxu0
    %v1376 = vmul.f32 %v222, %v70
    %v1377 = vmul.f32 %v292, %v70
    %v1378 = vmul.f32 %v362, %v70
    %v1379 = vmul.f32 %v432, %v70
    %v1380 = vmul.f32 %v1154, %v71
    %v1381 = vmul.f32 %v1227, %v71
    %v1382 = vmul.f32 %v1300, %v71
    %v1383 = vmul.f32 %v1373, %v71
    %v1384 = vadd.f32 %v1376, %v1380
    %v1385 = vadd.f32 %v1377, %v1381
    %v1386 = vadd.f32 %v1378, %v1382
    %v1387 = vadd.f32 %v1379, %v1383
    %v1389 = vsel %vm1083, %v546, 0
    %1391 = vmatprep.subr.mxu0 0.0
    %1392 = vmatpush1.msra.mxu0 0.0
    %1393 = vmatprep.subr.mxu0 0.0
    %1394 = vmatpush1.msra.mxu0 0.0
    %1395 = vmatprep.subr.mxu0 0.0
    %1396 = vmatpush1.msra.mxu0 0.0
    %1397 = vmatprep.subr.mxu0 0.0
    %1398 = vmatpush1.msra.mxu0 0.0
    %1399 = vmatprep.subr.mxu0 0.0
    %1400 = vmatpush1.msra.mxu0 0.0
    %1401 = vmatprep.subr.mxu0 0.0
    %1402 = vmatpush1.msra.mxu0 0.0
    %1403 = vmatprep.subr.mxu0 0.0
    %1404 = vmatpush1.msra.mxu0 0.0
    %1405 = vmatprep.subr.mxu0 0.0
    %1406 = vmatpush1.msra.mxu0 0.0
    %1407 = vmatprep.subr.mxu0 0.0
    %1408 = vmatpush1.msra.mxu0 0.0
    %1409 = vmatprep.subr.mxu0 0.0
    %1410 = vmatpush1.msra.mxu0 0.0
    %1411 = vmatprep.subr.mxu0 0.0
    %1412 = vmatpush1.msra.mxu0 0.0
    %1413 = vmatprep.subr.mxu0 0.0
    %1414 = vmatpush1.msra.mxu0 0.0
    %1415 = vmatprep.subr.mxu0 0.0
    %1416 = vmatpush1.msra.mxu0 0.0
    %1417 = vmatprep.subr.mxu0 0.0
    %1418 = vmatpush1.msra.mxu0 0.0
    %1419 = vmatprep.subr.mxu0 0.0
    %1420 = vmatpush1.msra.mxu0 0.0
    %1421 = vmatprep.subr.mxu0 0.0
    %1422 = vmatpush1.msra.mxu0 %v72
    %1423 = vmatprep.subr.mxu0 0.0
    %1424 = vmatpush2.msra.mxu0 0.0
    %1425 = vmatprep.subr.mxu0 0.0
    %1426 = vmatpush2.msra.mxu0 0.0
    %1427 = vmatprep.subr.mxu0 0.0
    %1428 = vmatpush2.msra.mxu0 0.0
    %1429 = vmatprep.subr.mxu0 0.0
    %1430 = vmatpush2.msra.mxu0 0.0
    %1431 = vmatprep.subr.mxu0 0.0
    %1432 = vmatpush2.msra.mxu0 0.0
    %1433 = vmatprep.subr.mxu0 0.0
    %1434 = vmatpush2.msra.mxu0 0.0
    %1435 = vmatprep.subr.mxu0 0.0
    %1436 = vmatpush2.msra.mxu0 0.0
    %1437 = vmatprep.subr.mxu0 0.0
    %1438 = vmatpush2.msra.mxu0 0.0
    %1439 = vmatprep.subr.mxu0 0.0
    %1440 = vmatpush2.msra.mxu0 0.0
    %1441 = vmatprep.subr.mxu0 0.0
    %1442 = vmatpush2.msra.mxu0 0.0
    %1443 = vmatprep.subr.mxu0 0.0
    %1444 = vmatpush2.msra.mxu0 0.0
    %1445 = vmatprep.subr.mxu0 0.0
    %1446 = vmatpush2.msra.mxu0 0.0
    %1447 = vmatprep.subr.mxu0 0.0
    %1448 = vmatpush2.msra.mxu0 0.0
    %1449 = vmatprep.subr.mxu0 0.0
    %1450 = vmatpush2.msra.mxu0 0.0
    %1451 = vmatprep.subr.mxu0 0.0
    %1452 = vmatpush2.msra.mxu0 0.0
    %1453 = vmatprep.subr.mxu0 0.0
    %1454 = vmatpush2.msra.mxu0 0.0
    %1455 = vmatprep.mubr.f32.mxu0 0.0
    %1456 = vmatmul.mubr.f32.gmra.mxu0 %v1389
    %v1457 = vpop.f32.mrf.mxu0
    %v1458 = vadd.f32 0.0, %v1457
    %v1459 = vpop.f32.mrf.mxu0
    %1460 = vdwg.mxu0
    %v1462 = vsel %vm1083, %v616, 0
    %1464 = vmatprep.subr.mxu0 0.0
    %1465 = vmatpush1.msra.mxu0 0.0
    %1466 = vmatprep.subr.mxu0 0.0
    %1467 = vmatpush1.msra.mxu0 0.0
    %1468 = vmatprep.subr.mxu0 0.0
    %1469 = vmatpush1.msra.mxu0 0.0
    %1470 = vmatprep.subr.mxu0 0.0
    %1471 = vmatpush1.msra.mxu0 0.0
    %1472 = vmatprep.subr.mxu0 0.0
    %1473 = vmatpush1.msra.mxu0 0.0
    %1474 = vmatprep.subr.mxu0 0.0
    %1475 = vmatpush1.msra.mxu0 0.0
    %1476 = vmatprep.subr.mxu0 0.0
    %1477 = vmatpush1.msra.mxu0 0.0
    %1478 = vmatprep.subr.mxu0 0.0
    %1479 = vmatpush1.msra.mxu0 0.0
    %1480 = vmatprep.subr.mxu0 0.0
    %1481 = vmatpush1.msra.mxu0 0.0
    %1482 = vmatprep.subr.mxu0 0.0
    %1483 = vmatpush1.msra.mxu0 0.0
    %1484 = vmatprep.subr.mxu0 0.0
    %1485 = vmatpush1.msra.mxu0 0.0
    %1486 = vmatprep.subr.mxu0 0.0
    %1487 = vmatpush1.msra.mxu0 0.0
    %1488 = vmatprep.subr.mxu0 0.0
    %1489 = vmatpush1.msra.mxu0 0.0
    %1490 = vmatprep.subr.mxu0 0.0
    %1491 = vmatpush1.msra.mxu0 0.0
    %1492 = vmatprep.subr.mxu0 0.0
    %1493 = vmatpush1.msra.mxu0 0.0
    %1494 = vmatprep.subr.mxu0 0.0
    %1495 = vmatpush1.msra.mxu0 %v73
    %1496 = vmatprep.subr.mxu0 0.0
    %1497 = vmatpush2.msra.mxu0 0.0
    %1498 = vmatprep.subr.mxu0 0.0
    %1499 = vmatpush2.msra.mxu0 0.0
    %1500 = vmatprep.subr.mxu0 0.0
    %1501 = vmatpush2.msra.mxu0 0.0
    %1502 = vmatprep.subr.mxu0 0.0
    %1503 = vmatpush2.msra.mxu0 0.0
    %1504 = vmatprep.subr.mxu0 0.0
    %1505 = vmatpush2.msra.mxu0 0.0
    %1506 = vmatprep.subr.mxu0 0.0
    %1507 = vmatpush2.msra.mxu0 0.0
    %1508 = vmatprep.subr.mxu0 0.0
    %1509 = vmatpush2.msra.mxu0 0.0
    %1510 = vmatprep.subr.mxu0 0.0
    %1511 = vmatpush2.msra.mxu0 0.0
    %1512 = vmatprep.subr.mxu0 0.0
    %1513 = vmatpush2.msra.mxu0 0.0
    %1514 = vmatprep.subr.mxu0 0.0
    %1515 = vmatpush2.msra.mxu0 0.0
    %1516 = vmatprep.subr.mxu0 0.0
    %1517 = vmatpush2.msra.mxu0 0.0
    %1518 = vmatprep.subr.mxu0 0.0
    %1519 = vmatpush2.msra.mxu0 0.0
    %1520 = vmatprep.subr.mxu0 0.0
    %1521 = vmatpush2.msra.mxu0 0.0
    %1522 = vmatprep.subr.mxu0 0.0
    %1523 = vmatpush2.msra.mxu0 0.0
    %1524 = vmatprep.subr.mxu0 0.0
    %1525 = vmatpush2.msra.mxu0 0.0
    %1526 = vmatprep.subr.mxu0 0.0
    %1527 = vmatpush2.msra.mxu0 0.0
    %1528 = vmatprep.mubr.f32.mxu0 0.0
    %1529 = vmatmul.mubr.f32.gmra.mxu0 %v1462
    %v1530 = vpop.f32.mrf.mxu0
    %v1531 = vadd.f32 0.0, %v1530
    %v1532 = vpop.f32.mrf.mxu0
    %1533 = vdwg.mxu0
    %v1535 = vsel %vm1083, %v686, 0
    %1537 = vmatprep.subr.mxu0 0.0
    %1538 = vmatpush1.msra.mxu0 0.0
    %1539 = vmatprep.subr.mxu0 0.0
    %1540 = vmatpush1.msra.mxu0 0.0
    %1541 = vmatprep.subr.mxu0 0.0
    %1542 = vmatpush1.msra.mxu0 0.0
    %1543 = vmatprep.subr.mxu0 0.0
    %1544 = vmatpush1.msra.mxu0 0.0
    %1545 = vmatprep.subr.mxu0 0.0
    %1546 = vmatpush1.msra.mxu0 0.0
    %1547 = vmatprep.subr.mxu0 0.0
    %1548 = vmatpush1.msra.mxu0 0.0
    %1549 = vmatprep.subr.mxu0 0.0
    %1550 = vmatpush1.msra.mxu0 0.0
    %1551 = vmatprep.subr.mxu0 0.0
    %1552 = vmatpush1.msra.mxu0 0.0
    %1553 = vmatprep.subr.mxu0 0.0
    %1554 = vmatpush1.msra.mxu0 0.0
    %1555 = vmatprep.subr.mxu0 0.0
    %1556 = vmatpush1.msra.mxu0 0.0
    %1557 = vmatprep.subr.mxu0 0.0
    %1558 = vmatpush1.msra.mxu0 0.0
    %1559 = vmatprep.subr.mxu0 0.0
    %1560 = vmatpush1.msra.mxu0 0.0
    %1561 = vmatprep.subr.mxu0 0.0
    %1562 = vmatpush1.msra.mxu0 0.0
    %1563 = vmatprep.subr.mxu0 0.0
    %1564 = vmatpush1.msra.mxu0 0.0
    %1565 = vmatprep.subr.mxu0 0.0
    %1566 = vmatpush1.msra.mxu0 0.0
    %1567 = vmatprep.subr.mxu0 0.0
    %1568 = vmatpush1.msra.mxu0 %v74
    %1569 = vmatprep.subr.mxu0 0.0
    %1570 = vmatpush2.msra.mxu0 0.0
    %1571 = vmatprep.subr.mxu0 0.0
    %1572 = vmatpush2.msra.mxu0 0.0
    %1573 = vmatprep.subr.mxu0 0.0
    %1574 = vmatpush2.msra.mxu0 0.0
    %1575 = vmatprep.subr.mxu0 0.0
    %1576 = vmatpush2.msra.mxu0 0.0
    %1577 = vmatprep.subr.mxu0 0.0
    %1578 = vmatpush2.msra.mxu0 0.0
    %1579 = vmatprep.subr.mxu0 0.0
    %1580 = vmatpush2.msra.mxu0 0.0
    %1581 = vmatprep.subr.mxu0 0.0
    %1582 = vmatpush2.msra.mxu0 0.0
    %1583 = vmatprep.subr.mxu0 0.0
    %1584 = vmatpush2.msra.mxu0 0.0
    %1585 = vmatprep.subr.mxu0 0.0
    %1586 = vmatpush2.msra.mxu0 0.0
    %1587 = vmatprep.subr.mxu0 0.0
    %1588 = vmatpush2.msra.mxu0 0.0
    %1589 = vmatprep.subr.mxu0 0.0
    %1590 = vmatpush2.msra.mxu0 0.0
    %1591 = vmatprep.subr.mxu0 0.0
    %1592 = vmatpush2.msra.mxu0 0.0
    %1593 = vmatprep.subr.mxu0 0.0
    %1594 = vmatpush2.msra.mxu0 0.0
    %1595 = vmatprep.subr.mxu0 0.0
    %1596 = vmatpush2.msra.mxu0 0.0
    %1597 = vmatprep.subr.mxu0 0.0
    %1598 = vmatpush2.msra.mxu0 0.0
    %1599 = vmatprep.subr.mxu0 0.0
    %1600 = vmatpush2.msra.mxu0 0.0
    %1601 = vmatprep.mubr.f32.mxu0 0.0
    %1602 = vmatmul.mubr.f32.gmra.mxu0 %v1535
    %v1603 = vpop.f32.mrf.mxu0
    %v1604 = vadd.f32 0.0, %v1603
    %v1605 = vpop.f32.mrf.mxu0
    %1606 = vdwg.mxu0
    %v1608 = vsel %vm1083, %v756, 0
    %1610 = vmatprep.subr.mxu0 0.0
    %1611 = vmatpush1.msra.mxu0 0.0
    %1612 = vmatprep.subr.mxu0 0.0
    %1613 = vmatpush1.msra.mxu0 0.0
    %1614 = vmatprep.subr.mxu0 0.0
    %1615 = vmatpush1.msra.mxu0 0.0
    %1616 = vmatprep.subr.mxu0 0.0
    %1617 = vmatpush1.msra.mxu0 0.0
    %1618 = vmatprep.subr.mxu0 0.0
    %1619 = vmatpush1.msra.mxu0 0.0
    %1620 = vmatprep.subr.mxu0 0.0
    %1621 = vmatpush1.msra.mxu0 0.0
    %1622 = vmatprep.subr.mxu0 0.0
    %1623 = vmatpush1.msra.mxu0 0.0
    %1624 = vmatprep.subr.mxu0 0.0
    %1625 = vmatpush1.msra.mxu0 0.0
    %1626 = vmatprep.subr.mxu0 0.0
    %1627 = vmatpush1.msra.mxu0 0.0
    %1628 = vmatprep.subr.mxu0 0.0
    %1629 = vmatpush1.msra.mxu0 0.0
    %1630 = vmatprep.subr.mxu0 0.0
    %1631 = vmatpush1.msra.mxu0 0.0
    %1632 = vmatprep.subr.mxu0 0.0
    %1633 = vmatpush1.msra.mxu0 0.0
    %1634 = vmatprep.subr.mxu0 0.0
    %1635 = vmatpush1.msra.mxu0 0.0
    %1636 = vmatprep.subr.mxu0 0.0
    %1637 = vmatpush1.msra.mxu0 0.0
    %1638 = vmatprep.subr.mxu0 0.0
    %1639 = vmatpush1.msra.mxu0 0.0
    %1640 = vmatprep.subr.mxu0 0.0
    %1641 = vmatpush1.msra.mxu0 %v75
    %1642 = vmatprep.subr.mxu0 0.0
    %1643 = vmatpush2.msra.mxu0 0.0
    %1644 = vmatprep.subr.mxu0 0.0
    %1645 = vmatpush2.msra.mxu0 0.0
    %1646 = vmatprep.subr.mxu0 0.0
    %1647 = vmatpush2.msra.mxu0 0.0
    %1648 = vmatprep.subr.mxu0 0.0
    %1649 = vmatpush2.msra.mxu0 0.0
    %1650 = vmatprep.subr.mxu0 0.0
    %1651 = vmatpush2.msra.mxu0 0.0
    %1652 = vmatprep.subr.mxu0 0.0
    %1653 = vmatpush2.msra.mxu0 0.0
    %1654 = vmatprep.subr.mxu0 0.0
    %1655 = vmatpush2.msra.mxu0 0.0
    %1656 = vmatprep.subr.mxu0 0.0
    %1657 = vmatpush2.msra.mxu0 0.0
    %1658 = vmatprep.subr.mxu0 0.0
    %1659 = vmatpush2.msra.mxu0 0.0
    %1660 = vmatprep.subr.mxu0 0.0
    %1661 = vmatpush2.msra.mxu0 0.0
    %1662 = vmatprep.subr.mxu0 0.0
    %1663 = vmatpush2.msra.mxu0 0.0
    %1664 = vmatprep.subr.mxu0 0.0
    %1665 = vmatpush2.msra.mxu0 0.0
    %1666 = vmatprep.subr.mxu0 0.0
    %1667 = vmatpush2.msra.mxu0 0.0
    %1668 = vmatprep.subr.mxu0 0.0
    %1669 = vmatpush2.msra.mxu0 0.0
    %1670 = vmatprep.subr.mxu0 0.0
    %1671 = vmatpush2.msra.mxu0 0.0
    %1672 = vmatprep.subr.mxu0 0.0
    %1673 = vmatpush2.msra.mxu0 0.0
    %1674 = vmatprep.mubr.f32.mxu0 0.0
    %1675 = vmatmul.mubr.f32.gmra.mxu0 %v1608
    %v1676 = vpop.f32.mrf.mxu0
    %v1677 = vadd.f32 0.0, %v1676
    %v1678 = vpop.f32.mrf.mxu0
    %1679 = vdwg.mxu0
    %v1680 = vmul.f32 %v546, %v70
    %v1681 = vmul.f32 %v616, %v70
    %v1682 = vmul.f32 %v686, %v70
    %v1683 = vmul.f32 %v756, %v70
    %v1684 = vmul.f32 %v1458, %v71
    %v1685 = vmul.f32 %v1531, %v71
    %v1686 = vmul.f32 %v1604, %v71
    %v1687 = vmul.f32 %v1677, %v71
    %v1688 = vadd.f32 %v1680, %v1684
    %v1689 = vadd.f32 %v1681, %v1685
    %v1690 = vadd.f32 %v1682, %v1686
    %v1691 = vadd.f32 %v1683, %v1687
    %v1693 = vsel %vm1083, %v1384, 0
    %v1696 = vsel %vm1083, %v1688, 0
    %1698 = vmatprep.subr.mxu0 0.0
    %1699 = vmatpush1.xpose.msra.mxu0 0.0
    %1700 = vmatprep.subr.mxu0 0.0
    %1701 = vmatpush1.xpose.msra.mxu0 0.0
    %1702 = vmatprep.subr.mxu0 0.0
    %1703 = vmatpush1.xpose.msra.mxu0 0.0
    %1704 = vmatprep.subr.mxu0 0.0
    %1705 = vmatpush1.xpose.msra.mxu0 0.0
    %1706 = vmatprep.subr.mxu0 0.0
    %1707 = vmatpush1.xpose.msra.mxu0 0.0
    %1708 = vmatprep.subr.mxu0 0.0
    %1709 = vmatpush1.xpose.msra.mxu0 0.0
    %1710 = vmatprep.subr.mxu0 0.0
    %1711 = vmatpush1.xpose.msra.mxu0 0.0
    %1712 = vmatprep.subr.mxu0 0.0
    %1713 = vmatpush1.xpose.msra.mxu0 0.0
    %1714 = vmatprep.subr.mxu0 0.0
    %1715 = vmatpush1.xpose.msra.mxu0 0.0
    %1716 = vmatprep.subr.mxu0 0.0
    %1717 = vmatpush1.xpose.msra.mxu0 0.0
    %1718 = vmatprep.subr.mxu0 0.0
    %1719 = vmatpush1.xpose.msra.mxu0 0.0
    %1720 = vmatprep.subr.mxu0 0.0
    %1721 = vmatpush1.xpose.msra.mxu0 0.0
    %1722 = vmatprep.subr.mxu0 0.0
    %1723 = vmatpush1.xpose.msra.mxu0 0.0
    %1724 = vmatprep.subr.mxu0 0.0
    %1725 = vmatpush1.xpose.msra.mxu0 0.0
    %1726 = vmatprep.subr.mxu0 0.0
    %1727 = vmatpush1.xpose.msra.mxu0 0.0
    %1728 = vmatprep.subr.mxu0 0.0
    %1729 = vmatpush1.xpose.msra.mxu0 %v1696
    %1730 = vmatprep.subr.mxu0 0.0
    %1731 = vmatpush2.xpose.msra.mxu0 0.0
    %1732 = vmatprep.subr.mxu0 0.0
    %1733 = vmatpush2.xpose.msra.mxu0 0.0
    %1734 = vmatprep.subr.mxu0 0.0
    %1735 = vmatpush2.xpose.msra.mxu0 0.0
    %1736 = vmatprep.subr.mxu0 0.0
    %1737 = vmatpush2.xpose.msra.mxu0 0.0
    %1738 = vmatprep.subr.mxu0 0.0
    %1739 = vmatpush2.xpose.msra.mxu0 0.0
    %1740 = vmatprep.subr.mxu0 0.0
    %1741 = vmatpush2.xpose.msra.mxu0 0.0
    %1742 = vmatprep.subr.mxu0 0.0
    %1743 = vmatpush2.xpose.msra.mxu0 0.0
    %1744 = vmatprep.subr.mxu0 0.0
    %1745 = vmatpush2.xpose.msra.mxu0 0.0
    %1746 = vmatprep.subr.mxu0 0.0
    %1747 = vmatpush2.xpose.msra.mxu0 0.0
    %1748 = vmatprep.subr.mxu0 0.0
    %1749 = vmatpush2.xpose.msra.mxu0 0.0
    %1750 = vmatprep.subr.mxu0 0.0
    %1751 = vmatpush2.xpose.msra.mxu0 0.0
    %1752 = vmatprep.subr.mxu0 0.0
    %1753 = vmatpush2.xpose.msra.mxu0 0.0
    %1754 = vmatprep.subr.mxu0 0.0
    %1755 = vmatpush2.xpose.msra.mxu0 0.0
    %1756 = vmatprep.subr.mxu0 0.0
    %1757 = vmatpush2.xpose.msra.mxu0 0.0
    %1758 = vmatprep.subr.mxu0 0.0
    %1759 = vmatpush2.xpose.msra.mxu0 0.0
    %1760 = vmatprep.subr.mxu0 0.0
    %1761 = vmatpush2.xpose.msra.mxu0 0.0
    %1762 = vmatprep.mubr.f32.mxu0 0.0
    %1763 = vmatmul.mubr.f32.gmra.mxu0 %v1693
    %v1764 = vpop.f32.mrf.mxu0
    %v1765 = vadd.f32 0.0, %v1764
    %v1766 = vpop.f32.mrf.mxu0
    %1767 = vdwg.mxu0
    %v1769 = vsel %vm1083, %v1385, 0
    %v1772 = vsel %vm1083, %v1689, 0
    %1774 = vmatprep.subr.mxu0 0.0
    %1775 = vmatpush1.xpose.msra.mxu0 0.0
    %1776 = vmatprep.subr.mxu0 0.0
    %1777 = vmatpush1.xpose.msra.mxu0 0.0
    %1778 = vmatprep.subr.mxu0 0.0
    %1779 = vmatpush1.xpose.msra.mxu0 0.0
    %1780 = vmatprep.subr.mxu0 0.0
    %1781 = vmatpush1.xpose.msra.mxu0 0.0
    %1782 = vmatprep.subr.mxu0 0.0
    %1783 = vmatpush1.xpose.msra.mxu0 0.0
    %1784 = vmatprep.subr.mxu0 0.0
    %1785 = vmatpush1.xpose.msra.mxu0 0.0
    %1786 = vmatprep.subr.mxu0 0.0
    %1787 = vmatpush1.xpose.msra.mxu0 0.0
    %1788 = vmatprep.subr.mxu0 0.0
    %1789 = vmatpush1.xpose.msra.mxu0 0.0
    %1790 = vmatprep.subr.mxu0 0.0
    %1791 = vmatpush1.xpose.msra.mxu0 0.0
    %1792 = vmatprep.subr.mxu0 0.0
    %1793 = vmatpush1.xpose.msra.mxu0 0.0
    %1794 = vmatprep.subr.mxu0 0.0
    %1795 = vmatpush1.xpose.msra.mxu0 0.0
    %1796 = vmatprep.subr.mxu0 0.0
    %1797 = vmatpush1.xpose.msra.mxu0 0.0
    %1798 = vmatprep.subr.mxu0 0.0
    %1799 = vmatpush1.xpose.msra.mxu0 0.0
    %1800 = vmatprep.subr.mxu0 0.0
    %1801 = vmatpush1.xpose.msra.mxu0 0.0
    %1802 = vmatprep.subr.mxu0 0.0
    %1803 = vmatpush1.xpose.msra.mxu0 0.0
    %1804 = vmatprep.subr.mxu0 0.0
    %1805 = vmatpush1.xpose.msra.mxu0 %v1772
    %1806 = vmatprep.subr.mxu0 0.0
    %1807 = vmatpush2.xpose.msra.mxu0 0.0
    %1808 = vmatprep.subr.mxu0 0.0
    %1809 = vmatpush2.xpose.msra.mxu0 0.0
    %1810 = vmatprep.subr.mxu0 0.0
    %1811 = vmatpush2.xpose.msra.mxu0 0.0
    %1812 = vmatprep.subr.mxu0 0.0
    %1813 = vmatpush2.xpose.msra.mxu0 0.0
    %1814 = vmatprep.subr.mxu0 0.0
    %1815 = vmatpush2.xpose.msra.mxu0 0.0
    %1816 = vmatprep.subr.mxu0 0.0
    %1817 = vmatpush2.xpose.msra.mxu0 0.0
    %1818 = vmatprep.subr.mxu0 0.0
    %1819 = vmatpush2.xpose.msra.mxu0 0.0
    %1820 = vmatprep.subr.mxu0 0.0
    %1821 = vmatpush2.xpose.msra.mxu0 0.0
    %1822 = vmatprep.subr.mxu0 0.0
    %1823 = vmatpush2.xpose.msra.mxu0 0.0
    %1824 = vmatprep.subr.mxu0 0.0
    %1825 = vmatpush2.xpose.msra.mxu0 0.0
    %1826 = vmatprep.subr.mxu0 0.0
    %1827 = vmatpush2.xpose.msra.mxu0 0.0
    %1828 = vmatprep.subr.mxu0 0.0
    %1829 = vmatpush2.xpose.msra.mxu0 0.0
    %1830 = vmatprep.subr.mxu0 0.0
    %1831 = vmatpush2.xpose.msra.mxu0 0.0
    %1832 = vmatprep.subr.mxu0 0.0
    %1833 = vmatpush2.xpose.msra.mxu0 0.0
    %1834 = vmatprep.subr.mxu0 0.0
    %1835 = vmatpush2.xpose.msra.mxu0 0.0
    %1836 = vmatprep.subr.mxu0 0.0
    %1837 = vmatpush2.xpose.msra.mxu0 0.0
    %1838 = vmatprep.mubr.f32.mxu0 0.0
    %1839 = vmatmul.mubr.f32.gmra.mxu0 %v1769
    %v1840 = vpop.f32.mrf.mxu0
    %v1841 = vadd.f32 0.0, %v1840
    %v1842 = vpop.f32.mrf.mxu0
    %1843 = vdwg.mxu0
    %v1845 = vsel %vm1083, %v1386, 0
    %v1848 = vsel %vm1083, %v1690, 0
    %1850 = vmatprep.subr.mxu0 0.0
    %1851 = vmatpush1.xpose.msra.mxu0 0.0
    %1852 = vmatprep.subr.mxu0 0.0
    %1853 = vmatpush1.xpose.msra.mxu0 0.0
    %1854 = vmatprep.subr.mxu0 0.0
    %1855 = vmatpush1.xpose.msra.mxu0 0.0
    %1856 = vmatprep.subr.mxu0 0.0
    %1857 = vmatpush1.xpose.msra.mxu0 0.0
    %1858 = vmatprep.subr.mxu0 0.0
    %1859 = vmatpush1.xpose.msra.mxu0 0.0
    %1860 = vmatprep.subr.mxu0 0.0
    %1861 = vmatpush1.xpose.msra.mxu0 0.0
    %1862 = vmatprep.subr.mxu0 0.0
    %1863 = vmatpush1.xpose.msra.mxu0 0.0
    %1864 = vmatprep.subr.mxu0 0.0
    %1865 = vmatpush1.xpose.msra.mxu0 0.0
    %1866 = vmatprep.subr.mxu0 0.0
    %1867 = vmatpush1.xpose.msra.mxu0 0.0
    %1868 = vmatprep.subr.mxu0 0.0
    %1869 = vmatpush1.xpose.msra.mxu0 0.0
    %1870 = vmatprep.subr.mxu0 0.0
    %1871 = vmatpush1.xpose.msra.mxu0 0.0
    %1872 = vmatprep.subr.mxu0 0.0
    %1873 = vmatpush1.xpose.msra.mxu0 0.0
    %1874 = vmatprep.subr.mxu0 0.0
    %1875 = vmatpush1.xpose.msra.mxu0 0.0
    %1876 = vmatprep.subr.mxu0 0.0
    %1877 = vmatpush1.xpose.msra.mxu0 0.0
    %1878 = vmatprep.subr.mxu0 0.0
    %1879 = vmatpush1.xpose.msra.mxu0 0.0
    %1880 = vmatprep.subr.mxu0 0.0
    %1881 = vmatpush1.xpose.msra.mxu0 %v1848
    %1882 = vmatprep.subr.mxu0 0.0
    %1883 = vmatpush2.xpose.msra.mxu0 0.0
    %1884 = vmatprep.subr.mxu0 0.0
    %1885 = vmatpush2.xpose.msra.mxu0 0.0
    %1886 = vmatprep.subr.mxu0 0.0
    %1887 = vmatpush2.xpose.msra.mxu0 0.0
    %1888 = vmatprep.subr.mxu0 0.0
    %1889 = vmatpush2.xpose.msra.mxu0 0.0
    %1890 = vmatprep.subr.mxu0 0.0
    %1891 = vmatpush2.xpose.msra.mxu0 0.0
    %1892 = vmatprep.subr.mxu0 0.0
    %1893 = vmatpush2.xpose.msra.mxu0 0.0
    %1894 = vmatprep.subr.mxu0 0.0
    %1895 = vmatpush2.xpose.msra.mxu0 0.0
    %1896 = vmatprep.subr.mxu0 0.0
    %1897 = vmatpush2.xpose.msra.mxu0 0.0
    %1898 = vmatprep.subr.mxu0 0.0
    %1899 = vmatpush2.xpose.msra.mxu0 0.0
    %1900 = vmatprep.subr.mxu0 0.0
    %1901 = vmatpush2.xpose.msra.mxu0 0.0
    %1902 = vmatprep.subr.mxu0 0.0
    %1903 = vmatpush2.xpose.msra.mxu0 0.0
    %1904 = vmatprep.subr.mxu0 0.0
    %1905 = vmatpush2.xpose.msra.mxu0 0.0
    %1906 = vmatprep.subr.mxu0 0.0
    %1907 = vmatpush2.xpose.msra.mxu0 0.0
    %1908 = vmatprep.subr.mxu0 0.0
    %1909 = vmatpush2.xpose.msra.mxu0 0.0
    %1910 = vmatprep.subr.mxu0 0.0
    %1911 = vmatpush2.xpose.msra.mxu0 0.0
    %1912 = vmatprep.subr.mxu0 0.0
    %1913 = vmatpush2.xpose.msra.mxu0 0.0
    %1914 = vmatprep.mubr.f32.mxu0 0.0
    %1915 = vmatmul.mubr.f32.gmra.mxu0 %v1845
    %v1916 = vpop.f32.mrf.mxu0
    %v1917 = vadd.f32 0.0, %v1916
    %v1918 = vpop.f32.mrf.mxu0
    %1919 = vdwg.mxu0
    %v1921 = vsel %vm1083, %v1387, 0
    %v1924 = vsel %vm1083, %v1691, 0
    %1926 = vmatprep.subr.mxu0 0.0
    %1927 = vmatpush1.xpose.msra.mxu0 0.0
    %1928 = vmatprep.subr.mxu0 0.0
    %1929 = vmatpush1.xpose.msra.mxu0 0.0
    %1930 = vmatprep.subr.mxu0 0.0
    %1931 = vmatpush1.xpose.msra.mxu0 0.0
    %1932 = vmatprep.subr.mxu0 0.0
    %1933 = vmatpush1.xpose.msra.mxu0 0.0
    %1934 = vmatprep.subr.mxu0 0.0
    %1935 = vmatpush1.xpose.msra.mxu0 0.0
    %1936 = vmatprep.subr.mxu0 0.0
    %1937 = vmatpush1.xpose.msra.mxu0 0.0
    %1938 = vmatprep.subr.mxu0 0.0
    %1939 = vmatpush1.xpose.msra.mxu0 0.0
    %1940 = vmatprep.subr.mxu0 0.0
    %1941 = vmatpush1.xpose.msra.mxu0 0.0
    %1942 = vmatprep.subr.mxu0 0.0
    %1943 = vmatpush1.xpose.msra.mxu0 0.0
    %1944 = vmatprep.subr.mxu0 0.0
    %1945 = vmatpush1.xpose.msra.mxu0 0.0
    %1946 = vmatprep.subr.mxu0 0.0
    %1947 = vmatpush1.xpose.msra.mxu0 0.0
    %1948 = vmatprep.subr.mxu0 0.0
    %1949 = vmatpush1.xpose.msra.mxu0 0.0
    %1950 = vmatprep.subr.mxu0 0.0
    %1951 = vmatpush1.xpose.msra.mxu0 0.0
    %1952 = vmatprep.subr.mxu0 0.0
    %1953 = vmatpush1.xpose.msra.mxu0 0.0
    %1954 = vmatprep.subr.mxu0 0.0
    %1955 = vmatpush1.xpose.msra.mxu0 0.0
    %1956 = vmatprep.subr.mxu0 0.0
    %1957 = vmatpush1.xpose.msra.mxu0 %v1924
    %1958 = vmatprep.subr.mxu0 0.0
    %1959 = vmatpush2.xpose.msra.mxu0 0.0
    %1960 = vmatprep.subr.mxu0 0.0
    %1961 = vmatpush2.xpose.msra.mxu0 0.0
    %1962 = vmatprep.subr.mxu0 0.0
    %1963 = vmatpush2.xpose.msra.mxu0 0.0
    %1964 = vmatprep.subr.mxu0 0.0
    %1965 = vmatpush2.xpose.msra.mxu0 0.0
    %1966 = vmatprep.subr.mxu0 0.0
    %1967 = vmatpush2.xpose.msra.mxu0 0.0
    %1968 = vmatprep.subr.mxu0 0.0
    %1969 = vmatpush2.xpose.msra.mxu0 0.0
    %1970 = vmatprep.subr.mxu0 0.0
    %1971 = vmatpush2.xpose.msra.mxu0 0.0
    %1972 = vmatprep.subr.mxu0 0.0
    %1973 = vmatpush2.xpose.msra.mxu0 0.0
    %1974 = vmatprep.subr.mxu0 0.0
    %1975 = vmatpush2.xpose.msra.mxu0 0.0
    %1976 = vmatprep.subr.mxu0 0.0
    %1977 = vmatpush2.xpose.msra.mxu0 0.0
    %1978 = vmatprep.subr.mxu0 0.0
    %1979 = vmatpush2.xpose.msra.mxu0 0.0
    %1980 = vmatprep.subr.mxu0 0.0
    %1981 = vmatpush2.xpose.msra.mxu0 0.0
    %1982 = vmatprep.subr.mxu0 0.0
    %1983 = vmatpush2.xpose.msra.mxu0 0.0
    %1984 = vmatprep.subr.mxu0 0.0
    %1985 = vmatpush2.xpose.msra.mxu0 0.0
    %1986 = vmatprep.subr.mxu0 0.0
    %1987 = vmatpush2.xpose.msra.mxu0 0.0
    %1988 = vmatprep.subr.mxu0 0.0
    %1989 = vmatpush2.xpose.msra.mxu0 0.0
    %1990 = vmatprep.mubr.f32.mxu0 0.0
    %1991 = vmatmul.mubr.f32.gmra.mxu0 %v1921
    %v1992 = vpop.f32.mrf.mxu0
    %v1993 = vadd.f32 0.0, %v1992
    %v1994 = vpop.f32.mrf.mxu0
    %1995 = vdwg.mxu0
    %v1996 = vmul.f32 %v1765, 0.35355338
    %v1997 = vmul.f32 %v1841, 0.35355338
    %v1998 = vmul.f32 %v1917, 0.35355338
    %v1999 = vmul.f32 %v1993, 0.35355338
    %v2000 = vadd.f32 %v1996, %v76
    %v2001 = vadd.f32 %v1997, %v76
    %v2002 = vadd.f32 %v1998, %v76
    %v2003 = vadd.f32 %v1999, %v76
    %v2004 = vsel %vm1083, %v2000, -inf
    %2005 = vmax.xlane.f32.xlu0 %v2004
    %v2006 = vpop.xlane.xlu0 %2005
    %v2007 = vsel %vm1083, %v2001, -inf
    %2008 = vmax.xlane.f32.xlu0 %v2007
    %v2009 = vpop.xlane.xlu0 %2008
    %v2010 = vsel %vm1083, %v2002, -inf
    %2011 = vmax.xlane.f32.xlu0 %v2010
    %v2012 = vpop.xlane.xlu0 %2011
    %v2013 = vsel %vm1083, %v2003, -inf
    %2014 = vmax.xlane.f32.xlu0 %v2013
    %v2015 = vpop.xlane.xlu0 %2014
    %v2016 = vsub.f32 %v2000, %v2006
    %v2017 = vsub.f32 %v2001, %v2009
    %v2018 = vsub.f32 %v2002, %v2012
    %v2019 = vsub.f32 %v2003, %v2015
    %v2020 = vmul.f32 %v2016, 1.442695
    %v2021 = vpow.pop %v2020
    %v2022 = vmul.f32 %v2017, 1.442695
    %v2023 = vpow.pop %v2022
    %v2024 = vmul.f32 %v2018, 1.442695
    %v2025 = vpow.pop %v2024
    %v2026 = vmul.f32 %v2019, 1.442695
    %v2027 = vpow.pop %v2026
    %v2028 = vsel %vm1083, %v2021, 0.0
    %2029 = vadd.xlane.f32.xlu0 %v2028
    %v2030 = vpop.xlane.xlu0 %2029
    %v2031 = vsel %vm1083, %v2023, 0.0
    %2032 = vadd.xlane.f32.xlu0 %v2031
    %v2033 = vpop.xlane.xlu0 %2032
    %v2034 = vsel %vm1083, %v2025, 0.0
    %2035 = vadd.xlane.f32.xlu0 %v2034
    %v2036 = vpop.xlane.xlu0 %2035
    %v2037 = vsel %vm1083, %v2027, 0.0
    %2038 = vadd.xlane.f32.xlu0 %v2037
    %v2039 = vpop.xlane.xlu0 %2038
    %v2040 = vrcp.pop %v2030
    %v2041 = vmul.f32 %v2021, %v2040
    %v2042 = vrcp.pop %v2033
    %v2043 = vmul.f32 %v2023, %v2042
    %v2044 = vrcp.pop %v2036
    %v2045 = vmul.f32 %v2025, %v2044
    %v2046 = vrcp.pop %v2039
    %v2047 = vmul.f32 %v2027, %v2046
    %v2049 = vsel %vm1083, %v2041, 0
    %2051 = vmatprep.subr.mxu0 0.0
    %2052 = vmatpush1.msra.mxu0 0.0
    %2053 = vmatprep.subr.mxu0 0.0
    %2054 = vmatpush1.msra.mxu0 0.0
    %2055 = vmatprep.subr.mxu0 0.0
    %2056 = vmatpush1.msra.mxu0 0.0
    %2057 = vmatprep.subr.mxu0 0.0
    %2058 = vmatpush1.msra.mxu0 0.0
    %2059 = vmatprep.subr.mxu0 0.0
    %2060 = vmatpush1.msra.mxu0 0.0
    %2061 = vmatprep.subr.mxu0 0.0
    %2062 = vmatpush1.msra.mxu0 0.0
    %2063 = vmatprep.subr.mxu0 0.0
    %2064 = vmatpush1.msra.mxu0 0.0
    %2065 = vmatprep.subr.mxu0 0.0
    %2066 = vmatpush1.msra.mxu0 0.0
    %2067 = vmatprep.subr.mxu0 0.0
    %2068 = vmatpush1.msra.mxu0 0.0
    %2069 = vmatprep.subr.mxu0 0.0
    %2070 = vmatpush1.msra.mxu0 0.0
    %2071 = vmatprep.subr.mxu0 0.0
    %2072 = vmatpush1.msra.mxu0 0.0
    %2073 = vmatprep.subr.mxu0 0.0
    %2074 = vmatpush1.msra.mxu0 0.0
    %2075 = vmatprep.subr.mxu0 0.0
    %2076 = vmatpush1.msra.mxu0 0.0
    %2077 = vmatprep.subr.mxu0 0.0
    %2078 = vmatpush1.msra.mxu0 0.0
    %2079 = vmatprep.subr.mxu0 0.0
    %2080 = vmatpush1.msra.mxu0 0.0
    %2081 = vmatprep.subr.mxu0 0.0
    %2082 = vmatpush1.msra.mxu0 %v870
    %2083 = vmatprep.subr.mxu0 0.0
    %2084 = vmatpush2.msra.mxu0 0.0
    %2085 = vmatprep.subr.mxu0 0.0
    %2086 = vmatpush2.msra.mxu0 0.0
    %2087 = vmatprep.subr.mxu0 0.0
    %2088 = vmatpush2.msra.mxu0 0.0
    %2089 = vmatprep.subr.mxu0 0.0
    %2090 = vmatpush2.msra.mxu0 0.0
    %2091 = vmatprep.subr.mxu0 0.0
    %2092 = vmatpush2.msra.mxu0 0.0
    %2093 = vmatprep.subr.mxu0 0.0
    %2094 = vmatpush2.msra.mxu0 0.0
    %2095 = vmatprep.subr.mxu0 0.0
    %2096 = vmatpush2.msra.mxu0 0.0
    %2097 = vmatprep.subr.mxu0 0.0
    %2098 = vmatpush2.msra.mxu0 0.0
    %2099 = vmatprep.subr.mxu0 0.0
    %2100 = vmatpush2.msra.mxu0 0.0
    %2101 = vmatprep.subr.mxu0 0.0
    %2102 = vmatpush2.msra.mxu0 0.0
    %2103 = vmatprep.subr.mxu0 0.0
    %2104 = vmatpush2.msra.mxu0 0.0
    %2105 = vmatprep.subr.mxu0 0.0
    %2106 = vmatpush2.msra.mxu0 0.0
    %2107 = vmatprep.subr.mxu0 0.0
    %2108 = vmatpush2.msra.mxu0 0.0
    %2109 = vmatprep.subr.mxu0 0.0
    %2110 = vmatpush2.msra.mxu0 0.0
    %2111 = vmatprep.subr.mxu0 0.0
    %2112 = vmatpush2.msra.mxu0 0.0
    %2113 = vmatprep.subr.mxu0 0.0
    %2114 = vmatpush2.msra.mxu0 0.0
    %2115 = vmatprep.mubr.f32.mxu0 0.0
    %2116 = vmatmul.mubr.f32.gmra.mxu0 %v2049
    %v2117 = vpop.f32.mrf.mxu0
    %v2118 = vadd.f32 0.0, %v2117
    %v2119 = vpop.f32.mrf.mxu0
    %2120 = vdwg.mxu0
    %v2122 = vsel %vm1083, %v2043, 0
    %2124 = vmatprep.subr.mxu0 0.0
    %2125 = vmatpush1.msra.mxu0 0.0
    %2126 = vmatprep.subr.mxu0 0.0
    %2127 = vmatpush1.msra.mxu0 0.0
    %2128 = vmatprep.subr.mxu0 0.0
    %2129 = vmatpush1.msra.mxu0 0.0
    %2130 = vmatprep.subr.mxu0 0.0
    %2131 = vmatpush1.msra.mxu0 0.0
    %2132 = vmatprep.subr.mxu0 0.0
    %2133 = vmatpush1.msra.mxu0 0.0
    %2134 = vmatprep.subr.mxu0 0.0
    %2135 = vmatpush1.msra.mxu0 0.0
    %2136 = vmatprep.subr.mxu0 0.0
    %2137 = vmatpush1.msra.mxu0 0.0
    %2138 = vmatprep.subr.mxu0 0.0
    %2139 = vmatpush1.msra.mxu0 0.0
    %2140 = vmatprep.subr.mxu0 0.0
    %2141 = vmatpush1.msra.mxu0 0.0
    %2142 = vmatprep.subr.mxu0 0.0
    %2143 = vmatpush1.msra.mxu0 0.0
    %2144 = vmatprep.subr.mxu0 0.0
    %2145 = vmatpush1.msra.mxu0 0.0
    %2146 = vmatprep.subr.mxu0 0.0
    %2147 = vmatpush1.msra.mxu0 0.0
    %2148 = vmatprep.subr.mxu0 0.0
    %2149 = vmatpush1.msra.mxu0 0.0
    %2150 = vmatprep.subr.mxu0 0.0
    %2151 = vmatpush1.msra.mxu0 0.0
    %2152 = vmatprep.subr.mxu0 0.0
    %2153 = vmatpush1.msra.mxu0 0.0
    %2154 = vmatprep.subr.mxu0 0.0
    %2155 = vmatpush1.msra.mxu0 %v940
    %2156 = vmatprep.subr.mxu0 0.0
    %2157 = vmatpush2.msra.mxu0 0.0
    %2158 = vmatprep.subr.mxu0 0.0
    %2159 = vmatpush2.msra.mxu0 0.0
    %2160 = vmatprep.subr.mxu0 0.0
    %2161 = vmatpush2.msra.mxu0 0.0
    %2162 = vmatprep.subr.mxu0 0.0
    %2163 = vmatpush2.msra.mxu0 0.0
    %2164 = vmatprep.subr.mxu0 0.0
    %2165 = vmatpush2.msra.mxu0 0.0
    %2166 = vmatprep.subr.mxu0 0.0
    %2167 = vmatpush2.msra.mxu0 0.0
    %2168 = vmatprep.subr.mxu0 0.0
    %2169 = vmatpush2.msra.mxu0 0.0
    %2170 = vmatprep.subr.mxu0 0.0
    %2171 = vmatpush2.msra.mxu0 0.0
    %2172 = vmatprep.subr.mxu0 0.0
    %2173 = vmatpush2.msra.mxu0 0.0
    %2174 = vmatprep.subr.mxu0 0.0
    %2175 = vmatpush2.msra.mxu0 0.0
    %2176 = vmatprep.subr.mxu0 0.0
    %2177 = vmatpush2.msra.mxu0 0.0
    %2178 = vmatprep.subr.mxu0 0.0
    %2179 = vmatpush2.msra.mxu0 0.0
    %2180 = vmatprep.subr.mxu0 0.0
    %2181 = vmatpush2.msra.mxu0 0.0
    %2182 = vmatprep.subr.mxu0 0.0
    %2183 = vmatpush2.msra.mxu0 0.0
    %2184 = vmatprep.subr.mxu0 0.0
    %2185 = vmatpush2.msra.mxu0 0.0
    %2186 = vmatprep.subr.mxu0 0.0
    %2187 = vmatpush2.msra.mxu0 0.0
    %2188 = vmatprep.mubr.f32.mxu0 0.0
    %2189 = vmatmul.mubr.f32.gmra.mxu0 %v2122
    %v2190 = vpop.f32.mrf.mxu0
    %v2191 = vadd.f32 0.0, %v2190
    %v2192 = vpop.f32.mrf.mxu0
    %2193 = vdwg.mxu0
    %v2195 = vsel %vm1083, %v2045, 0
    %2197 = vmatprep.subr.mxu0 0.0
    %2198 = vmatpush1.msra.mxu0 0.0
    %2199 = vmatprep.subr.mxu0 0.0
    %2200 = vmatpush1.msra.mxu0 0.0
    %2201 = vmatprep.subr.mxu0 0.0
    %2202 = vmatpush1.msra.mxu0 0.0
    %2203 = vmatprep.subr.mxu0 0.0
    %2204 = vmatpush1.msra.mxu0 0.0
    %2205 = vmatprep.subr.mxu0 0.0
    %2206 = vmatpush1.msra.mxu0 0.0
    %2207 = vmatprep.subr.mxu0 0.0
    %2208 = vmatpush1.msra.mxu0 0.0
    %2209 = vmatprep.subr.mxu0 0.0
    %2210 = vmatpush1.msra.mxu0 0.0
    %2211 = vmatprep.subr.mxu0 0.0
    %2212 = vmatpush1.msra.mxu0 0.0
    %2213 = vmatprep.subr.mxu0 0.0
    %2214 = vmatpush1.msra.mxu0 0.0
    %2215 = vmatprep.subr.mxu0 0.0
    %2216 = vmatpush1.msra.mxu0 0.0
    %2217 = vmatprep.subr.mxu0 0.0
    %2218 = vmatpush1.msra.mxu0 0.0
    %2219 = vmatprep.subr.mxu0 0.0
    %2220 = vmatpush1.msra.mxu0 0.0
    %2221 = vmatprep.subr.mxu0 0.0
    %2222 = vmatpush1.msra.mxu0 0.0
    %2223 = vmatprep.subr.mxu0 0.0
    %2224 = vmatpush1.msra.mxu0 0.0
    %2225 = vmatprep.subr.mxu0 0.0
    %2226 = vmatpush1.msra.mxu0 0.0
    %2227 = vmatprep.subr.mxu0 0.0
    %2228 = vmatpush1.msra.mxu0 %v1010
    %2229 = vmatprep.subr.mxu0 0.0
    %2230 = vmatpush2.msra.mxu0 0.0
    %2231 = vmatprep.subr.mxu0 0.0
    %2232 = vmatpush2.msra.mxu0 0.0
    %2233 = vmatprep.subr.mxu0 0.0
    %2234 = vmatpush2.msra.mxu0 0.0
    %2235 = vmatprep.subr.mxu0 0.0
    %2236 = vmatpush2.msra.mxu0 0.0
    %2237 = vmatprep.subr.mxu0 0.0
    %2238 = vmatpush2.msra.mxu0 0.0
    %2239 = vmatprep.subr.mxu0 0.0
    %2240 = vmatpush2.msra.mxu0 0.0
    %2241 = vmatprep.subr.mxu0 0.0
    %2242 = vmatpush2.msra.mxu0 0.0
    %2243 = vmatprep.subr.mxu0 0.0
    %2244 = vmatpush2.msra.mxu0 0.0
    %2245 = vmatprep.subr.mxu0 0.0
    %2246 = vmatpush2.msra.mxu0 0.0
    %2247 = vmatprep.subr.mxu0 0.0
    %2248 = vmatpush2.msra.mxu0 0.0
    %2249 = vmatprep.subr.mxu0 0.0
    %2250 = vmatpush2.msra.mxu0 0.0
    %2251 = vmatprep.subr.mxu0 0.0
    %2252 = vmatpush2.msra.mxu0 0.0
    %2253 = vmatprep.subr.mxu0 0.0
    %2254 = vmatpush2.msra.mxu0 0.0
    %2255 = vmatprep.subr.mxu0 0.0
    %2256 = vmatpush2.msra.mxu0 0.0
    %2257 = vmatprep.subr.mxu0 0.0
    %2258 = vmatpush2.msra.mxu0 0.0
    %2259 = vmatprep.subr.mxu0 0.0
    %2260 = vmatpush2.msra.mxu0 0.0
    %2261 = vmatprep.mubr.f32.mxu0 0.0
    %2262 = vmatmul.mubr.f32.gmra.mxu0 %v2195
    %v2263 = vpop.f32.mrf.mxu0
    %v2264 = vadd.f32 0.0, %v2263
    %v2265 = vpop.f32.mrf.mxu0
    %2266 = vdwg.mxu0
    %v2268 = vsel %vm1083, %v2047, 0
    %2270 = vmatprep.subr.mxu0 0.0
    %2271 = vmatpush1.msra.mxu0 0.0
    %2272 = vmatprep.subr.mxu0 0.0
    %2273 = vmatpush1.msra.mxu0 0.0
    %2274 = vmatprep.subr.mxu0 0.0
    %2275 = vmatpush1.msra.mxu0 0.0
    %2276 = vmatprep.subr.mxu0 0.0
    %2277 = vmatpush1.msra.mxu0 0.0
    %2278 = vmatprep.subr.mxu0 0.0
    %2279 = vmatpush1.msra.mxu0 0.0
    %2280 = vmatprep.subr.mxu0 0.0
    %2281 = vmatpush1.msra.mxu0 0.0
    %2282 = vmatprep.subr.mxu0 0.0
    %2283 = vmatpush1.msra.mxu0 0.0
    %2284 = vmatprep.subr.mxu0 0.0
    %2285 = vmatpush1.msra.mxu0 0.0
    %2286 = vmatprep.subr.mxu0 0.0
    %2287 = vmatpush1.msra.mxu0 0.0
    %2288 = vmatprep.subr.mxu0 0.0
    %2289 = vmatpush1.msra.mxu0 0.0
    %2290 = vmatprep.subr.mxu0 0.0
    %2291 = vmatpush1.msra.mxu0 0.0
    %2292 = vmatprep.subr.mxu0 0.0
    %2293 = vmatpush1.msra.mxu0 0.0
    %2294 = vmatprep.subr.mxu0 0.0
    %2295 = vmatpush1.msra.mxu0 0.0
    %2296 = vmatprep.subr.mxu0 0.0
    %2297 = vmatpush1.msra.mxu0 0.0
    %2298 = vmatprep.subr.mxu0 0.0
    %2299 = vmatpush1.msra.mxu0 0.0
    %2300 = vmatprep.subr.mxu0 0.0
    %2301 = vmatpush1.msra.mxu0 %v1080
    %2302 = vmatprep.subr.mxu0 0.0
    %2303 = vmatpush2.msra.mxu0 0.0
    %2304 = vmatprep.subr.mxu0 0.0
    %2305 = vmatpush2.msra.mxu0 0.0
    %2306 = vmatprep.subr.mxu0 0.0
    %2307 = vmatpush2.msra.mxu0 0.0
    %2308 = vmatprep.subr.mxu0 0.0
    %2309 = vmatpush2.msra.mxu0 0.0
    %2310 = vmatprep.subr.mxu0 0.0
    %2311 = vmatpush2.msra.mxu0 0.0
    %2312 = vmatprep.subr.mxu0 0.0
    %2313 = vmatpush2.msra.mxu0 0.0
    %2314 = vmatprep.subr.mxu0 0.0
    %2315 = vmatpush2.msra.mxu0 0.0
    %2316 = vmatprep.subr.mxu0 0.0
    %2317 = vmatpush2.msra.mxu0 0.0
    %2318 = vmatprep.subr.mxu0 0.0
    %2319 = vmatpush2.msra.mxu0 0.0
    %2320 = vmatprep.subr.mxu0 0.0
    %2321 = vmatpush2.msra.mxu0 0.0
    %2322 = vmatprep.subr.mxu0 0.0
    %2323 = vmatpush2.msra.mxu0 0.0
    %2324 = vmatprep.subr.mxu0 0.0
    %2325 = vmatpush2.msra.mxu0 0.0
    %2326 = vmatprep.subr.mxu0 0.0
    %2327 = vmatpush2.msra.mxu0 0.0
    %2328 = vmatprep.subr.mxu0 0.0
    %2329 = vmatpush2.msra.mxu0 0.0
    %2330 = vmatprep.subr.mxu0 0.0
    %2331 = vmatpush2.msra.mxu0 0.0
    %2332 = vmatprep.subr.mxu0 0.0
    %2333 = vmatpush2.msra.mxu0 0.0
    %2334 = vmatprep.mubr.f32.mxu0 0.0
    %2335 = vmatmul.mubr.f32.gmra.mxu0 %v2268
    %v2336 = vpop.f32.mrf.mxu0
    %v2337 = vadd.f32 0.0, %v2336
    %v2338 = vpop.f32.mrf.mxu0
    %2339 = vdwg.mxu0
    %v2340 = vld [vmem:[%s13] sm:$0xff]
    %v2341 = vld [vmem:[%s13 + $0x8] sm:$0xff]
    %v2342 = vld [vmem:[%s13 + $0x10] sm:$0xff]
    %v2343 = vld [vmem:[%s13 + $0x18] sm:$0xff]
    %v2345 = vsel %vm1083, %v2118, 0
    %2347 = vmatprep.subr.mxu0 0.0
    %2348 = vmatpush1.msra.mxu0 0.0
    %2349 = vmatprep.subr.mxu0 0.0
    %2350 = vmatpush1.msra.mxu0 0.0
    %2351 = vmatprep.subr.mxu0 0.0
    %2352 = vmatpush1.msra.mxu0 0.0
    %2353 = vmatprep.subr.mxu0 0.0
    %2354 = vmatpush1.msra.mxu0 0.0
    %2355 = vmatprep.subr.mxu0 0.0
    %2356 = vmatpush1.msra.mxu0 0.0
    %2357 = vmatprep.subr.mxu0 0.0
    %2358 = vmatpush1.msra.mxu0 0.0
    %2359 = vmatprep.subr.mxu0 0.0
    %2360 = vmatpush1.msra.mxu0 0.0
    %2361 = vmatprep.subr.mxu0 0.0
    %2362 = vmatpush1.msra.mxu0 0.0
    %2363 = vmatprep.subr.mxu0 0.0
    %2364 = vmatpush1.msra.mxu0 0.0
    %2365 = vmatprep.subr.mxu0 0.0
    %2366 = vmatpush1.msra.mxu0 0.0
    %2367 = vmatprep.subr.mxu0 0.0
    %2368 = vmatpush1.msra.mxu0 0.0
    %2369 = vmatprep.subr.mxu0 0.0
    %2370 = vmatpush1.msra.mxu0 0.0
    %2371 = vmatprep.subr.mxu0 0.0
    %2372 = vmatpush1.msra.mxu0 0.0
    %2373 = vmatprep.subr.mxu0 0.0
    %2374 = vmatpush1.msra.mxu0 0.0
    %2375 = vmatprep.subr.mxu0 0.0
    %2376 = vmatpush1.msra.mxu0 0.0
    %2377 = vmatprep.subr.mxu0 0.0
    %2378 = vmatpush1.msra.mxu0 %v2340
    %2379 = vmatprep.subr.mxu0 0.0
    %2380 = vmatpush2.msra.mxu0 0.0
    %2381 = vmatprep.subr.mxu0 0.0
    %2382 = vmatpush2.msra.mxu0 0.0
    %2383 = vmatprep.subr.mxu0 0.0
    %2384 = vmatpush2.msra.mxu0 0.0
    %2385 = vmatprep.subr.mxu0 0.0
    %2386 = vmatpush2.msra.mxu0 0.0
    %2387 = vmatprep.subr.mxu0 0.0
    %2388 = vmatpush2.msra.mxu0 0.0
    %2389 = vmatprep.subr.mxu0 0.0
    %2390 = vmatpush2.msra.mxu0 0.0
    %2391 = vmatprep.subr.mxu0 0.0
    %2392 = vmatpush2.msra.mxu0 0.0
    %2393 = vmatprep.subr.mxu0 0.0
    %2394 = vmatpush2.msra.mxu0 0.0
    %2395 = vmatprep.subr.mxu0 0.0
    %2396 = vmatpush2.msra.mxu0 0.0
    %2397 = vmatprep.subr.mxu0 0.0
    %2398 = vmatpush2.msra.mxu0 0.0
    %2399 = vmatprep.subr.mxu0 0.0
    %2400 = vmatpush2.msra.mxu0 0.0
    %2401 = vmatprep.subr.mxu0 0.0
    %2402 = vmatpush2.msra.mxu0 0.0
    %2403 = vmatprep.subr.mxu0 0.0
    %2404 = vmatpush2.msra.mxu0 0.0
    %2405 = vmatprep.subr.mxu0 0.0
    %2406 = vmatpush2.msra.mxu0 0.0
    %2407 = vmatprep.subr.mxu0 0.0
    %2408 = vmatpush2.msra.mxu0 0.0
    %2409 = vmatprep.subr.mxu0 0.0
    %2410 = vmatpush2.msra.mxu0 0.0
    %2411 = vmatprep.mubr.f32.mxu0 0.0
    %2412 = vmatmul.mubr.f32.gmra.mxu0 %v2345
    %v2413 = vpop.f32.mrf.mxu0
    %v2414 = vadd.f32 0.0, %v2413
    %v2415 = vpop.f32.mrf.mxu0
    %2416 = vdwg.mxu0
    %v2418 = vsel %vm1083, %v2191, 0
    %2420 = vmatprep.subr.mxu0 0.0
    %2421 = vmatpush1.msra.mxu0 0.0
    %2422 = vmatprep.subr.mxu0 0.0
    %2423 = vmatpush1.msra.mxu0 0.0
    %2424 = vmatprep.subr.mxu0 0.0
    %2425 = vmatpush1.msra.mxu0 0.0
    %2426 = vmatprep.subr.mxu0 0.0
    %2427 = vmatpush1.msra.mxu0 0.0
    %2428 = vmatprep.subr.mxu0 0.0
    %2429 = vmatpush1.msra.mxu0 0.0
    %2430 = vmatprep.subr.mxu0 0.0
    %2431 = vmatpush1.msra.mxu0 0.0
    %2432 = vmatprep.subr.mxu0 0.0
    %2433 = vmatpush1.msra.mxu0 0.0
    %2434 = vmatprep.subr.mxu0 0.0
    %2435 = vmatpush1.msra.mxu0 0.0
    %2436 = vmatprep.subr.mxu0 0.0
    %2437 = vmatpush1.msra.mxu0 0.0
    %2438 = vmatprep.subr.mxu0 0.0
    %2439 = vmatpush1.msra.mxu0 0.0
    %2440 = vmatprep.subr.mxu0 0.0
    %2441 = vmatpush1.msra.mxu0 0.0
    %2442 = vmatprep.subr.mxu0 0.0
    %2443 = vmatpush1.msra.mxu0 0.0
    %2444 = vmatprep.subr.mxu0 0.0
    %2445 = vmatpush1.msra.mxu0 0.0
    %2446 = vmatprep.subr.mxu0 0.0
    %2447 = vmatpush1.msra.mxu0 0.0
    %2448 = vmatprep.subr.mxu0 0.0
    %2449 = vmatpush1.msra.mxu0 0.0
    %2450 = vmatprep.subr.mxu0 0.0
    %2451 = vmatpush1.msra.mxu0 %v2341
    %2452 = vmatprep.subr.mxu0 0.0
    %2453 = vmatpush2.msra.mxu0 0.0
    %2454 = vmatprep.subr.mxu0 0.0
    %2455 = vmatpush2.msra.mxu0 0.0
    %2456 = vmatprep.subr.mxu0 0.0
    %2457 = vmatpush2.msra.mxu0 0.0
    %2458 = vmatprep.subr.mxu0 0.0
    %2459 = vmatpush2.msra.mxu0 0.0
    %2460 = vmatprep.subr.mxu0 0.0
    %2461 = vmatpush2.msra.mxu0 0.0
    %2462 = vmatprep.subr.mxu0 0.0
    %2463 = vmatpush2.msra.mxu0 0.0
    %2464 = vmatprep.subr.mxu0 0.0
    %2465 = vmatpush2.msra.mxu0 0.0
    %2466 = vmatprep.subr.mxu0 0.0
    %2467 = vmatpush2.msra.mxu0 0.0
    %2468 = vmatprep.subr.mxu0 0.0
    %2469 = vmatpush2.msra.mxu0 0.0
    %2470 = vmatprep.subr.mxu0 0.0
    %2471 = vmatpush2.msra.mxu0 0.0
    %2472 = vmatprep.subr.mxu0 0.0
    %2473 = vmatpush2.msra.mxu0 0.0
    %2474 = vmatprep.subr.mxu0 0.0
    %2475 = vmatpush2.msra.mxu0 0.0
    %2476 = vmatprep.subr.mxu0 0.0
    %2477 = vmatpush2.msra.mxu0 0.0
    %2478 = vmatprep.subr.mxu0 0.0
    %2479 = vmatpush2.msra.mxu0 0.0
    %2480 = vmatprep.subr.mxu0 0.0
    %2481 = vmatpush2.msra.mxu0 0.0
    %2482 = vmatprep.subr.mxu0 0.0
    %2483 = vmatpush2.msra.mxu0 0.0
    %2484 = vmatprep.mubr.f32.mxu0 0.0
    %2485 = vmatmul.mubr.f32.gmra.mxu0 %v2418
    %v2486 = vpop.f32.mrf.mxu0
    %v2487 = vadd.f32 0.0, %v2486
    %v2488 = vpop.f32.mrf.mxu0
    %2489 = vdwg.mxu0
    %v2491 = vsel %vm1083, %v2264, 0
    %2493 = vmatprep.subr.mxu0 0.0
    %2494 = vmatpush1.msra.mxu0 0.0
    %2495 = vmatprep.subr.mxu0 0.0
    %2496 = vmatpush1.msra.mxu0 0.0
    %2497 = vmatprep.subr.mxu0 0.0
    %2498 = vmatpush1.msra.mxu0 0.0
    %2499 = vmatprep.subr.mxu0 0.0
    %2500 = vmatpush1.msra.mxu0 0.0
    %2501 = vmatprep.subr.mxu0 0.0
    %2502 = vmatpush1.msra.mxu0 0.0
    %2503 = vmatprep.subr.mxu0 0.0
    %2504 = vmatpush1.msra.mxu0 0.0
    %2505 = vmatprep.subr.mxu0 0.0
    %2506 = vmatpush1.msra.mxu0 0.0
    %2507 = vmatprep.subr.mxu0 0.0
    %2508 = vmatpush1.msra.mxu0 0.0
    %2509 = vmatprep.subr.mxu0 0.0
    %2510 = vmatpush1.msra.mxu0 0.0
    %2511 = vmatprep.subr.mxu0 0.0
    %2512 = vmatpush1.msra.mxu0 0.0
    %2513 = vmatprep.subr.mxu0 0.0
    %2514 = vmatpush1.msra.mxu0 0.0
    %2515 = vmatprep.subr.mxu0 0.0
    %2516 = vmatpush1.msra.mxu0 0.0
    %2517 = vmatprep.subr.mxu0 0.0
    %2518 = vmatpush1.msra.mxu0 0.0
    %2519 = vmatprep.subr.mxu0 0.0
    %2520 = vmatpush1.msra.mxu0 0.0
    %2521 = vmatprep.subr.mxu0 0.0
    %2522 = vmatpush1.msra.mxu0 0.0
    %2523 = vmatprep.subr.mxu0 0.0
    %2524 = vmatpush1.msra.mxu0 %v2342
    %2525 = vmatprep.subr.mxu0 0.0
    %2526 = vmatpush2.msra.mxu0 0.0
    %2527 = vmatprep.subr.mxu0 0.0
    %2528 = vmatpush2.msra.mxu0 0.0
    %2529 = vmatprep.subr.mxu0 0.0
    %2530 = vmatpush2.msra.mxu0 0.0
    %2531 = vmatprep.subr.mxu0 0.0
    %2532 = vmatpush2.msra.mxu0 0.0
    %2533 = vmatprep.subr.mxu0 0.0
    %2534 = vmatpush2.msra.mxu0 0.0
    %2535 = vmatprep.subr.mxu0 0.0
    %2536 = vmatpush2.msra.mxu0 0.0
    %2537 = vmatprep.subr.mxu0 0.0
    %2538 = vmatpush2.msra.mxu0 0.0
    %2539 = vmatprep.subr.mxu0 0.0
    %2540 = vmatpush2.msra.mxu0 0.0
    %2541 = vmatprep.subr.mxu0 0.0
    %2542 = vmatpush2.msra.mxu0 0.0
    %2543 = vmatprep.subr.mxu0 0.0
    %2544 = vmatpush2.msra.mxu0 0.0
    %2545 = vmatprep.subr.mxu0 0.0
    %2546 = vmatpush2.msra.mxu0 0.0
    %2547 = vmatprep.subr.mxu0 0.0
    %2548 = vmatpush2.msra.mxu0 0.0
    %2549 = vmatprep.subr.mxu0 0.0
    %2550 = vmatpush2.msra.mxu0 0.0
    %2551 = vmatprep.subr.mxu0 0.0
    %2552 = vmatpush2.msra.mxu0 0.0
    %2553 = vmatprep.subr.mxu0 0.0
    %2554 = vmatpush2.msra.mxu0 0.0
    %2555 = vmatprep.subr.mxu0 0.0
    %2556 = vmatpush2.msra.mxu0 0.0
    %2557 = vmatprep.mubr.f32.mxu0 0.0
    %2558 = vmatmul.mubr.f32.gmra.mxu0 %v2491
    %v2559 = vpop.f32.mrf.mxu0
    %v2560 = vadd.f32 0.0, %v2559
    %v2561 = vpop.f32.mrf.mxu0
    %2562 = vdwg.mxu0
    %v2564 = vsel %vm1083, %v2337, 0
    %2566 = vmatprep.subr.mxu0 0.0
    %2567 = vmatpush1.msra.mxu0 0.0
    %2568 = vmatprep.subr.mxu0 0.0
    %2569 = vmatpush1.msra.mxu0 0.0
    %2570 = vmatprep.subr.mxu0 0.0
    %2571 = vmatpush1.msra.mxu0 0.0
    %2572 = vmatprep.subr.mxu0 0.0
    %2573 = vmatpush1.msra.mxu0 0.0
    %2574 = vmatprep.subr.mxu0 0.0
    %2575 = vmatpush1.msra.mxu0 0.0
    %2576 = vmatprep.subr.mxu0 0.0
    %2577 = vmatpush1.msra.mxu0 0.0
    %2578 = vmatprep.subr.mxu0 0.0
    %2579 = vmatpush1.msra.mxu0 0.0
    %2580 = vmatprep.subr.mxu0 0.0
    %2581 = vmatpush1.msra.mxu0 0.0
    %2582 = vmatprep.subr.mxu0 0.0
    %2583 = vmatpush1.msra.mxu0 0.0
    %2584 = vmatprep.subr.mxu0 0.0
    %2585 = vmatpush1.msra.mxu0 0.0
    %2586 = vmatprep.subr.mxu0 0.0
    %2587 = vmatpush1.msra.mxu0 0.0
    %2588 = vmatprep.subr.mxu0 0.0
    %2589 = vmatpush1.msra.mxu0 0.0
    %2590 = vmatprep.subr.mxu0 0.0
    %2591 = vmatpush1.msra.mxu0 0.0
    %2592 = vmatprep.subr.mxu0 0.0
    %2593 = vmatpush1.msra.mxu0 0.0
    %2594 = vmatprep.subr.mxu0 0.0
    %2595 = vmatpush1.msra.mxu0 0.0
    %2596 = vmatprep.subr.mxu0 0.0
    %2597 = vmatpush1.msra.mxu0 %v2343
    %2598 = vmatprep.subr.mxu0 0.0
    %2599 = vmatpush2.msra.mxu0 0.0
    %2600 = vmatprep.subr.mxu0 0.0
    %2601 = vmatpush2.msra.mxu0 0.0
    %2602 = vmatprep.subr.mxu0 0.0
    %2603 = vmatpush2.msra.mxu0 0.0
    %2604 = vmatprep.subr.mxu0 0.0
    %2605 = vmatpush2.msra.mxu0 0.0
    %2606 = vmatprep.subr.mxu0 0.0
    %2607 = vmatpush2.msra.mxu0 0.0
    %2608 = vmatprep.subr.mxu0 0.0
    %2609 = vmatpush2.msra.mxu0 0.0
    %2610 = vmatprep.subr.mxu0 0.0
    %2611 = vmatpush2.msra.mxu0 0.0
    %2612 = vmatprep.subr.mxu0 0.0
    %2613 = vmatpush2.msra.mxu0 0.0
    %2614 = vmatprep.subr.mxu0 0.0
    %2615 = vmatpush2.msra.mxu0 0.0
    %2616 = vmatprep.subr.mxu0 0.0
    %2617 = vmatpush2.msra.mxu0 0.0
    %2618 = vmatprep.subr.mxu0 0.0
    %2619 = vmatpush2.msra.mxu0 0.0
    %2620 = vmatprep.subr.mxu0 0.0
    %2621 = vmatpush2.msra.mxu0 0.0
    %2622 = vmatprep.subr.mxu0 0.0
    %2623 = vmatpush2.msra.mxu0 0.0
    %2624 = vmatprep.subr.mxu0 0.0
    %2625 = vmatpush2.msra.mxu0 0.0
    %2626 = vmatprep.subr.mxu0 0.0
    %2627 = vmatpush2.msra.mxu0 0.0
    %2628 = vmatprep.subr.mxu0 0.0
    %2629 = vmatpush2.msra.mxu0 0.0
    %2630 = vmatprep.mubr.f32.mxu0 0.0
    %2631 = vmatmul.mubr.f32.gmra.mxu0 %v2564
    %v2632 = vpop.f32.mrf.mxu0
    %v2633 = vadd.f32 0.0, %v2632
    %v2634 = vpop.f32.mrf.mxu0
    %2635 = vdwg.mxu0
    %v2636 = vsel %vm79, %v2414, 0.0
    %v2637 = vsel %vm79, %v2487, 0.0
    %v2638 = vadd.f32 %v2636, %v2637
    %v2639 = vsel %vm79, %v2560, 0.0
    %v2640 = vadd.f32 %v2638, %v2639
    %v2641 = vsel %vm79, %v2633, 0.0
    %v2642 = vadd.f32 %v2640, %v2641
    %v2643 = vld [vmem:[%s14] sm:$0x1]
    %v2645 = vlaneseq
    %v2646 = vshrl.u32 %v2645, 7
    %v2647 = vsub.s32 0, %v2646
    %v2648 = vrot.slane %v2643, %v2647
    %v2650 = vadd.f32 %v2642, %v2648
    %v2651 = vld [vmem:[%s15] sm:$0xff]
    %v2652 = vld [vmem:[%s15 + $0x8] sm:$0xff]
    %v2653 = vld [vmem:[%s15 + $0x10] sm:$0xff]
    %v2654 = vld [vmem:[%s15 + $0x18] sm:$0xff]
    %v2655 = vld [vmem:[%s16] sm:$0x1]
    %v2657 = vlaneseq
    %v2658 = vshrl.u32 %v2657, 7
    %v2659 = vsub.s32 0, %v2658
    %v2660 = vrot.slane %v2655, %v2659
    %2662 = vmatprep.subr.mxu0 0.0
    %2663 = vmatpush1.msra.mxu0 0.0
    %2664 = vmatprep.subr.mxu0 0.0
    %2665 = vmatpush1.msra.mxu0 0.0
    %2666 = vmatprep.subr.mxu0 0.0
    %2667 = vmatpush1.msra.mxu0 0.0
    %2668 = vmatprep.subr.mxu0 0.0
    %2669 = vmatpush1.msra.mxu0 0.0
    %2670 = vmatprep.subr.mxu0 0.0
    %2671 = vmatpush1.msra.mxu0 0.0
    %2672 = vmatprep.subr.mxu0 0.0
    %2673 = vmatpush1.msra.mxu0 0.0
    %2674 = vmatprep.subr.mxu0 0.0
    %2675 = vmatpush1.msra.mxu0 0.0
    %2676 = vmatprep.subr.mxu0 0.0
    %2677 = vmatpush1.msra.mxu0 0.0
    %2678 = vmatprep.subr.mxu0 0.0
    %2679 = vmatpush1.msra.mxu0 0.0
    %2680 = vmatprep.subr.mxu0 0.0
    %2681 = vmatpush1.msra.mxu0 0.0
    %2682 = vmatprep.subr.mxu0 0.0
    %2683 = vmatpush1.msra.mxu0 0.0
    %2684 = vmatprep.subr.mxu0 0.0
    %2685 = vmatpush1.msra.mxu0 0.0
    %2686 = vmatprep.subr.mxu0 0.0
    %2687 = vmatpush1.msra.mxu0 %v2654
    %2688 = vmatprep.subr.mxu0 0.0
    %2689 = vmatpush1.msra.mxu0 %v2653
    %2690 = vmatprep.subr.mxu0 0.0
    %2691 = vmatpush1.msra.mxu0 %v2652
    %2692 = vmatprep.subr.mxu0 0.0
    %2693 = vmatpush1.msra.mxu0 %v2651
    %2694 = vmatprep.subr.mxu0 0.0
    %2695 = vmatpush2.msra.mxu0 0.0
    %2696 = vmatprep.subr.mxu0 0.0
    %2697 = vmatpush2.msra.mxu0 0.0
    %2698 = vmatprep.subr.mxu0 0.0
    %2699 = vmatpush2.msra.mxu0 0.0
    %2700 = vmatprep.subr.mxu0 0.0
    %2701 = vmatpush2.msra.mxu0 0.0
    %2702 = vmatprep.subr.mxu0 0.0
    %2703 = vmatpush2.msra.mxu0 0.0
    %2704 = vmatprep.subr.mxu0 0.0
    %2705 = vmatpush2.msra.mxu0 0.0
    %2706 = vmatprep.subr.mxu0 0.0
    %2707 = vmatpush2.msra.mxu0 0.0
    %2708 = vmatprep.subr.mxu0 0.0
    %2709 = vmatpush2.msra.mxu0 0.0
    %2710 = vmatprep.subr.mxu0 0.0
    %2711 = vmatpush2.msra.mxu0 0.0
    %2712 = vmatprep.subr.mxu0 0.0
    %2713 = vmatpush2.msra.mxu0 0.0
    %2714 = vmatprep.subr.mxu0 0.0
    %2715 = vmatpush2.msra.mxu0 0.0
    %2716 = vmatprep.subr.mxu0 0.0
    %2717 = vmatpush2.msra.mxu0 0.0
    %2718 = vmatprep.subr.mxu0 0.0
    %2719 = vmatpush2.msra.mxu0 0.0
    %2720 = vmatprep.subr.mxu0 0.0
    %2721 = vmatpush2.msra.mxu0 0.0
    %2722 = vmatprep.subr.mxu0 0.0
    %2723 = vmatpush2.msra.mxu0 0.0
    %2724 = vmatprep.subr.mxu0 0.0
    %2725 = vmatpush2.msra.mxu0 0.0
    %2726 = vmatprep.mubr.f32.mxu0 0.0
    %2727 = vmatmul.mubr.f32.gmra.mxu0 %v153
    %v2728 = vpop.f32.mrf.mxu0
    %v2729 = vadd.f32 %v2660, %v2728
    %v2730 = vpop.f32.mrf.mxu0
    %2731 = vdwg.mxu0
    %v2732 = vmul.f32 %v2729, 0.5
    %v2733 = vmul.f32 %v2729, 0.044715
    %v2734 = vmul.f32 %v2733, %v2729
    %v2735 = vmul.f32 %v2734, %v2729
    %v2736 = vadd.f32 %v2729, %v2735
    %v2737 = vmul.f32 %v2736, 0.7978846
    %v2738 = vtanh.pop %v2737
    %v2739 = vadd.f32 %v2738, 1.0
    %v2740 = vmul.f32 %v2732, %v2739
    %v2741 = vld [vmem:[%s17] sm:$0xff]
    %v2742 = vld [vmem:[%s17 + $0x8] sm:$0xff]
    %v2743 = vld [vmem:[%s17 + $0x10] sm:$0xff]
    %v2744 = vld [vmem:[%s17 + $0x18] sm:$0xff]
    %v2745 = vld [vmem:[%s17 + $0x20] sm:$0xff]
    %v2746 = vld [vmem:[%s17 + $0x28] sm:$0xff]
    %v2747 = vld [vmem:[%s17 + $0x30] sm:$0xff]
    %v2748 = vld [vmem:[%s17 + $0x38] sm:$0xff]
    %v2749 = vld [vmem:[%s17 + $0x40] sm:$0xff]
    %v2750 = vld [vmem:[%s17 + $0x48] sm:$0xff]
    %v2751 = vld [vmem:[%s17 + $0x50] sm:$0xff]
    %v2752 = vld [vmem:[%s17 + $0x58] sm:$0xff]
    %v2753 = vld [vmem:[%s17 + $0x60] sm:$0xff]
    %v2754 = vld [vmem:[%s17 + $0x68] sm:$0xff]
    %v2755 = vld [vmem:[%s17 + $0x70] sm:$0xff]
    %v2756 = vld [vmem:[%s17 + $0x78] sm:$0xff]
    %v2757 = vld [vmem:[%s18] sm:$0x1]
    %v2759 = vlaneseq
    %v2760 = vshrl.u32 %v2759, 7
    %v2761 = vsub.s32 0, %v2760
    %v2762 = vrot.slane %v2757, %v2761
    %2764 = vmatprep.subr.mxu0 0.0
    %2765 = vmatpush1.msra.mxu0 %v2756
    %2766 = vmatprep.subr.mxu0 0.0
    %2767 = vmatpush1.msra.mxu0 %v2755
    %2768 = vmatprep.subr.mxu0 0.0
    %2769 = vmatpush1.msra.mxu0 %v2754
    %2770 = vmatprep.subr.mxu0 0.0
    %2771 = vmatpush1.msra.mxu0 %v2753
    %2772 = vmatprep.subr.mxu0 0.0
    %2773 = vmatpush1.msra.mxu0 %v2752
    %2774 = vmatprep.subr.mxu0 0.0
    %2775 = vmatpush1.msra.mxu0 %v2751
    %2776 = vmatprep.subr.mxu0 0.0
    %2777 = vmatpush1.msra.mxu0 %v2750
    %2778 = vmatprep.subr.mxu0 0.0
    %2779 = vmatpush1.msra.mxu0 %v2749
    %2780 = vmatprep.subr.mxu0 0.0
    %2781 = vmatpush1.msra.mxu0 %v2748
    %2782 = vmatprep.subr.mxu0 0.0
    %2783 = vmatpush1.msra.mxu0 %v2747
    %2784 = vmatprep.subr.mxu0 0.0
    %2785 = vmatpush1.msra.mxu0 %v2746
    %2786 = vmatprep.subr.mxu0 0.0
    %2787 = vmatpush1.msra.mxu0 %v2745
    %2788 = vmatprep.subr.mxu0 0.0
    %2789 = vmatpush1.msra.mxu0 %v2744
    %2790 = vmatprep.subr.mxu0 0.0
    %2791 = vmatpush1.msra.mxu0 %v2743
    %2792 = vmatprep.subr.mxu0 0.0
    %2793 = vmatpush1.msra.mxu0 %v2742
    %2794 = vmatprep.subr.mxu0 0.0
    %2795 = vmatpush1.msra.mxu0 %v2741
    %2796 = vmatprep.subr.mxu0 0.0
    %2797 = vmatpush2.msra.mxu0 0.0
    %2798 = vmatprep.subr.mxu0 0.0
    %2799 = vmatpush2.msra.mxu0 0.0
    %2800 = vmatprep.subr.mxu0 0.0
    %2801 = vmatpush2.msra.mxu0 0.0
    %2802 = vmatprep.subr.mxu0 0.0
    %2803 = vmatpush2.msra.mxu0 0.0
    %2804 = vmatprep.subr.mxu0 0.0
    %2805 = vmatpush2.msra.mxu0 0.0
    %2806 = vmatprep.subr.mxu0 0.0
    %2807 = vmatpush2.msra.mxu0 0.0
    %2808 = vmatprep.subr.mxu0 0.0
    %2809 = vmatpush2.msra.mxu0 0.0
    %2810 = vmatprep.subr.mxu0 0.0
    %2811 = vmatpush2.msra.mxu0 0.0
    %2812 = vmatprep.subr.mxu0 0.0
    %2813 = vmatpush2.msra.mxu0 0.0
    %2814 = vmatprep.subr.mxu0 0.0
    %2815 = vmatpush2.msra.mxu0 0.0
    %2816 = vmatprep.subr.mxu0 0.0
    %2817 = vmatpush2.msra.mxu0 0.0
    %2818 = vmatprep.subr.mxu0 0.0
    %2819 = vmatpush2.msra.mxu0 0.0
    %2820 = vmatprep.subr.mxu0 0.0
    %2821 = vmatpush2.msra.mxu0 0.0
    %2822 = vmatprep.subr.mxu0 0.0
    %2823 = vmatpush2.msra.mxu0 0.0
    %2824 = vmatprep.subr.mxu0 0.0
    %2825 = vmatpush2.msra.mxu0 0.0
    %2826 = vmatprep.subr.mxu0 0.0
    %2827 = vmatpush2.msra.mxu0 0.0
    %2828 = vmatprep.mubr.f32.mxu0 0.0
    %2829 = vmatmul.mubr.f32.gmra.mxu0 %v2740
    %v2830 = vpop.f32.mrf.mxu0
    %v2831 = vadd.f32 %v2762, %v2830
    %v2832 = vpop.f32.mrf.mxu0
    %2833 = vdwg.mxu0
    %v2834 = vadd.f32 %v2650, %v2831
    %v2835 = vadd.f32 %v2834, %v69
    %s2836 = scalar_lea.vmem %s5, 1
    %v2837 = vld [vmem:[%s2836] sm:$0x1]
    %s2838 = scalar_lea.vmem %s6, 1
    %v2839 = vld [vmem:[%s2838] sm:$0x1]
    %v2840 = vsel %vm79, %v2835, 0.0
    %2841 = vadd.xlane.f32.xlu0 %v2840
    %v2842 = vpop.xlane.xlu0 %2841
    %v2843 = vmul.f32 %v2842, %v83
    %v2844 = vsub.f32 %v2835, %v2843
    %v2845 = vmul.f32 %v2844, %v2844
    %v2846 = vsel %vm79, %v2845, 0.0
    %2847 = vadd.xlane.f32.xlu0 %v2846
    %v2848 = vpop.xlane.xlu0 %2847
    %v2849 = vmul.f32 %v2848, %v83
    %v2850 = vadd.f32 %v2849, 1e-05
    %v2851 = vrsqrt.pop %v2850
    %v2852 = vmul.f32 %v2844, %v2851
    %v2854 = vlaneseq
    %v2855 = vshrl.u32 %v2854, 7
    %v2856 = vsub.s32 0, %v2855
    %v2857 = vrot.slane %v2837, %v2856
    %v2859 = vmul.f32 %v2852, %v2857
    %v2861 = vlaneseq
    %v2862 = vshrl.u32 %v2861, 7
    %v2863 = vsub.s32 0, %v2862
    %v2864 = vrot.slane %v2839, %v2863
    %v2866 = vadd.f32 %v2859, %v2864
    %s2867 = scalar_lea.vmem %s7, 128
    %v2868 = vld [vmem:[%s2867] sm:$0xff]
    %v2869 = vld [vmem:[%s2867 + $0x8] sm:$0xff]
    %v2870 = vld [vmem:[%s2867 + $0x10] sm:$0xff]
    %v2871 = vld [vmem:[%s2867 + $0x18] sm:$0xff]
    %v2872 = vld [vmem:[%s2867 + $0x20] sm:$0xff]
    %v2873 = vld [vmem:[%s2867 + $0x28] sm:$0xff]
    %v2874 = vld [vmem:[%s2867 + $0x30] sm:$0xff]
    %v2875 = vld [vmem:[%s2867 + $0x38] sm:$0xff]
    %v2876 = vld [vmem:[%s2867 + $0x40] sm:$0xff]
    %v2877 = vld [vmem:[%s2867 + $0x48] sm:$0xff]
    %v2878 = vld [vmem:[%s2867 + $0x50] sm:$0xff]
    %v2879 = vld [vmem:[%s2867 + $0x58] sm:$0xff]
    %v2880 = vld [vmem:[%s2867 + $0x60] sm:$0xff]
    %v2881 = vld [vmem:[%s2867 + $0x68] sm:$0xff]
    %v2882 = vld [vmem:[%s2867 + $0x70] sm:$0xff]
    %v2883 = vld [vmem:[%s2867 + $0x78] sm:$0xff]
    %s2884 = scalar_lea.vmem %s8, 4
    %v2885 = vld [vmem:[%s2884] sm:$0x1]
    %v2886 = vld [vmem:[%s2884 + $0x1] sm:$0x1]
    %v2887 = vld [vmem:[%s2884 + $0x2] sm:$0x1]
    %v2888 = vld [vmem:[%s2884 + $0x3] sm:$0x1]
    %v2893 = vlaneseq
    %v2894 = vshrl.u32 %v2893, 7
    %v2895 = vsub.s32 0, %v2894
    %v2896 = vrot.slane %v2885, %v2895
    %v2897 = vlaneseq
    %v2898 = vshrl.u32 %v2897, 7
    %v2899 = vsub.s32 0, %v2898
    %v2900 = vrot.slane %v2886, %v2899
    %v2901 = vlaneseq
    %v2902 = vshrl.u32 %v2901, 7
    %v2903 = vsub.s32 0, %v2902
    %v2904 = vrot.slane %v2887, %v2903
    %v2905 = vlaneseq
    %v2906 = vshrl.u32 %v2905, 7
    %v2907 = vsub.s32 0, %v2906
    %v2908 = vrot.slane %v2888, %v2907
    %v2914 = vsel %vm79, %v2866, 0
    %2916 = vmatprep.subr.mxu0 0.0
    %2917 = vmatpush1.msra.mxu0 0.0
    %2918 = vmatprep.subr.mxu0 0.0
    %2919 = vmatpush1.msra.mxu0 0.0
    %2920 = vmatprep.subr.mxu0 0.0
    %2921 = vmatpush1.msra.mxu0 0.0
    %2922 = vmatprep.subr.mxu0 0.0
    %2923 = vmatpush1.msra.mxu0 0.0
    %2924 = vmatprep.subr.mxu0 0.0
    %2925 = vmatpush1.msra.mxu0 0.0
    %2926 = vmatprep.subr.mxu0 0.0
    %2927 = vmatpush1.msra.mxu0 0.0
    %2928 = vmatprep.subr.mxu0 0.0
    %2929 = vmatpush1.msra.mxu0 0.0
    %2930 = vmatprep.subr.mxu0 0.0
    %2931 = vmatpush1.msra.mxu0 0.0
    %2932 = vmatprep.subr.mxu0 0.0
    %2933 = vmatpush1.msra.mxu0 0.0
    %2934 = vmatprep.subr.mxu0 0.0
    %2935 = vmatpush1.msra.mxu0 0.0
    %2936 = vmatprep.subr.mxu0 0.0
    %2937 = vmatpush1.msra.mxu0 0.0
    %2938 = vmatprep.subr.mxu0 0.0
    %2939 = vmatpush1.msra.mxu0 0.0
    %2940 = vmatprep.subr.mxu0 0.0
    %2941 = vmatpush1.msra.mxu0 %v2871
    %2942 = vmatprep.subr.mxu0 0.0
    %2943 = vmatpush1.msra.mxu0 %v2870
    %2944 = vmatprep.subr.mxu0 0.0
    %2945 = vmatpush1.msra.mxu0 %v2869
    %2946 = vmatprep.subr.mxu0 0.0
    %2947 = vmatpush1.msra.mxu0 %v2868
    %2948 = vmatprep.subr.mxu0 0.0
    %2949 = vmatpush2.msra.mxu0 0.0
    %2950 = vmatprep.subr.mxu0 0.0
    %2951 = vmatpush2.msra.mxu0 0.0
    %2952 = vmatprep.subr.mxu0 0.0
    %2953 = vmatpush2.msra.mxu0 0.0
    %2954 = vmatprep.subr.mxu0 0.0
    %2955 = vmatpush2.msra.mxu0 0.0
    %2956 = vmatprep.subr.mxu0 0.0
    %2957 = vmatpush2.msra.mxu0 0.0
    %2958 = vmatprep.subr.mxu0 0.0
    %2959 = vmatpush2.msra.mxu0 0.0
    %2960 = vmatprep.subr.mxu0 0.0
    %2961 = vmatpush2.msra.mxu0 0.0
    %2962 = vmatprep.subr.mxu0 0.0
    %2963 = vmatpush2.msra.mxu0 0.0
    %2964 = vmatprep.subr.mxu0 0.0
    %2965 = vmatpush2.msra.mxu0 0.0
    %2966 = vmatprep.subr.mxu0 0.0
    %2967 = vmatpush2.msra.mxu0 0.0
    %2968 = vmatprep.subr.mxu0 0.0
    %2969 = vmatpush2.msra.mxu0 0.0
    %2970 = vmatprep.subr.mxu0 0.0
    %2971 = vmatpush2.msra.mxu0 0.0
    %2972 = vmatprep.subr.mxu0 0.0
    %2973 = vmatpush2.msra.mxu0 0.0
    %2974 = vmatprep.subr.mxu0 0.0
    %2975 = vmatpush2.msra.mxu0 0.0
    %2976 = vmatprep.subr.mxu0 0.0
    %2977 = vmatpush2.msra.mxu0 0.0
    %2978 = vmatprep.subr.mxu0 0.0
    %2979 = vmatpush2.msra.mxu0 0.0
    %2980 = vmatprep.mubr.f32.mxu0 0.0
    %2981 = vmatmul.mubr.f32.gmra.mxu0 %v2914
    %v2982 = vpop.f32.mrf.mxu0
    %v2983 = vadd.f32 %v2896, %v2982
    %v2984 = vpop.f32.mrf.mxu0
    %2985 = vdwg.mxu0
    %2986 = vmatprep.subr.mxu0 0.0
    %2987 = vmatpush1.msra.mxu0 0.0
    %2988 = vmatprep.subr.mxu0 0.0
    %2989 = vmatpush1.msra.mxu0 0.0
    %2990 = vmatprep.subr.mxu0 0.0
    %2991 = vmatpush1.msra.mxu0 0.0
    %2992 = vmatprep.subr.mxu0 0.0
    %2993 = vmatpush1.msra.mxu0 0.0
    %2994 = vmatprep.subr.mxu0 0.0
    %2995 = vmatpush1.msra.mxu0 0.0
    %2996 = vmatprep.subr.mxu0 0.0
    %2997 = vmatpush1.msra.mxu0 0.0
    %2998 = vmatprep.subr.mxu0 0.0
    %2999 = vmatpush1.msra.mxu0 0.0
    %3000 = vmatprep.subr.mxu0 0.0
    %3001 = vmatpush1.msra.mxu0 0.0
    %3002 = vmatprep.subr.mxu0 0.0
    %3003 = vmatpush1.msra.mxu0 0.0
    %3004 = vmatprep.subr.mxu0 0.0
    %3005 = vmatpush1.msra.mxu0 0.0
    %3006 = vmatprep.subr.mxu0 0.0
    %3007 = vmatpush1.msra.mxu0 0.0
    %3008 = vmatprep.subr.mxu0 0.0
    %3009 = vmatpush1.msra.mxu0 0.0
    %3010 = vmatprep.subr.mxu0 0.0
    %3011 = vmatpush1.msra.mxu0 %v2875
    %3012 = vmatprep.subr.mxu0 0.0
    %3013 = vmatpush1.msra.mxu0 %v2874
    %3014 = vmatprep.subr.mxu0 0.0
    %3015 = vmatpush1.msra.mxu0 %v2873
    %3016 = vmatprep.subr.mxu0 0.0
    %3017 = vmatpush1.msra.mxu0 %v2872
    %3018 = vmatprep.subr.mxu0 0.0
    %3019 = vmatpush2.msra.mxu0 0.0
    %3020 = vmatprep.subr.mxu0 0.0
    %3021 = vmatpush2.msra.mxu0 0.0
    %3022 = vmatprep.subr.mxu0 0.0
    %3023 = vmatpush2.msra.mxu0 0.0
    %3024 = vmatprep.subr.mxu0 0.0
    %3025 = vmatpush2.msra.mxu0 0.0
    %3026 = vmatprep.subr.mxu0 0.0
    %3027 = vmatpush2.msra.mxu0 0.0
    %3028 = vmatprep.subr.mxu0 0.0
    %3029 = vmatpush2.msra.mxu0 0.0
    %3030 = vmatprep.subr.mxu0 0.0
    %3031 = vmatpush2.msra.mxu0 0.0
    %3032 = vmatprep.subr.mxu0 0.0
    %3033 = vmatpush2.msra.mxu0 0.0
    %3034 = vmatprep.subr.mxu0 0.0
    %3035 = vmatpush2.msra.mxu0 0.0
    %3036 = vmatprep.subr.mxu0 0.0
    %3037 = vmatpush2.msra.mxu0 0.0
    %3038 = vmatprep.subr.mxu0 0.0
    %3039 = vmatpush2.msra.mxu0 0.0
    %3040 = vmatprep.subr.mxu0 0.0
    %3041 = vmatpush2.msra.mxu0 0.0
    %3042 = vmatprep.subr.mxu0 0.0
    %3043 = vmatpush2.msra.mxu0 0.0
    %3044 = vmatprep.subr.mxu0 0.0
    %3045 = vmatpush2.msra.mxu0 0.0
    %3046 = vmatprep.subr.mxu0 0.0
    %3047 = vmatpush2.msra.mxu0 0.0
    %3048 = vmatprep.subr.mxu0 0.0
    %3049 = vmatpush2.msra.mxu0 0.0
    %3050 = vmatprep.mubr.f32.mxu0 0.0
    %3051 = vmatmul.mubr.f32.gmra.mxu0 %v2914
    %v3052 = vpop.f32.mrf.mxu0
    %v3053 = vadd.f32 %v2900, %v3052
    %v3054 = vpop.f32.mrf.mxu0
    %3055 = vdwg.mxu0
    %3056 = vmatprep.subr.mxu0 0.0
    %3057 = vmatpush1.msra.mxu0 0.0
    %3058 = vmatprep.subr.mxu0 0.0
    %3059 = vmatpush1.msra.mxu0 0.0
    %3060 = vmatprep.subr.mxu0 0.0
    %3061 = vmatpush1.msra.mxu0 0.0
    %3062 = vmatprep.subr.mxu0 0.0
    %3063 = vmatpush1.msra.mxu0 0.0
    %3064 = vmatprep.subr.mxu0 0.0
    %3065 = vmatpush1.msra.mxu0 0.0
    %3066 = vmatprep.subr.mxu0 0.0
    %3067 = vmatpush1.msra.mxu0 0.0
    %3068 = vmatprep.subr.mxu0 0.0
    %3069 = vmatpush1.msra.mxu0 0.0
    %3070 = vmatprep.subr.mxu0 0.0
    %3071 = vmatpush1.msra.mxu0 0.0
    %3072 = vmatprep.subr.mxu0 0.0
    %3073 = vmatpush1.msra.mxu0 0.0
    %3074 = vmatprep.subr.mxu0 0.0
    %3075 = vmatpush1.msra.mxu0 0.0
    %3076 = vmatprep.subr.mxu0 0.0
    %3077 = vmatpush1.msra.mxu0 0.0
    %3078 = vmatprep.subr.mxu0 0.0
    %3079 = vmatpush1.msra.mxu0 0.0
    %3080 = vmatprep.subr.mxu0 0.0
    %3081 = vmatpush1.msra.mxu0 %v2879
    %3082 = vmatprep.subr.mxu0 0.0
    %3083 = vmatpush1.msra.mxu0 %v2878
    %3084 = vmatprep.subr.mxu0 0.0
    %3085 = vmatpush1.msra.mxu0 %v2877
    %3086 = vmatprep.subr.mxu0 0.0
    %3087 = vmatpush1.msra.mxu0 %v2876
    %3088 = vmatprep.subr.mxu0 0.0
    %3089 = vmatpush2.msra.mxu0 0.0
    %3090 = vmatprep.subr.mxu0 0.0
    %3091 = vmatpush2.msra.mxu0 0.0
    %3092 = vmatprep.subr.mxu0 0.0
    %3093 = vmatpush2.msra.mxu0 0.0
    %3094 = vmatprep.subr.mxu0 0.0
    %3095 = vmatpush2.msra.mxu0 0.0
    %3096 = vmatprep.subr.mxu0 0.0
    %3097 = vmatpush2.msra.mxu0 0.0
    %3098 = vmatprep.subr.mxu0 0.0
    %3099 = vmatpush2.msra.mxu0 0.0
    %3100 = vmatprep.subr.mxu0 0.0
    %3101 = vmatpush2.msra.mxu0 0.0
    %3102 = vmatprep.subr.mxu0 0.0
    %3103 = vmatpush2.msra.mxu0 0.0
    %3104 = vmatprep.subr.mxu0 0.0
    %3105 = vmatpush2.msra.mxu0 0.0
    %3106 = vmatprep.subr.mxu0 0.0
    %3107 = vmatpush2.msra.mxu0 0.0
    %3108 = vmatprep.subr.mxu0 0.0
    %3109 = vmatpush2.msra.mxu0 0.0
    %3110 = vmatprep.subr.mxu0 0.0
    %3111 = vmatpush2.msra.mxu0 0.0
    %3112 = vmatprep.subr.mxu0 0.0
    %3113 = vmatpush2.msra.mxu0 0.0
    %3114 = vmatprep.subr.mxu0 0.0
    %3115 = vmatpush2.msra.mxu0 0.0
    %3116 = vmatprep.subr.mxu0 0.0
    %3117 = vmatpush2.msra.mxu0 0.0
    %3118 = vmatprep.subr.mxu0 0.0
    %3119 = vmatpush2.msra.mxu0 0.0
    %3120 = vmatprep.mubr.f32.mxu0 0.0
    %3121 = vmatmul.mubr.f32.gmra.mxu0 %v2914
    %v3122 = vpop.f32.mrf.mxu0
    %v3123 = vadd.f32 %v2904, %v3122
    %v3124 = vpop.f32.mrf.mxu0
    %3125 = vdwg.mxu0
    %3126 = vmatprep.subr.mxu0 0.0
    %3127 = vmatpush1.msra.mxu0 0.0
    %3128 = vmatprep.subr.mxu0 0.0
    %3129 = vmatpush1.msra.mxu0 0.0
    %3130 = vmatprep.subr.mxu0 0.0
    %3131 = vmatpush1.msra.mxu0 0.0
    %3132 = vmatprep.subr.mxu0 0.0
    %3133 = vmatpush1.msra.mxu0 0.0
    %3134 = vmatprep.subr.mxu0 0.0
    %3135 = vmatpush1.msra.mxu0 0.0
    %3136 = vmatprep.subr.mxu0 0.0
    %3137 = vmatpush1.msra.mxu0 0.0
    %3138 = vmatprep.subr.mxu0 0.0
    %3139 = vmatpush1.msra.mxu0 0.0
    %3140 = vmatprep.subr.mxu0 0.0
    %3141 = vmatpush1.msra.mxu0 0.0
    %3142 = vmatprep.subr.mxu0 0.0
    %3143 = vmatpush1.msra.mxu0 0.0
    %3144 = vmatprep.subr.mxu0 0.0
    %3145 = vmatpush1.msra.mxu0 0.0
    %3146 = vmatprep.subr.mxu0 0.0
    %3147 = vmatpush1.msra.mxu0 0.0
    %3148 = vmatprep.subr.mxu0 0.0
    %3149 = vmatpush1.msra.mxu0 0.0
    %3150 = vmatprep.subr.mxu0 0.0
    %3151 = vmatpush1.msra.mxu0 %v2883
    %3152 = vmatprep.subr.mxu0 0.0
    %3153 = vmatpush1.msra.mxu0 %v2882
    %3154 = vmatprep.subr.mxu0 0.0
    %3155 = vmatpush1.msra.mxu0 %v2881
    %3156 = vmatprep.subr.mxu0 0.0
    %3157 = vmatpush1.msra.mxu0 %v2880
    %3158 = vmatprep.subr.mxu0 0.0
    %3159 = vmatpush2.msra.mxu0 0.0
    %3160 = vmatprep.subr.mxu0 0.0
    %3161 = vmatpush2.msra.mxu0 0.0
    %3162 = vmatprep.subr.mxu0 0.0
    %3163 = vmatpush2.msra.mxu0 0.0
    %3164 = vmatprep.subr.mxu0 0.0
    %3165 = vmatpush2.msra.mxu0 0.0
    %3166 = vmatprep.subr.mxu0 0.0
    %3167 = vmatpush2.msra.mxu0 0.0
    %3168 = vmatprep.subr.mxu0 0.0
    %3169 = vmatpush2.msra.mxu0 0.0
    %3170 = vmatprep.subr.mxu0 0.0
    %3171 = vmatpush2.msra.mxu0 0.0
    %3172 = vmatprep.subr.mxu0 0.0
    %3173 = vmatpush2.msra.mxu0 0.0
    %3174 = vmatprep.subr.mxu0 0.0
    %3175 = vmatpush2.msra.mxu0 0.0
    %3176 = vmatprep.subr.mxu0 0.0
    %3177 = vmatpush2.msra.mxu0 0.0
    %3178 = vmatprep.subr.mxu0 0.0
    %3179 = vmatpush2.msra.mxu0 0.0
    %3180 = vmatprep.subr.mxu0 0.0
    %3181 = vmatpush2.msra.mxu0 0.0
    %3182 = vmatprep.subr.mxu0 0.0
    %3183 = vmatpush2.msra.mxu0 0.0
    %3184 = vmatprep.subr.mxu0 0.0
    %3185 = vmatpush2.msra.mxu0 0.0
    %3186 = vmatprep.subr.mxu0 0.0
    %3187 = vmatpush2.msra.mxu0 0.0
    %3188 = vmatprep.subr.mxu0 0.0
    %3189 = vmatpush2.msra.mxu0 0.0
    %3190 = vmatprep.mubr.f32.mxu0 0.0
    %3191 = vmatmul.mubr.f32.gmra.mxu0 %v2914
    %v3192 = vpop.f32.mrf.mxu0
    %v3193 = vadd.f32 %v2908, %v3192
    %v3194 = vpop.f32.mrf.mxu0
    %3195 = vdwg.mxu0
    %s3196 = scalar_lea.vmem %s9, 128
    %v3197 = vld [vmem:[%s3196] sm:$0xff]
    %v3198 = vld [vmem:[%s3196 + $0x8] sm:$0xff]
    %v3199 = vld [vmem:[%s3196 + $0x10] sm:$0xff]
    %v3200 = vld [vmem:[%s3196 + $0x18] sm:$0xff]
    %v3201 = vld [vmem:[%s3196 + $0x20] sm:$0xff]
    %v3202 = vld [vmem:[%s3196 + $0x28] sm:$0xff]
    %v3203 = vld [vmem:[%s3196 + $0x30] sm:$0xff]
    %v3204 = vld [vmem:[%s3196 + $0x38] sm:$0xff]
    %v3205 = vld [vmem:[%s3196 + $0x40] sm:$0xff]
    %v3206 = vld [vmem:[%s3196 + $0x48] sm:$0xff]
    %v3207 = vld [vmem:[%s3196 + $0x50] sm:$0xff]
    %v3208 = vld [vmem:[%s3196 + $0x58] sm:$0xff]
    %v3209 = vld [vmem:[%s3196 + $0x60] sm:$0xff]
    %v3210 = vld [vmem:[%s3196 + $0x68] sm:$0xff]
    %v3211 = vld [vmem:[%s3196 + $0x70] sm:$0xff]
    %v3212 = vld [vmem:[%s3196 + $0x78] sm:$0xff]
    %s3213 = scalar_lea.vmem %s10, 4
    %v3214 = vld [vmem:[%s3213] sm:$0x1]
    %v3215 = vld [vmem:[%s3213 + $0x1] sm:$0x1]
    %v3216 = vld [vmem:[%s3213 + $0x2] sm:$0x1]
    %v3217 = vld [vmem:[%s3213 + $0x3] sm:$0x1]
    %v3222 = vlaneseq
    %v3223 = vshrl.u32 %v3222, 7
    %v3224 = vsub.s32 0, %v3223
    %v3225 = vrot.slane %v3214, %v3224
    %v3226 = vlaneseq
    %v3227 = vshrl.u32 %v3226, 7
    %v3228 = vsub.s32 0, %v3227
    %v3229 = vrot.slane %v3215, %v3228
    %v3230 = vlaneseq
    %v3231 = vshrl.u32 %v3230, 7
    %v3232 = vsub.s32 0, %v3231
    %v3233 = vrot.slane %v3216, %v3232
    %v3234 = vlaneseq
    %v3235 = vshrl.u32 %v3234, 7
    %v3236 = vsub.s32 0, %v3235
    %v3237 = vrot.slane %v3217, %v3236
    %3242 = vmatprep.subr.mxu0 0.0
    %3243 = vmatpush1.msra.mxu0 0.0
    %3244 = vmatprep.subr.mxu0 0.0
    %3245 = vmatpush1.msra.mxu0 0.0
    %3246 = vmatprep.subr.mxu0 0.0
    %3247 = vmatpush1.msra.mxu0 0.0
    %3248 = vmatprep.subr.mxu0 0.0
    %3249 = vmatpush1.msra.mxu0 0.0
    %3250 = vmatprep.subr.mxu0 0.0
    %3251 = vmatpush1.msra.mxu0 0.0
    %3252 = vmatprep.subr.mxu0 0.0
    %3253 = vmatpush1.msra.mxu0 0.0
    %3254 = vmatprep.subr.mxu0 0.0
    %3255 = vmatpush1.msra.mxu0 0.0
    %3256 = vmatprep.subr.mxu0 0.0
    %3257 = vmatpush1.msra.mxu0 0.0
    %3258 = vmatprep.subr.mxu0 0.0
    %3259 = vmatpush1.msra.mxu0 0.0
    %3260 = vmatprep.subr.mxu0 0.0
    %3261 = vmatpush1.msra.mxu0 0.0
    %3262 = vmatprep.subr.mxu0 0.0
    %3263 = vmatpush1.msra.mxu0 0.0
    %3264 = vmatprep.subr.mxu0 0.0
    %3265 = vmatpush1.msra.mxu0 0.0
    %3266 = vmatprep.subr.mxu0 0.0
    %3267 = vmatpush1.msra.mxu0 %v3200
    %3268 = vmatprep.subr.mxu0 0.0
    %3269 = vmatpush1.msra.mxu0 %v3199
    %3270 = vmatprep.subr.mxu0 0.0
    %3271 = vmatpush1.msra.mxu0 %v3198
    %3272 = vmatprep.subr.mxu0 0.0
    %3273 = vmatpush1.msra.mxu0 %v3197
    %3274 = vmatprep.subr.mxu0 0.0
    %3275 = vmatpush2.msra.mxu0 0.0
    %3276 = vmatprep.subr.mxu0 0.0
    %3277 = vmatpush2.msra.mxu0 0.0
    %3278 = vmatprep.subr.mxu0 0.0
    %3279 = vmatpush2.msra.mxu0 0.0
    %3280 = vmatprep.subr.mxu0 0.0
    %3281 = vmatpush2.msra.mxu0 0.0
    %3282 = vmatprep.subr.mxu0 0.0
    %3283 = vmatpush2.msra.mxu0 0.0
    %3284 = vmatprep.subr.mxu0 0.0
    %3285 = vmatpush2.msra.mxu0 0.0
    %3286 = vmatprep.subr.mxu0 0.0
    %3287 = vmatpush2.msra.mxu0 0.0
    %3288 = vmatprep.subr.mxu0 0.0
    %3289 = vmatpush2.msra.mxu0 0.0
    %3290 = vmatprep.subr.mxu0 0.0
    %3291 = vmatpush2.msra.mxu0 0.0
    %3292 = vmatprep.subr.mxu0 0.0
    %3293 = vmatpush2.msra.mxu0 0.0
    %3294 = vmatprep.subr.mxu0 0.0
    %3295 = vmatpush2.msra.mxu0 0.0
    %3296 = vmatprep.subr.mxu0 0.0
    %3297 = vmatpush2.msra.mxu0 0.0
    %3298 = vmatprep.subr.mxu0 0.0
    %3299 = vmatpush2.msra.mxu0 0.0
    %3300 = vmatprep.subr.mxu0 0.0
    %3301 = vmatpush2.msra.mxu0 0.0
    %3302 = vmatprep.subr.mxu0 0.0
    %3303 = vmatpush2.msra.mxu0 0.0
    %3304 = vmatprep.subr.mxu0 0.0
    %3305 = vmatpush2.msra.mxu0 0.0
    %3306 = vmatprep.mubr.f32.mxu0 0.0
    %3307 = vmatmul.mubr.f32.gmra.mxu0 %v2914
    %v3308 = vpop.f32.mrf.mxu0
    %v3309 = vadd.f32 %v3225, %v3308
    %v3310 = vpop.f32.mrf.mxu0
    %3311 = vdwg.mxu0
    %3312 = vmatprep.subr.mxu0 0.0
    %3313 = vmatpush1.msra.mxu0 0.0
    %3314 = vmatprep.subr.mxu0 0.0
    %3315 = vmatpush1.msra.mxu0 0.0
    %3316 = vmatprep.subr.mxu0 0.0
    %3317 = vmatpush1.msra.mxu0 0.0
    %3318 = vmatprep.subr.mxu0 0.0
    %3319 = vmatpush1.msra.mxu0 0.0
    %3320 = vmatprep.subr.mxu0 0.0
    %3321 = vmatpush1.msra.mxu0 0.0
    %3322 = vmatprep.subr.mxu0 0.0
    %3323 = vmatpush1.msra.mxu0 0.0
    %3324 = vmatprep.subr.mxu0 0.0
    %3325 = vmatpush1.msra.mxu0 0.0
    %3326 = vmatprep.subr.mxu0 0.0
    %3327 = vmatpush1.msra.mxu0 0.0
    %3328 = vmatprep.subr.mxu0 0.0
    %3329 = vmatpush1.msra.mxu0 0.0
    %3330 = vmatprep.subr.mxu0 0.0
    %3331 = vmatpush1.msra.mxu0 0.0
    %3332 = vmatprep.subr.mxu0 0.0
    %3333 = vmatpush1.msra.mxu0 0.0
    %3334 = vmatprep.subr.mxu0 0.0
    %3335 = vmatpush1.msra.mxu0 0.0
    %3336 = vmatprep.subr.mxu0 0.0
    %3337 = vmatpush1.msra.mxu0 %v3204
    %3338 = vmatprep.subr.mxu0 0.0
    %3339 = vmatpush1.msra.mxu0 %v3203
    %3340 = vmatprep.subr.mxu0 0.0
    %3341 = vmatpush1.msra.mxu0 %v3202
    %3342 = vmatprep.subr.mxu0 0.0
    %3343 = vmatpush1.msra.mxu0 %v3201
    %3344 = vmatprep.subr.mxu0 0.0
    %3345 = vmatpush2.msra.mxu0 0.0
    %3346 = vmatprep.subr.mxu0 0.0
    %3347 = vmatpush2.msra.mxu0 0.0
    %3348 = vmatprep.subr.mxu0 0.0
    %3349 = vmatpush2.msra.mxu0 0.0
    %3350 = vmatprep.subr.mxu0 0.0
    %3351 = vmatpush2.msra.mxu0 0.0
    %3352 = vmatprep.subr.mxu0 0.0
    %3353 = vmatpush2.msra.mxu0 0.0
    %3354 = vmatprep.subr.mxu0 0.0
    %3355 = vmatpush2.msra.mxu0 0.0
    %3356 = vmatprep.subr.mxu0 0.0
    %3357 = vmatpush2.msra.mxu0 0.0
    %3358 = vmatprep.subr.mxu0 0.0
    %3359 = vmatpush2.msra.mxu0 0.0
    %3360 = vmatprep.subr.mxu0 0.0
    %3361 = vmatpush2.msra.mxu0 0.0
    %3362 = vmatprep.subr.mxu0 0.0
    %3363 = vmatpush2.msra.mxu0 0.0
    %3364 = vmatprep.subr.mxu0 0.0
    %3365 = vmatpush2.msra.mxu0 0.0
    %3366 = vmatprep.subr.mxu0 0.0
    %3367 = vmatpush2.msra.mxu0 0.0
    %3368 = vmatprep.subr.mxu0 0.0
    %3369 = vmatpush2.msra.mxu0 0.0
    %3370 = vmatprep.subr.mxu0 0.0
    %3371 = vmatpush2.msra.mxu0 0.0
    %3372 = vmatprep.subr.mxu0 0.0
    %3373 = vmatpush2.msra.mxu0 0.0
    %3374 = vmatprep.subr.mxu0 0.0
    %3375 = vmatpush2.msra.mxu0 0.0
    %3376 = vmatprep.mubr.f32.mxu0 0.0
    %3377 = vmatmul.mubr.f32.gmra.mxu0 %v2914
    %v3378 = vpop.f32.mrf.mxu0
    %v3379 = vadd.f32 %v3229, %v3378
    %v3380 = vpop.f32.mrf.mxu0
    %3381 = vdwg.mxu0
    %3382 = vmatprep.subr.mxu0 0.0
    %3383 = vmatpush1.msra.mxu0 0.0
    %3384 = vmatprep.subr.mxu0 0.0
    %3385 = vmatpush1.msra.mxu0 0.0
    %3386 = vmatprep.subr.mxu0 0.0
    %3387 = vmatpush1.msra.mxu0 0.0
    %3388 = vmatprep.subr.mxu0 0.0
    %3389 = vmatpush1.msra.mxu0 0.0
    %3390 = vmatprep.subr.mxu0 0.0
    %3391 = vmatpush1.msra.mxu0 0.0
    %3392 = vmatprep.subr.mxu0 0.0
    %3393 = vmatpush1.msra.mxu0 0.0
    %3394 = vmatprep.subr.mxu0 0.0
    %3395 = vmatpush1.msra.mxu0 0.0
    %3396 = vmatprep.subr.mxu0 0.0
    %3397 = vmatpush1.msra.mxu0 0.0
    %3398 = vmatprep.subr.mxu0 0.0
    %3399 = vmatpush1.msra.mxu0 0.0
    %3400 = vmatprep.subr.mxu0 0.0
    %3401 = vmatpush1.msra.mxu0 0.0
    %3402 = vmatprep.subr.mxu0 0.0
    %3403 = vmatpush1.msra.mxu0 0.0
    %3404 = vmatprep.subr.mxu0 0.0
    %3405 = vmatpush1.msra.mxu0 0.0
    %3406 = vmatprep.subr.mxu0 0.0
    %3407 = vmatpush1.msra.mxu0 %v3208
    %3408 = vmatprep.subr.mxu0 0.0
    %3409 = vmatpush1.msra.mxu0 %v3207
    %3410 = vmatprep.subr.mxu0 0.0
    %3411 = vmatpush1.msra.mxu0 %v3206
    %3412 = vmatprep.subr.mxu0 0.0
    %3413 = vmatpush1.msra.mxu0 %v3205
    %3414 = vmatprep.subr.mxu0 0.0
    %3415 = vmatpush2.msra.mxu0 0.0
    %3416 = vmatprep.subr.mxu0 0.0
    %3417 = vmatpush2.msra.mxu0 0.0
    %3418 = vmatprep.subr.mxu0 0.0
    %3419 = vmatpush2.msra.mxu0 0.0
    %3420 = vmatprep.subr.mxu0 0.0
    %3421 = vmatpush2.msra.mxu0 0.0
    %3422 = vmatprep.subr.mxu0 0.0
    %3423 = vmatpush2.msra.mxu0 0.0
    %3424 = vmatprep.subr.mxu0 0.0
    %3425 = vmatpush2.msra.mxu0 0.0
    %3426 = vmatprep.subr.mxu0 0.0
    %3427 = vmatpush2.msra.mxu0 0.0
    %3428 = vmatprep.subr.mxu0 0.0
    %3429 = vmatpush2.msra.mxu0 0.0
    %3430 = vmatprep.subr.mxu0 0.0
    %3431 = vmatpush2.msra.mxu0 0.0
    %3432 = vmatprep.subr.mxu0 0.0
    %3433 = vmatpush2.msra.mxu0 0.0
    %3434 = vmatprep.subr.mxu0 0.0
    %3435 = vmatpush2.msra.mxu0 0.0
    %3436 = vmatprep.subr.mxu0 0.0
    %3437 = vmatpush2.msra.mxu0 0.0
    %3438 = vmatprep.subr.mxu0 0.0
    %3439 = vmatpush2.msra.mxu0 0.0
    %3440 = vmatprep.subr.mxu0 0.0
    %3441 = vmatpush2.msra.mxu0 0.0
    %3442 = vmatprep.subr.mxu0 0.0
    %3443 = vmatpush2.msra.mxu0 0.0
    %3444 = vmatprep.subr.mxu0 0.0
    %3445 = vmatpush2.msra.mxu0 0.0
    %3446 = vmatprep.mubr.f32.mxu0 0.0
    %3447 = vmatmul.mubr.f32.gmra.mxu0 %v2914
    %v3448 = vpop.f32.mrf.mxu0
    %v3449 = vadd.f32 %v3233, %v3448
    %v3450 = vpop.f32.mrf.mxu0
    %3451 = vdwg.mxu0
    %3452 = vmatprep.subr.mxu0 0.0
    %3453 = vmatpush1.msra.mxu0 0.0
    %3454 = vmatprep.subr.mxu0 0.0
    %3455 = vmatpush1.msra.mxu0 0.0
    %3456 = vmatprep.subr.mxu0 0.0
    %3457 = vmatpush1.msra.mxu0 0.0
    %3458 = vmatprep.subr.mxu0 0.0
    %3459 = vmatpush1.msra.mxu0 0.0
    %3460 = vmatprep.subr.mxu0 0.0
    %3461 = vmatpush1.msra.mxu0 0.0
    %3462 = vmatprep.subr.mxu0 0.0
    %3463 = vmatpush1.msra.mxu0 0.0
    %3464 = vmatprep.subr.mxu0 0.0
    %3465 = vmatpush1.msra.mxu0 0.0
    %3466 = vmatprep.subr.mxu0 0.0
    %3467 = vmatpush1.msra.mxu0 0.0
    %3468 = vmatprep.subr.mxu0 0.0
    %3469 = vmatpush1.msra.mxu0 0.0
    %3470 = vmatprep.subr.mxu0 0.0
    %3471 = vmatpush1.msra.mxu0 0.0
    %3472 = vmatprep.subr.mxu0 0.0
    %3473 = vmatpush1.msra.mxu0 0.0
    %3474 = vmatprep.subr.mxu0 0.0
    %3475 = vmatpush1.msra.mxu0 0.0
    %3476 = vmatprep.subr.mxu0 0.0
    %3477 = vmatpush1.msra.mxu0 %v3212
    %3478 = vmatprep.subr.mxu0 0.0
    %3479 = vmatpush1.msra.mxu0 %v3211
    %3480 = vmatprep.subr.mxu0 0.0
    %3481 = vmatpush1.msra.mxu0 %v3210
    %3482 = vmatprep.subr.mxu0 0.0
    %3483 = vmatpush1.msra.mxu0 %v3209
    %3484 = vmatprep.subr.mxu0 0.0
    %3485 = vmatpush2.msra.mxu0 0.0
    %3486 = vmatprep.subr.mxu0 0.0
    %3487 = vmatpush2.msra.mxu0 0.0
    %3488 = vmatprep.subr.mxu0 0.0
    %3489 = vmatpush2.msra.mxu0 0.0
    %3490 = vmatprep.subr.mxu0 0.0
    %3491 = vmatpush2.msra.mxu0 0.0
    %3492 = vmatprep.subr.mxu0 0.0
    %3493 = vmatpush2.msra.mxu0 0.0
    %3494 = vmatprep.subr.mxu0 0.0
    %3495 = vmatpush2.msra.mxu0 0.0
    %3496 = vmatprep.subr.mxu0 0.0
    %3497 = vmatpush2.msra.mxu0 0.0
    %3498 = vmatprep.subr.mxu0 0.0
    %3499 = vmatpush2.msra.mxu0 0.0
    %3500 = vmatprep.subr.mxu0 0.0
    %3501 = vmatpush2.msra.mxu0 0.0
    %3502 = vmatprep.subr.mxu0 0.0
    %3503 = vmatpush2.msra.mxu0 0.0
    %3504 = vmatprep.subr.mxu0 0.0
    %3505 = vmatpush2.msra.mxu0 0.0
    %3506 = vmatprep.subr.mxu0 0.0
    %3507 = vmatpush2.msra.mxu0 0.0
    %3508 = vmatprep.subr.mxu0 0.0
    %3509 = vmatpush2.msra.mxu0 0.0
    %3510 = vmatprep.subr.mxu0 0.0
    %3511 = vmatpush2.msra.mxu0 0.0
    %3512 = vmatprep.subr.mxu0 0.0
    %3513 = vmatpush2.msra.mxu0 0.0
    %3514 = vmatprep.subr.mxu0 0.0
    %3515 = vmatpush2.msra.mxu0 0.0
    %3516 = vmatprep.mubr.f32.mxu0 0.0
    %3517 = vmatmul.mubr.f32.gmra.mxu0 %v2914
    %v3518 = vpop.f32.mrf.mxu0
    %v3519 = vadd.f32 %v3237, %v3518
    %v3520 = vpop.f32.mrf.mxu0
    %3521 = vdwg.mxu0
    %s3522 = scalar_lea.vmem %s11, 128
    %v3523 = vld [vmem:[%s3522] sm:$0xff]
    %v3524 = vld [vmem:[%s3522 + $0x8] sm:$0xff]
    %v3525 = vld [vmem:[%s3522 + $0x10] sm:$0xff]
    %v3526 = vld [vmem:[%s3522 + $0x18] sm:$0xff]
    %v3527 = vld [vmem:[%s3522 + $0x20] sm:$0xff]
    %v3528 = vld [vmem:[%s3522 + $0x28] sm:$0xff]
    %v3529 = vld [vmem:[%s3522 + $0x30] sm:$0xff]
    %v3530 = vld [vmem:[%s3522 + $0x38] sm:$0xff]
    %v3531 = vld [vmem:[%s3522 + $0x40] sm:$0xff]
    %v3532 = vld [vmem:[%s3522 + $0x48] sm:$0xff]
    %v3533 = vld [vmem:[%s3522 + $0x50] sm:$0xff]
    %v3534 = vld [vmem:[%s3522 + $0x58] sm:$0xff]
    %v3535 = vld [vmem:[%s3522 + $0x60] sm:$0xff]
    %v3536 = vld [vmem:[%s3522 + $0x68] sm:$0xff]
    %v3537 = vld [vmem:[%s3522 + $0x70] sm:$0xff]
    %v3538 = vld [vmem:[%s3522 + $0x78] sm:$0xff]
    %s3539 = scalar_lea.vmem %s12, 4
    %v3540 = vld [vmem:[%s3539] sm:$0x1]
    %v3541 = vld [vmem:[%s3539 + $0x1] sm:$0x1]
    %v3542 = vld [vmem:[%s3539 + $0x2] sm:$0x1]
    %v3543 = vld [vmem:[%s3539 + $0x3] sm:$0x1]
    %v3548 = vlaneseq
    %v3549 = vshrl.u32 %v3548, 7
    %v3550 = vsub.s32 0, %v3549
    %v3551 = vrot.slane %v3540, %v3550
    %v3552 = vlaneseq
    %v3553 = vshrl.u32 %v3552, 7
    %v3554 = vsub.s32 0, %v3553
    %v3555 = vrot.slane %v3541, %v3554
    %v3556 = vlaneseq
    %v3557 = vshrl.u32 %v3556, 7
    %v3558 = vsub.s32 0, %v3557
    %v3559 = vrot.slane %v3542, %v3558
    %v3560 = vlaneseq
    %v3561 = vshrl.u32 %v3560, 7
    %v3562 = vsub.s32 0, %v3561
    %v3563 = vrot.slane %v3543, %v3562
    %3568 = vmatprep.subr.mxu0 0.0
    %3569 = vmatpush1.msra.mxu0 0.0
    %3570 = vmatprep.subr.mxu0 0.0
    %3571 = vmatpush1.msra.mxu0 0.0
    %3572 = vmatprep.subr.mxu0 0.0
    %3573 = vmatpush1.msra.mxu0 0.0
    %3574 = vmatprep.subr.mxu0 0.0
    %3575 = vmatpush1.msra.mxu0 0.0
    %3576 = vmatprep.subr.mxu0 0.0
    %3577 = vmatpush1.msra.mxu0 0.0
    %3578 = vmatprep.subr.mxu0 0.0
    %3579 = vmatpush1.msra.mxu0 0.0
    %3580 = vmatprep.subr.mxu0 0.0
    %3581 = vmatpush1.msra.mxu0 0.0
    %3582 = vmatprep.subr.mxu0 0.0
    %3583 = vmatpush1.msra.mxu0 0.0
    %3584 = vmatprep.subr.mxu0 0.0
    %3585 = vmatpush1.msra.mxu0 0.0
    %3586 = vmatprep.subr.mxu0 0.0
    %3587 = vmatpush1.msra.mxu0 0.0
    %3588 = vmatprep.subr.mxu0 0.0
    %3589 = vmatpush1.msra.mxu0 0.0
    %3590 = vmatprep.subr.mxu0 0.0
    %3591 = vmatpush1.msra.mxu0 0.0
    %3592 = vmatprep.subr.mxu0 0.0
    %3593 = vmatpush1.msra.mxu0 %v3526
    %3594 = vmatprep.subr.mxu0 0.0
    %3595 = vmatpush1.msra.mxu0 %v3525
    %3596 = vmatprep.subr.mxu0 0.0
    %3597 = vmatpush1.msra.mxu0 %v3524
    %3598 = vmatprep.subr.mxu0 0.0
    %3599 = vmatpush1.msra.mxu0 %v3523
    %3600 = vmatprep.subr.mxu0 0.0
    %3601 = vmatpush2.msra.mxu0 0.0
    %3602 = vmatprep.subr.mxu0 0.0
    %3603 = vmatpush2.msra.mxu0 0.0
    %3604 = vmatprep.subr.mxu0 0.0
    %3605 = vmatpush2.msra.mxu0 0.0
    %3606 = vmatprep.subr.mxu0 0.0
    %3607 = vmatpush2.msra.mxu0 0.0
    %3608 = vmatprep.subr.mxu0 0.0
    %3609 = vmatpush2.msra.mxu0 0.0
    %3610 = vmatprep.subr.mxu0 0.0
    %3611 = vmatpush2.msra.mxu0 0.0
    %3612 = vmatprep.subr.mxu0 0.0
    %3613 = vmatpush2.msra.mxu0 0.0
    %3614 = vmatprep.subr.mxu0 0.0
    %3615 = vmatpush2.msra.mxu0 0.0
    %3616 = vmatprep.subr.mxu0 0.0
    %3617 = vmatpush2.msra.mxu0 0.0
    %3618 = vmatprep.subr.mxu0 0.0
    %3619 = vmatpush2.msra.mxu0 0.0
    %3620 = vmatprep.subr.mxu0 0.0
    %3621 = vmatpush2.msra.mxu0 0.0
    %3622 = vmatprep.subr.mxu0 0.0
    %3623 = vmatpush2.msra.mxu0 0.0
    %3624 = vmatprep.subr.mxu0 0.0
    %3625 = vmatpush2.msra.mxu0 0.0
    %3626 = vmatprep.subr.mxu0 0.0
    %3627 = vmatpush2.msra.mxu0 0.0
    %3628 = vmatprep.subr.mxu0 0.0
    %3629 = vmatpush2.msra.mxu0 0.0
    %3630 = vmatprep.subr.mxu0 0.0
    %3631 = vmatpush2.msra.mxu0 0.0
    %3632 = vmatprep.mubr.f32.mxu0 0.0
    %3633 = vmatmul.mubr.f32.gmra.mxu0 %v2914
    %v3634 = vpop.f32.mrf.mxu0
    %v3635 = vadd.f32 %v3551, %v3634
    %v3636 = vpop.f32.mrf.mxu0
    %3637 = vdwg.mxu0
    %3638 = vmatprep.subr.mxu0 0.0
    %3639 = vmatpush1.msra.mxu0 0.0
    %3640 = vmatprep.subr.mxu0 0.0
    %3641 = vmatpush1.msra.mxu0 0.0
    %3642 = vmatprep.subr.mxu0 0.0
    %3643 = vmatpush1.msra.mxu0 0.0
    %3644 = vmatprep.subr.mxu0 0.0
    %3645 = vmatpush1.msra.mxu0 0.0
    %3646 = vmatprep.subr.mxu0 0.0
    %3647 = vmatpush1.msra.mxu0 0.0
    %3648 = vmatprep.subr.mxu0 0.0
    %3649 = vmatpush1.msra.mxu0 0.0
    %3650 = vmatprep.subr.mxu0 0.0
    %3651 = vmatpush1.msra.mxu0 0.0
    %3652 = vmatprep.subr.mxu0 0.0
    %3653 = vmatpush1.msra.mxu0 0.0
    %3654 = vmatprep.subr.mxu0 0.0
    %3655 = vmatpush1.msra.mxu0 0.0
    %3656 = vmatprep.subr.mxu0 0.0
    %3657 = vmatpush1.msra.mxu0 0.0
    %3658 = vmatprep.subr.mxu0 0.0
    %3659 = vmatpush1.msra.mxu0 0.0
    %3660 = vmatprep.subr.mxu0 0.0
    %3661 = vmatpush1.msra.mxu0 0.0
    %3662 = vmatprep.subr.mxu0 0.0
    %3663 = vmatpush1.msra.mxu0 %v3530
    %3664 = vmatprep.subr.mxu0 0.0
    %3665 = vmatpush1.msra.mxu0 %v3529
    %3666 = vmatprep.subr.mxu0 0.0
    %3667 = vmatpush1.msra.mxu0 %v3528
    %3668 = vmatprep.subr.mxu0 0.0
    %3669 = vmatpush1.msra.mxu0 %v3527
    %3670 = vmatprep.subr.mxu0 0.0
    %3671 = vmatpush2.msra.mxu0 0.0
    %3672 = vmatprep.subr.mxu0 0.0
    %3673 = vmatpush2.msra.mxu0 0.0
    %3674 = vmatprep.subr.mxu0 0.0
    %3675 = vmatpush2.msra.mxu0 0.0
    %3676 = vmatprep.subr.mxu0 0.0
    %3677 = vmatpush2.msra.mxu0 0.0
    %3678 = vmatprep.subr.mxu0 0.0
    %3679 = vmatpush2.msra.mxu0 0.0
    %3680 = vmatprep.subr.mxu0 0.0
    %3681 = vmatpush2.msra.mxu0 0.0
    %3682 = vmatprep.subr.mxu0 0.0
    %3683 = vmatpush2.msra.mxu0 0.0
    %3684 = vmatprep.subr.mxu0 0.0
    %3685 = vmatpush2.msra.mxu0 0.0
    %3686 = vmatprep.subr.mxu0 0.0
    %3687 = vmatpush2.msra.mxu0 0.0
    %3688 = vmatprep.subr.mxu0 0.0
    %3689 = vmatpush2.msra.mxu0 0.0
    %3690 = vmatprep.subr.mxu0 0.0
    %3691 = vmatpush2.msra.mxu0 0.0
    %3692 = vmatprep.subr.mxu0 0.0
    %3693 = vmatpush2.msra.mxu0 0.0
    %3694 = vmatprep.subr.mxu0 0.0
    %3695 = vmatpush2.msra.mxu0 0.0
    %3696 = vmatprep.subr.mxu0 0.0
    %3697 = vmatpush2.msra.mxu0 0.0
    %3698 = vmatprep.subr.mxu0 0.0
    %3699 = vmatpush2.msra.mxu0 0.0
    %3700 = vmatprep.subr.mxu0 0.0
    %3701 = vmatpush2.msra.mxu0 0.0
    %3702 = vmatprep.mubr.f32.mxu0 0.0
    %3703 = vmatmul.mubr.f32.gmra.mxu0 %v2914
    %v3704 = vpop.f32.mrf.mxu0
    %v3705 = vadd.f32 %v3555, %v3704
    %v3706 = vpop.f32.mrf.mxu0
    %3707 = vdwg.mxu0
    %3708 = vmatprep.subr.mxu0 0.0
    %3709 = vmatpush1.msra.mxu0 0.0
    %3710 = vmatprep.subr.mxu0 0.0
    %3711 = vmatpush1.msra.mxu0 0.0
    %3712 = vmatprep.subr.mxu0 0.0
    %3713 = vmatpush1.msra.mxu0 0.0
    %3714 = vmatprep.subr.mxu0 0.0
    %3715 = vmatpush1.msra.mxu0 0.0
    %3716 = vmatprep.subr.mxu0 0.0
    %3717 = vmatpush1.msra.mxu0 0.0
    %3718 = vmatprep.subr.mxu0 0.0
    %3719 = vmatpush1.msra.mxu0 0.0
    %3720 = vmatprep.subr.mxu0 0.0
    %3721 = vmatpush1.msra.mxu0 0.0
    %3722 = vmatprep.subr.mxu0 0.0
    %3723 = vmatpush1.msra.mxu0 0.0
    %3724 = vmatprep.subr.mxu0 0.0
    %3725 = vmatpush1.msra.mxu0 0.0
    %3726 = vmatprep.subr.mxu0 0.0
    %3727 = vmatpush1.msra.mxu0 0.0
    %3728 = vmatprep.subr.mxu0 0.0
    %3729 = vmatpush1.msra.mxu0 0.0
    %3730 = vmatprep.subr.mxu0 0.0
    %3731 = vmatpush1.msra.mxu0 0.0
    %3732 = vmatprep.subr.mxu0 0.0
    %3733 = vmatpush1.msra.mxu0 %v3534
    %3734 = vmatprep.subr.mxu0 0.0
    %3735 = vmatpush1.msra.mxu0 %v3533
    %3736 = vmatprep.subr.mxu0 0.0
    %3737 = vmatpush1.msra.mxu0 %v3532
    %3738 = vmatprep.subr.mxu0 0.0
    %3739 = vmatpush1.msra.mxu0 %v3531
    %3740 = vmatprep.subr.mxu0 0.0
    %3741 = vmatpush2.msra.mxu0 0.0
    %3742 = vmatprep.subr.mxu0 0.0
    %3743 = vmatpush2.msra.mxu0 0.0
    %3744 = vmatprep.subr.mxu0 0.0
    %3745 = vmatpush2.msra.mxu0 0.0
    %3746 = vmatprep.subr.mxu0 0.0
    %3747 = vmatpush2.msra.mxu0 0.0
    %3748 = vmatprep.subr.mxu0 0.0
    %3749 = vmatpush2.msra.mxu0 0.0
    %3750 = vmatprep.subr.mxu0 0.0
    %3751 = vmatpush2.msra.mxu0 0.0
    %3752 = vmatprep.subr.mxu0 0.0
    %3753 = vmatpush2.msra.mxu0 0.0
    %3754 = vmatprep.subr.mxu0 0.0
    %3755 = vmatpush2.msra.mxu0 0.0
    %3756 = vmatprep.subr.mxu0 0.0
    %3757 = vmatpush2.msra.mxu0 0.0
    %3758 = vmatprep.subr.mxu0 0.0
    %3759 = vmatpush2.msra.mxu0 0.0
    %3760 = vmatprep.subr.mxu0 0.0
    %3761 = vmatpush2.msra.mxu0 0.0
    %3762 = vmatprep.subr.mxu0 0.0
    %3763 = vmatpush2.msra.mxu0 0.0
    %3764 = vmatprep.subr.mxu0 0.0
    %3765 = vmatpush2.msra.mxu0 0.0
    %3766 = vmatprep.subr.mxu0 0.0
    %3767 = vmatpush2.msra.mxu0 0.0
    %3768 = vmatprep.subr.mxu0 0.0
    %3769 = vmatpush2.msra.mxu0 0.0
    %3770 = vmatprep.subr.mxu0 0.0
    %3771 = vmatpush2.msra.mxu0 0.0
    %3772 = vmatprep.mubr.f32.mxu0 0.0
    %3773 = vmatmul.mubr.f32.gmra.mxu0 %v2914
    %v3774 = vpop.f32.mrf.mxu0
    %v3775 = vadd.f32 %v3559, %v3774
    %v3776 = vpop.f32.mrf.mxu0
    %3777 = vdwg.mxu0
    %3778 = vmatprep.subr.mxu0 0.0
    %3779 = vmatpush1.msra.mxu0 0.0
    %3780 = vmatprep.subr.mxu0 0.0
    %3781 = vmatpush1.msra.mxu0 0.0
    %3782 = vmatprep.subr.mxu0 0.0
    %3783 = vmatpush1.msra.mxu0 0.0
    %3784 = vmatprep.subr.mxu0 0.0
    %3785 = vmatpush1.msra.mxu0 0.0
    %3786 = vmatprep.subr.mxu0 0.0
    %3787 = vmatpush1.msra.mxu0 0.0
    %3788 = vmatprep.subr.mxu0 0.0
    %3789 = vmatpush1.msra.mxu0 0.0
    %3790 = vmatprep.subr.mxu0 0.0
    %3791 = vmatpush1.msra.mxu0 0.0
    %3792 = vmatprep.subr.mxu0 0.0
    %3793 = vmatpush1.msra.mxu0 0.0
    %3794 = vmatprep.subr.mxu0 0.0
    %3795 = vmatpush1.msra.mxu0 0.0
    %3796 = vmatprep.subr.mxu0 0.0
    %3797 = vmatpush1.msra.mxu0 0.0
    %3798 = vmatprep.subr.mxu0 0.0
    %3799 = vmatpush1.msra.mxu0 0.0
    %3800 = vmatprep.subr.mxu0 0.0
    %3801 = vmatpush1.msra.mxu0 0.0
    %3802 = vmatprep.subr.mxu0 0.0
    %3803 = vmatpush1.msra.mxu0 %v3538
    %3804 = vmatprep.subr.mxu0 0.0
    %3805 = vmatpush1.msra.mxu0 %v3537
    %3806 = vmatprep.subr.mxu0 0.0
    %3807 = vmatpush1.msra.mxu0 %v3536
    %3808 = vmatprep.subr.mxu0 0.0
    %3809 = vmatpush1.msra.mxu0 %v3535
    %3810 = vmatprep.subr.mxu0 0.0
    %3811 = vmatpush2.msra.mxu0 0.0
    %3812 = vmatprep.subr.mxu0 0.0
    %3813 = vmatpush2.msra.mxu0 0.0
    %3814 = vmatprep.subr.mxu0 0.0
    %3815 = vmatpush2.msra.mxu0 0.0
    %3816 = vmatprep.subr.mxu0 0.0
    %3817 = vmatpush2.msra.mxu0 0.0
    %3818 = vmatprep.subr.mxu0 0.0
    %3819 = vmatpush2.msra.mxu0 0.0
    %3820 = vmatprep.subr.mxu0 0.0
    %3821 = vmatpush2.msra.mxu0 0.0
    %3822 = vmatprep.subr.mxu0 0.0
    %3823 = vmatpush2.msra.mxu0 0.0
    %3824 = vmatprep.subr.mxu0 0.0
    %3825 = vmatpush2.msra.mxu0 0.0
    %3826 = vmatprep.subr.mxu0 0.0
    %3827 = vmatpush2.msra.mxu0 0.0
    %3828 = vmatprep.subr.mxu0 0.0
    %3829 = vmatpush2.msra.mxu0 0.0
    %3830 = vmatprep.subr.mxu0 0.0
    %3831 = vmatpush2.msra.mxu0 0.0
    %3832 = vmatprep.subr.mxu0 0.0
    %3833 = vmatpush2.msra.mxu0 0.0
    %3834 = vmatprep.subr.mxu0 0.0
    %3835 = vmatpush2.msra.mxu0 0.0
    %3836 = vmatprep.subr.mxu0 0.0
    %3837 = vmatpush2.msra.mxu0 0.0
    %3838 = vmatprep.subr.mxu0 0.0
    %3839 = vmatpush2.msra.mxu0 0.0
    %3840 = vmatprep.subr.mxu0 0.0
    %3841 = vmatpush2.msra.mxu0 0.0
    %3842 = vmatprep.mubr.f32.mxu0 0.0
    %3843 = vmatmul.mubr.f32.gmra.mxu0 %v2914
    %v3844 = vpop.f32.mrf.mxu0
    %v3845 = vadd.f32 %v3563, %v3844
    %v3846 = vpop.f32.mrf.mxu0
    %3847 = vdwg.mxu0
    %v3849 = vsel %vm1083, %v2983, 0
    %3851 = vmatprep.subr.mxu0 0.0
    %3852 = vmatpush1.msra.mxu0 0.0
    %3853 = vmatprep.subr.mxu0 0.0
    %3854 = vmatpush1.msra.mxu0 0.0
    %3855 = vmatprep.subr.mxu0 0.0
    %3856 = vmatpush1.msra.mxu0 0.0
    %3857 = vmatprep.subr.mxu0 0.0
    %3858 = vmatpush1.msra.mxu0 0.0
    %3859 = vmatprep.subr.mxu0 0.0
    %3860 = vmatpush1.msra.mxu0 0.0
    %3861 = vmatprep.subr.mxu0 0.0
    %3862 = vmatpush1.msra.mxu0 0.0
    %3863 = vmatprep.subr.mxu0 0.0
    %3864 = vmatpush1.msra.mxu0 0.0
    %3865 = vmatprep.subr.mxu0 0.0
    %3866 = vmatpush1.msra.mxu0 0.0
    %3867 = vmatprep.subr.mxu0 0.0
    %3868 = vmatpush1.msra.mxu0 0.0
    %3869 = vmatprep.subr.mxu0 0.0
    %3870 = vmatpush1.msra.mxu0 0.0
    %3871 = vmatprep.subr.mxu0 0.0
    %3872 = vmatpush1.msra.mxu0 0.0
    %3873 = vmatprep.subr.mxu0 0.0
    %3874 = vmatpush1.msra.mxu0 0.0
    %3875 = vmatprep.subr.mxu0 0.0
    %3876 = vmatpush1.msra.mxu0 0.0
    %3877 = vmatprep.subr.mxu0 0.0
    %3878 = vmatpush1.msra.mxu0 0.0
    %3879 = vmatprep.subr.mxu0 0.0
    %3880 = vmatpush1.msra.mxu0 0.0
    %3881 = vmatprep.subr.mxu0 0.0
    %3882 = vmatpush1.msra.mxu0 %v72
    %3883 = vmatprep.subr.mxu0 0.0
    %3884 = vmatpush2.msra.mxu0 0.0
    %3885 = vmatprep.subr.mxu0 0.0
    %3886 = vmatpush2.msra.mxu0 0.0
    %3887 = vmatprep.subr.mxu0 0.0
    %3888 = vmatpush2.msra.mxu0 0.0
    %3889 = vmatprep.subr.mxu0 0.0
    %3890 = vmatpush2.msra.mxu0 0.0
    %3891 = vmatprep.subr.mxu0 0.0
    %3892 = vmatpush2.msra.mxu0 0.0
    %3893 = vmatprep.subr.mxu0 0.0
    %3894 = vmatpush2.msra.mxu0 0.0
    %3895 = vmatprep.subr.mxu0 0.0
    %3896 = vmatpush2.msra.mxu0 0.0
    %3897 = vmatprep.subr.mxu0 0.0
    %3898 = vmatpush2.msra.mxu0 0.0
    %3899 = vmatprep.subr.mxu0 0.0
    %3900 = vmatpush2.msra.mxu0 0.0
    %3901 = vmatprep.subr.mxu0 0.0
    %3902 = vmatpush2.msra.mxu0 0.0
    %3903 = vmatprep.subr.mxu0 0.0
    %3904 = vmatpush2.msra.mxu0 0.0
    %3905 = vmatprep.subr.mxu0 0.0
    %3906 = vmatpush2.msra.mxu0 0.0
    %3907 = vmatprep.subr.mxu0 0.0
    %3908 = vmatpush2.msra.mxu0 0.0
    %3909 = vmatprep.subr.mxu0 0.0
    %3910 = vmatpush2.msra.mxu0 0.0
    %3911 = vmatprep.subr.mxu0 0.0
    %3912 = vmatpush2.msra.mxu0 0.0
    %3913 = vmatprep.subr.mxu0 0.0
    %3914 = vmatpush2.msra.mxu0 0.0
    %3915 = vmatprep.mubr.f32.mxu0 0.0
    %3916 = vmatmul.mubr.f32.gmra.mxu0 %v3849
    %v3917 = vpop.f32.mrf.mxu0
    %v3918 = vadd.f32 0.0, %v3917
    %v3919 = vpop.f32.mrf.mxu0
    %3920 = vdwg.mxu0
    %v3922 = vsel %vm1083, %v3053, 0
    %3924 = vmatprep.subr.mxu0 0.0
    %3925 = vmatpush1.msra.mxu0 0.0
    %3926 = vmatprep.subr.mxu0 0.0
    %3927 = vmatpush1.msra.mxu0 0.0
    %3928 = vmatprep.subr.mxu0 0.0
    %3929 = vmatpush1.msra.mxu0 0.0
    %3930 = vmatprep.subr.mxu0 0.0
    %3931 = vmatpush1.msra.mxu0 0.0
    %3932 = vmatprep.subr.mxu0 0.0
    %3933 = vmatpush1.msra.mxu0 0.0
    %3934 = vmatprep.subr.mxu0 0.0
    %3935 = vmatpush1.msra.mxu0 0.0
    %3936 = vmatprep.subr.mxu0 0.0
    %3937 = vmatpush1.msra.mxu0 0.0
    %3938 = vmatprep.subr.mxu0 0.0
    %3939 = vmatpush1.msra.mxu0 0.0
    %3940 = vmatprep.subr.mxu0 0.0
    %3941 = vmatpush1.msra.mxu0 0.0
    %3942 = vmatprep.subr.mxu0 0.0
    %3943 = vmatpush1.msra.mxu0 0.0
    %3944 = vmatprep.subr.mxu0 0.0
    %3945 = vmatpush1.msra.mxu0 0.0
    %3946 = vmatprep.subr.mxu0 0.0
    %3947 = vmatpush1.msra.mxu0 0.0
    %3948 = vmatprep.subr.mxu0 0.0
    %3949 = vmatpush1.msra.mxu0 0.0
    %3950 = vmatprep.subr.mxu0 0.0
    %3951 = vmatpush1.msra.mxu0 0.0
    %3952 = vmatprep.subr.mxu0 0.0
    %3953 = vmatpush1.msra.mxu0 0.0
    %3954 = vmatprep.subr.mxu0 0.0
    %3955 = vmatpush1.msra.mxu0 %v73
    %3956 = vmatprep.subr.mxu0 0.0
    %3957 = vmatpush2.msra.mxu0 0.0
    %3958 = vmatprep.subr.mxu0 0.0
    %3959 = vmatpush2.msra.mxu0 0.0
    %3960 = vmatprep.subr.mxu0 0.0
    %3961 = vmatpush2.msra.mxu0 0.0
    %3962 = vmatprep.subr.mxu0 0.0
    %3963 = vmatpush2.msra.mxu0 0.0
    %3964 = vmatprep.subr.mxu0 0.0
    %3965 = vmatpush2.msra.mxu0 0.0
    %3966 = vmatprep.subr.mxu0 0.0
    %3967 = vmatpush2.msra.mxu0 0.0
    %3968 = vmatprep.subr.mxu0 0.0
    %3969 = vmatpush2.msra.mxu0 0.0
    %3970 = vmatprep.subr.mxu0 0.0
    %3971 = vmatpush2.msra.mxu0 0.0
    %3972 = vmatprep.subr.mxu0 0.0
    %3973 = vmatpush2.msra.mxu0 0.0
    %3974 = vmatprep.subr.mxu0 0.0
    %3975 = vmatpush2.msra.mxu0 0.0
    %3976 = vmatprep.subr.mxu0 0.0
    %3977 = vmatpush2.msra.mxu0 0.0
    %3978 = vmatprep.subr.mxu0 0.0
    %3979 = vmatpush2.msra.mxu0 0.0
    %3980 = vmatprep.subr.mxu0 0.0
    %3981 = vmatpush2.msra.mxu0 0.0
    %3982 = vmatprep.subr.mxu0 0.0
    %3983 = vmatpush2.msra.mxu0 0.0
    %3984 = vmatprep.subr.mxu0 0.0
    %3985 = vmatpush2.msra.mxu0 0.0
    %3986 = vmatprep.subr.mxu0 0.0
    %3987 = vmatpush2.msra.mxu0 0.0
    %3988 = vmatprep.mubr.f32.mxu0 0.0
    %3989 = vmatmul.mubr.f32.gmra.mxu0 %v3922
    %v3990 = vpop.f32.mrf.mxu0
    %v3991 = vadd.f32 0.0, %v3990
    %v3992 = vpop.f32.mrf.mxu0
    %3993 = vdwg.mxu0
    %v3995 = vsel %vm1083, %v3123, 0
    %3997 = vmatprep.subr.mxu0 0.0
    %3998 = vmatpush1.msra.mxu0 0.0
    %3999 = vmatprep.subr.mxu0 0.0
    %4000 = vmatpush1.msra.mxu0 0.0
    %4001 = vmatprep.subr.mxu0 0.0
    %4002 = vmatpush1.msra.mxu0 0.0
    %4003 = vmatprep.subr.mxu0 0.0
    %4004 = vmatpush1.msra.mxu0 0.0
    %4005 = vmatprep.subr.mxu0 0.0
    %4006 = vmatpush1.msra.mxu0 0.0
    %4007 = vmatprep.subr.mxu0 0.0
    %4008 = vmatpush1.msra.mxu0 0.0
    %4009 = vmatprep.subr.mxu0 0.0
    %4010 = vmatpush1.msra.mxu0 0.0
    %4011 = vmatprep.subr.mxu0 0.0
    %4012 = vmatpush1.msra.mxu0 0.0
    %4013 = vmatprep.subr.mxu0 0.0
    %4014 = vmatpush1.msra.mxu0 0.0
    %4015 = vmatprep.subr.mxu0 0.0
    %4016 = vmatpush1.msra.mxu0 0.0
    %4017 = vmatprep.subr.mxu0 0.0
    %4018 = vmatpush1.msra.mxu0 0.0
    %4019 = vmatprep.subr.mxu0 0.0
    %4020 = vmatpush1.msra.mxu0 0.0
    %4021 = vmatprep.subr.mxu0 0.0
    %4022 = vmatpush1.msra.mxu0 0.0
    %4023 = vmatprep.subr.mxu0 0.0
    %4024 = vmatpush1.msra.mxu0 0.0
    %4025 = vmatprep.subr.mxu0 0.0
    %4026 = vmatpush1.msra.mxu0 0.0
    %4027 = vmatprep.subr.mxu0 0.0
    %4028 = vmatpush1.msra.mxu0 %v74
    %4029 = vmatprep.subr.mxu0 0.0
    %4030 = vmatpush2.msra.mxu0 0.0
    %4031 = vmatprep.subr.mxu0 0.0
    %4032 = vmatpush2.msra.mxu0 0.0
    %4033 = vmatprep.subr.mxu0 0.0
    %4034 = vmatpush2.msra.mxu0 0.0
    %4035 = vmatprep.subr.mxu0 0.0
    %4036 = vmatpush2.msra.mxu0 0.0
    %4037 = vmatprep.subr.mxu0 0.0
    %4038 = vmatpush2.msra.mxu0 0.0
    %4039 = vmatprep.subr.mxu0 0.0
    %4040 = vmatpush2.msra.mxu0 0.0
    %4041 = vmatprep.subr.mxu0 0.0
    %4042 = vmatpush2.msra.mxu0 0.0
    %4043 = vmatprep.subr.mxu0 0.0
    %4044 = vmatpush2.msra.mxu0 0.0
    %4045 = vmatprep.subr.mxu0 0.0
    %4046 = vmatpush2.msra.mxu0 0.0
    %4047 = vmatprep.subr.mxu0 0.0
    %4048 = vmatpush2.msra.mxu0 0.0
    %4049 = vmatprep.subr.mxu0 0.0
    %4050 = vmatpush2.msra.mxu0 0.0
    %4051 = vmatprep.subr.mxu0 0.0
    %4052 = vmatpush2.msra.mxu0 0.0
    %4053 = vmatprep.subr.mxu0 0.0
    %4054 = vmatpush2.msra.mxu0 0.0
    %4055 = vmatprep.subr.mxu0 0.0
    %4056 = vmatpush2.msra.mxu0 0.0
    %4057 = vmatprep.subr.mxu0 0.0
    %4058 = vmatpush2.msra.mxu0 0.0
    %4059 = vmatprep.subr.mxu0 0.0
    %4060 = vmatpush2.msra.mxu0 0.0
    %4061 = vmatprep.mubr.f32.mxu0 0.0
    %4062 = vmatmul.mubr.f32.gmra.mxu0 %v3995
    %v4063 = vpop.f32.mrf.mxu0
    %v4064 = vadd.f32 0.0, %v4063
    %v4065 = vpop.f32.mrf.mxu0
    %4066 = vdwg.mxu0
    %v4068 = vsel %vm1083, %v3193, 0
    %4070 = vmatprep.subr.mxu0 0.0
    %4071 = vmatpush1.msra.mxu0 0.0
    %4072 = vmatprep.subr.mxu0 0.0
    %4073 = vmatpush1.msra.mxu0 0.0
    %4074 = vmatprep.subr.mxu0 0.0
    %4075 = vmatpush1.msra.mxu0 0.0
    %4076 = vmatprep.subr.mxu0 0.0
    %4077 = vmatpush1.msra.mxu0 0.0
    %4078 = vmatprep.subr.mxu0 0.0
    %4079 = vmatpush1.msra.mxu0 0.0
    %4080 = vmatprep.subr.mxu0 0.0
    %4081 = vmatpush1.msra.mxu0 0.0
    %4082 = vmatprep.subr.mxu0 0.0
    %4083 = vmatpush1.msra.mxu0 0.0
    %4084 = vmatprep.subr.mxu0 0.0
    %4085 = vmatpush1.msra.mxu0 0.0
    %4086 = vmatprep.subr.mxu0 0.0
    %4087 = vmatpush1.msra.mxu0 0.0
    %4088 = vmatprep.subr.mxu0 0.0
    %4089 = vmatpush1.msra.mxu0 0.0
    %4090 = vmatprep.subr.mxu0 0.0
    %4091 = vmatpush1.msra.mxu0 0.0
    %4092 = vmatprep.subr.mxu0 0.0
    %4093 = vmatpush1.msra.mxu0 0.0
    %4094 = vmatprep.subr.mxu0 0.0
    %4095 = vmatpush1.msra.mxu0 0.0
    %4096 = vmatprep.subr.mxu0 0.0
    %4097 = vmatpush1.msra.mxu0 0.0
    %4098 = vmatprep.subr.mxu0 0.0
    %4099 = vmatpush1.msra.mxu0 0.0
    %4100 = vmatprep.subr.mxu0 0.0
    %4101 = vmatpush1.msra.mxu0 %v75
    %4102 = vmatprep.subr.mxu0 0.0
    %4103 = vmatpush2.msra.mxu0 0.0
    %4104 = vmatprep.subr.mxu0 0.0
    %4105 = vmatpush2.msra.mxu0 0.0
    %4106 = vmatprep.subr.mxu0 0.0
    %4107 = vmatpush2.msra.mxu0 0.0
    %4108 = vmatprep.subr.mxu0 0.0
    %4109 = vmatpush2.msra.mxu0 0.0
    %4110 = vmatprep.subr.mxu0 0.0
    %4111 = vmatpush2.msra.mxu0 0.0
    %4112 = vmatprep.subr.mxu0 0.0
    %4113 = vmatpush2.msra.mxu0 0.0
    %4114 = vmatprep.subr.mxu0 0.0
    %4115 = vmatpush2.msra.mxu0 0.0
    %4116 = vmatprep.subr.mxu0 0.0
    %4117 = vmatpush2.msra.mxu0 0.0
    %4118 = vmatprep.subr.mxu0 0.0
    %4119 = vmatpush2.msra.mxu0 0.0
    %4120 = vmatprep.subr.mxu0 0.0
    %4121 = vmatpush2.msra.mxu0 0.0
    %4122 = vmatprep.subr.mxu0 0.0
    %4123 = vmatpush2.msra.mxu0 0.0
    %4124 = vmatprep.subr.mxu0 0.0
    %4125 = vmatpush2.msra.mxu0 0.0
    %4126 = vmatprep.subr.mxu0 0.0
    %4127 = vmatpush2.msra.mxu0 0.0
    %4128 = vmatprep.subr.mxu0 0.0
    %4129 = vmatpush2.msra.mxu0 0.0
    %4130 = vmatprep.subr.mxu0 0.0
    %4131 = vmatpush2.msra.mxu0 0.0
    %4132 = vmatprep.subr.mxu0 0.0
    %4133 = vmatpush2.msra.mxu0 0.0
    %4134 = vmatprep.mubr.f32.mxu0 0.0
    %4135 = vmatmul.mubr.f32.gmra.mxu0 %v4068
    %v4136 = vpop.f32.mrf.mxu0
    %v4137 = vadd.f32 0.0, %v4136
    %v4138 = vpop.f32.mrf.mxu0
    %4139 = vdwg.mxu0
    %v4140 = vmul.f32 %v2983, %v70
    %v4141 = vmul.f32 %v3053, %v70
    %v4142 = vmul.f32 %v3123, %v70
    %v4143 = vmul.f32 %v3193, %v70
    %v4144 = vmul.f32 %v3918, %v71
    %v4145 = vmul.f32 %v3991, %v71
    %v4146 = vmul.f32 %v4064, %v71
    %v4147 = vmul.f32 %v4137, %v71
    %v4148 = vadd.f32 %v4140, %v4144
    %v4149 = vadd.f32 %v4141, %v4145
    %v4150 = vadd.f32 %v4142, %v4146
    %v4151 = vadd.f32 %v4143, %v4147
    %v4153 = vsel %vm1083, %v3309, 0
    %4155 = vmatprep.subr.mxu0 0.0
    %4156 = vmatpush1.msra.mxu0 0.0
    %4157 = vmatprep.subr.mxu0 0.0
    %4158 = vmatpush1.msra.mxu0 0.0
    %4159 = vmatprep.subr.mxu0 0.0
    %4160 = vmatpush1.msra.mxu0 0.0
    %4161 = vmatprep.subr.mxu0 0.0
    %4162 = vmatpush1.msra.mxu0 0.0
    %4163 = vmatprep.subr.mxu0 0.0
    %4164 = vmatpush1.msra.mxu0 0.0
    %4165 = vmatprep.subr.mxu0 0.0
    %4166 = vmatpush1.msra.mxu0 0.0
    %4167 = vmatprep.subr.mxu0 0.0
    %4168 = vmatpush1.msra.mxu0 0.0
    %4169 = vmatprep.subr.mxu0 0.0
    %4170 = vmatpush1.msra.mxu0 0.0
    %4171 = vmatprep.subr.mxu0 0.0
    %4172 = vmatpush1.msra.mxu0 0.0
    %4173 = vmatprep.subr.mxu0 0.0
    %4174 = vmatpush1.msra.mxu0 0.0
    %4175 = vmatprep.subr.mxu0 0.0
    %4176 = vmatpush1.msra.mxu0 0.0
    %4177 = vmatprep.subr.mxu0 0.0
    %4178 = vmatpush1.msra.mxu0 0.0
    %4179 = vmatprep.subr.mxu0 0.0
    %4180 = vmatpush1.msra.mxu0 0.0
    %4181 = vmatprep.subr.mxu0 0.0
    %4182 = vmatpush1.msra.mxu0 0.0
    %4183 = vmatprep.subr.mxu0 0.0
    %4184 = vmatpush1.msra.mxu0 0.0
    %4185 = vmatprep.subr.mxu0 0.0
    %4186 = vmatpush1.msra.mxu0 %v72
    %4187 = vmatprep.subr.mxu0 0.0
    %4188 = vmatpush2.msra.mxu0 0.0
    %4189 = vmatprep.subr.mxu0 0.0
    %4190 = vmatpush2.msra.mxu0 0.0
    %4191 = vmatprep.subr.mxu0 0.0
    %4192 = vmatpush2.msra.mxu0 0.0
    %4193 = vmatprep.subr.mxu0 0.0
    %4194 = vmatpush2.msra.mxu0 0.0
    %4195 = vmatprep.subr.mxu0 0.0
    %4196 = vmatpush2.msra.mxu0 0.0
    %4197 = vmatprep.subr.mxu0 0.0
    %4198 = vmatpush2.msra.mxu0 0.0
    %4199 = vmatprep.subr.mxu0 0.0
    %4200 = vmatpush2.msra.mxu0 0.0
    %4201 = vmatprep.subr.mxu0 0.0
    %4202 = vmatpush2.msra.mxu0 0.0
    %4203 = vmatprep.subr.mxu0 0.0
    %4204 = vmatpush2.msra.mxu0 0.0
    %4205 = vmatprep.subr.mxu0 0.0
    %4206 = vmatpush2.msra.mxu0 0.0
    %4207 = vmatprep.subr.mxu0 0.0
    %4208 = vmatpush2.msra.mxu0 0.0
    %4209 = vmatprep.subr.mxu0 0.0
    %4210 = vmatpush2.msra.mxu0 0.0
    %4211 = vmatprep.subr.mxu0 0.0
    %4212 = vmatpush2.msra.mxu0 0.0
    %4213 = vmatprep.subr.mxu0 0.0
    %4214 = vmatpush2.msra.mxu0 0.0
    %4215 = vmatprep.subr.mxu0 0.0
    %4216 = vmatpush2.msra.mxu0 0.0
    %4217 = vmatprep.subr.mxu0 0.0
    %4218 = vmatpush2.msra.mxu0 0.0
    %4219 = vmatprep.mubr.f32.mxu0 0.0
    %4220 = vmatmul.mubr.f32.gmra.mxu0 %v4153
    %v4221 = vpop.f32.mrf.mxu0
    %v4222 = vadd.f32 0.0, %v4221
    %v4223 = vpop.f32.mrf.mxu0
    %4224 = vdwg.mxu0
    %v4226 = vsel %vm1083, %v3379, 0
    %4228 = vmatprep.subr.mxu0 0.0
    %4229 = vmatpush1.msra.mxu0 0.0
    %4230 = vmatprep.subr.mxu0 0.0
    %4231 = vmatpush1.msra.mxu0 0.0
    %4232 = vmatprep.subr.mxu0 0.0
    %4233 = vmatpush1.msra.mxu0 0.0
    %4234 = vmatprep.subr.mxu0 0.0
    %4235 = vmatpush1.msra.mxu0 0.0
    %4236 = vmatprep.subr.mxu0 0.0
    %4237 = vmatpush1.msra.mxu0 0.0
    %4238 = vmatprep.subr.mxu0 0.0
    %4239 = vmatpush1.msra.mxu0 0.0
    %4240 = vmatprep.subr.mxu0 0.0
    %4241 = vmatpush1.msra.mxu0 0.0
    %4242 = vmatprep.subr.mxu0 0.0
    %4243 = vmatpush1.msra.mxu0 0.0
    %4244 = vmatprep.subr.mxu0 0.0
    %4245 = vmatpush1.msra.mxu0 0.0
    %4246 = vmatprep.subr.mxu0 0.0
    %4247 = vmatpush1.msra.mxu0 0.0
    %4248 = vmatprep.subr.mxu0 0.0
    %4249 = vmatpush1.msra.mxu0 0.0
    %4250 = vmatprep.subr.mxu0 0.0
    %4251 = vmatpush1.msra.mxu0 0.0
    %4252 = vmatprep.subr.mxu0 0.0
    %4253 = vmatpush1.msra.mxu0 0.0
    %4254 = vmatprep.subr.mxu0 0.0
    %4255 = vmatpush1.msra.mxu0 0.0
    %4256 = vmatprep.subr.mxu0 0.0
    %4257 = vmatpush1.msra.mxu0 0.0
    %4258 = vmatprep.subr.mxu0 0.0
    %4259 = vmatpush1.msra.mxu0 %v73
    %4260 = vmatprep.subr.mxu0 0.0
    %4261 = vmatpush2.msra.mxu0 0.0
    %4262 = vmatprep.subr.mxu0 0.0
    %4263 = vmatpush2.msra.mxu0 0.0
    %4264 = vmatprep.subr.mxu0 0.0
    %4265 = vmatpush2.msra.mxu0 0.0
    %4266 = vmatprep.subr.mxu0 0.0
    %4267 = vmatpush2.msra.mxu0 0.0
    %4268 = vmatprep.subr.mxu0 0.0
    %4269 = vmatpush2.msra.mxu0 0.0
    %4270 = vmatprep.subr.mxu0 0.0
    %4271 = vmatpush2.msra.mxu0 0.0
    %4272 = vmatprep.subr.mxu0 0.0
    %4273 = vmatpush2.msra.mxu0 0.0
    %4274 = vmatprep.subr.mxu0 0.0
    %4275 = vmatpush2.msra.mxu0 0.0
    %4276 = vmatprep.subr.mxu0 0.0
    %4277 = vmatpush2.msra.mxu0 0.0
    %4278 = vmatprep.subr.mxu0 0.0
    %4279 = vmatpush2.msra.mxu0 0.0
    %4280 = vmatprep.subr.mxu0 0.0
    %4281 = vmatpush2.msra.mxu0 0.0
    %4282 = vmatprep.subr.mxu0 0.0
    %4283 = vmatpush2.msra.mxu0 0.0
    %4284 = vmatprep.subr.mxu0 0.0
    %4285 = vmatpush2.msra.mxu0 0.0
    %4286 = vmatprep.subr.mxu0 0.0
    %4287 = vmatpush2.msra.mxu0 0.0
    %4288 = vmatprep.subr.mxu0 0.0
    %4289 = vmatpush2.msra.mxu0 0.0
    %4290 = vmatprep.subr.mxu0 0.0
    %4291 = vmatpush2.msra.mxu0 0.0
    %4292 = vmatprep.mubr.f32.mxu0 0.0
    %4293 = vmatmul.mubr.f32.gmra.mxu0 %v4226
    %v4294 = vpop.f32.mrf.mxu0
    %v4295 = vadd.f32 0.0, %v4294
    %v4296 = vpop.f32.mrf.mxu0
    %4297 = vdwg.mxu0
    %v4299 = vsel %vm1083, %v3449, 0
    %4301 = vmatprep.subr.mxu0 0.0
    %4302 = vmatpush1.msra.mxu0 0.0
    %4303 = vmatprep.subr.mxu0 0.0
    %4304 = vmatpush1.msra.mxu0 0.0
    %4305 = vmatprep.subr.mxu0 0.0
    %4306 = vmatpush1.msra.mxu0 0.0
    %4307 = vmatprep.subr.mxu0 0.0
    %4308 = vmatpush1.msra.mxu0 0.0
    %4309 = vmatprep.subr.mxu0 0.0
    %4310 = vmatpush1.msra.mxu0 0.0
    %4311 = vmatprep.subr.mxu0 0.0
    %4312 = vmatpush1.msra.mxu0 0.0
    %4313 = vmatprep.subr.mxu0 0.0
    %4314 = vmatpush1.msra.mxu0 0.0
    %4315 = vmatprep.subr.mxu0 0.0
    %4316 = vmatpush1.msra.mxu0 0.0
    %4317 = vmatprep.subr.mxu0 0.0
    %4318 = vmatpush1.msra.mxu0 0.0
    %4319 = vmatprep.subr.mxu0 0.0
    %4320 = vmatpush1.msra.mxu0 0.0
    %4321 = vmatprep.subr.mxu0 0.0
    %4322 = vmatpush1.msra.mxu0 0.0
    %4323 = vmatprep.subr.mxu0 0.0
    %4324 = vmatpush1.msra.mxu0 0.0
    %4325 = vmatprep.subr.mxu0 0.0
    %4326 = vmatpush1.msra.mxu0 0.0
    %4327 = vmatprep.subr.mxu0 0.0
    %4328 = vmatpush1.msra.mxu0 0.0
    %4329 = vmatprep.subr.mxu0 0.0
    %4330 = vmatpush1.msra.mxu0 0.0
    %4331 = vmatprep.subr.mxu0 0.0
    %4332 = vmatpush1.msra.mxu0 %v74
    %4333 = vmatprep.subr.mxu0 0.0
    %4334 = vmatpush2.msra.mxu0 0.0
    %4335 = vmatprep.subr.mxu0 0.0
    %4336 = vmatpush2.msra.mxu0 0.0
    %4337 = vmatprep.subr.mxu0 0.0
    %4338 = vmatpush2.msra.mxu0 0.0
    %4339 = vmatprep.subr.mxu0 0.0
    %4340 = vmatpush2.msra.mxu0 0.0
    %4341 = vmatprep.subr.mxu0 0.0
    %4342 = vmatpush2.msra.mxu0 0.0
    %4343 = vmatprep.subr.mxu0 0.0
    %4344 = vmatpush2.msra.mxu0 0.0
    %4345 = vmatprep.subr.mxu0 0.0
    %4346 = vmatpush2.msra.mxu0 0.0
    %4347 = vmatprep.subr.mxu0 0.0
    %4348 = vmatpush2.msra.mxu0 0.0
    %4349 = vmatprep.subr.mxu0 0.0
    %4350 = vmatpush2.msra.mxu0 0.0
    %4351 = vmatprep.subr.mxu0 0.0
    %4352 = vmatpush2.msra.mxu0 0.0
    %4353 = vmatprep.subr.mxu0 0.0
    %4354 = vmatpush2.msra.mxu0 0.0
    %4355 = vmatprep.subr.mxu0 0.0
    %4356 = vmatpush2.msra.mxu0 0.0
    %4357 = vmatprep.subr.mxu0 0.0
    %4358 = vmatpush2.msra.mxu0 0.0
    %4359 = vmatprep.subr.mxu0 0.0
    %4360 = vmatpush2.msra.mxu0 0.0
    %4361 = vmatprep.subr.mxu0 0.0
    %4362 = vmatpush2.msra.mxu0 0.0
    %4363 = vmatprep.subr.mxu0 0.0
    %4364 = vmatpush2.msra.mxu0 0.0
    %4365 = vmatprep.mubr.f32.mxu0 0.0
    %4366 = vmatmul.mubr.f32.gmra.mxu0 %v4299
    %v4367 = vpop.f32.mrf.mxu0
    %v4368 = vadd.f32 0.0, %v4367
    %v4369 = vpop.f32.mrf.mxu0
    %4370 = vdwg.mxu0
    %v4372 = vsel %vm1083, %v3519, 0
    %4374 = vmatprep.subr.mxu0 0.0
    %4375 = vmatpush1.msra.mxu0 0.0
    %4376 = vmatprep.subr.mxu0 0.0
    %4377 = vmatpush1.msra.mxu0 0.0
    %4378 = vmatprep.subr.mxu0 0.0
    %4379 = vmatpush1.msra.mxu0 0.0
    %4380 = vmatprep.subr.mxu0 0.0
    %4381 = vmatpush1.msra.mxu0 0.0
    %4382 = vmatprep.subr.mxu0 0.0
    %4383 = vmatpush1.msra.mxu0 0.0
    %4384 = vmatprep.subr.mxu0 0.0
    %4385 = vmatpush1.msra.mxu0 0.0
    %4386 = vmatprep.subr.mxu0 0.0
    %4387 = vmatpush1.msra.mxu0 0.0
    %4388 = vmatprep.subr.mxu0 0.0
    %4389 = vmatpush1.msra.mxu0 0.0
    %4390 = vmatprep.subr.mxu0 0.0
    %4391 = vmatpush1.msra.mxu0 0.0
    %4392 = vmatprep.subr.mxu0 0.0
    %4393 = vmatpush1.msra.mxu0 0.0
    %4394 = vmatprep.subr.mxu0 0.0
    %4395 = vmatpush1.msra.mxu0 0.0
    %4396 = vmatprep.subr.mxu0 0.0
    %4397 = vmatpush1.msra.mxu0 0.0
    %4398 = vmatprep.subr.mxu0 0.0
    %4399 = vmatpush1.msra.mxu0 0.0
    %4400 = vmatprep.subr.mxu0 0.0
    %4401 = vmatpush1.msra.mxu0 0.0
    %4402 = vmatprep.subr.mxu0 0.0
    %4403 = vmatpush1.msra.mxu0 0.0
    %4404 = vmatprep.subr.mxu0 0.0
    %4405 = vmatpush1.msra.mxu0 %v75
    %4406 = vmatprep.subr.mxu0 0.0
    %4407 = vmatpush2.msra.mxu0 0.0
    %4408 = vmatprep.subr.mxu0 0.0
    %4409 = vmatpush2.msra.mxu0 0.0
    %4410 = vmatprep.subr.mxu0 0.0
    %4411 = vmatpush2.msra.mxu0 0.0
    %4412 = vmatprep.subr.mxu0 0.0
    %4413 = vmatpush2.msra.mxu0 0.0
    %4414 = vmatprep.subr.mxu0 0.0
    %4415 = vmatpush2.msra.mxu0 0.0
    %4416 = vmatprep.subr.mxu0 0.0
    %4417 = vmatpush2.msra.mxu0 0.0
    %4418 = vmatprep.subr.mxu0 0.0
    %4419 = vmatpush2.msra.mxu0 0.0
    %4420 = vmatprep.subr.mxu0 0.0
    %4421 = vmatpush2.msra.mxu0 0.0
    %4422 = vmatprep.subr.mxu0 0.0
    %4423 = vmatpush2.msra.mxu0 0.0
    %4424 = vmatprep.subr.mxu0 0.0
    %4425 = vmatpush2.msra.mxu0 0.0
    %4426 = vmatprep.subr.mxu0 0.0
    %4427 = vmatpush2.msra.mxu0 0.0
    %4428 = vmatprep.subr.mxu0 0.0
    %4429 = vmatpush2.msra.mxu0 0.0
    %4430 = vmatprep.subr.mxu0 0.0
    %4431 = vmatpush2.msra.mxu0 0.0
    %4432 = vmatprep.subr.mxu0 0.0
    %4433 = vmatpush2.msra.mxu0 0.0
    %4434 = vmatprep.subr.mxu0 0.0
    %4435 = vmatpush2.msra.mxu0 0.0
    %4436 = vmatprep.subr.mxu0 0.0
    %4437 = vmatpush2.msra.mxu0 0.0
    %4438 = vmatprep.mubr.f32.mxu0 0.0
    %4439 = vmatmul.mubr.f32.gmra.mxu0 %v4372
    %v4440 = vpop.f32.mrf.mxu0
    %v4441 = vadd.f32 0.0, %v4440
    %v4442 = vpop.f32.mrf.mxu0
    %4443 = vdwg.mxu0
    %v4444 = vmul.f32 %v3309, %v70
    %v4445 = vmul.f32 %v3379, %v70
    %v4446 = vmul.f32 %v3449, %v70
    %v4447 = vmul.f32 %v3519, %v70
    %v4448 = vmul.f32 %v4222, %v71
    %v4449 = vmul.f32 %v4295, %v71
    %v4450 = vmul.f32 %v4368, %v71
    %v4451 = vmul.f32 %v4441, %v71
    %v4452 = vadd.f32 %v4444, %v4448
    %v4453 = vadd.f32 %v4445, %v4449
    %v4454 = vadd.f32 %v4446, %v4450
    %v4455 = vadd.f32 %v4447, %v4451
    %v4457 = vsel %vm1083, %v4148, 0
    %v4460 = vsel %vm1083, %v4452, 0
    %4462 = vmatprep.subr.mxu0 0.0
    %4463 = vmatpush1.xpose.msra.mxu0 0.0
    %4464 = vmatprep.subr.mxu0 0.0
    %4465 = vmatpush1.xpose.msra.mxu0 0.0
    %4466 = vmatprep.subr.mxu0 0.0
    %4467 = vmatpush1.xpose.msra.mxu0 0.0
    %4468 = vmatprep.subr.mxu0 0.0
    %4469 = vmatpush1.xpose.msra.mxu0 0.0
    %4470 = vmatprep.subr.mxu0 0.0
    %4471 = vmatpush1.xpose.msra.mxu0 0.0
    %4472 = vmatprep.subr.mxu0 0.0
    %4473 = vmatpush1.xpose.msra.mxu0 0.0
    %4474 = vmatprep.subr.mxu0 0.0
    %4475 = vmatpush1.xpose.msra.mxu0 0.0
    %4476 = vmatprep.subr.mxu0 0.0
    %4477 = vmatpush1.xpose.msra.mxu0 0.0
    %4478 = vmatprep.subr.mxu0 0.0
    %4479 = vmatpush1.xpose.msra.mxu0 0.0
    %4480 = vmatprep.subr.mxu0 0.0
    %4481 = vmatpush1.xpose.msra.mxu0 0.0
    %4482 = vmatprep.subr.mxu0 0.0
    %4483 = vmatpush1.xpose.msra.mxu0 0.0
    %4484 = vmatprep.subr.mxu0 0.0
    %4485 = vmatpush1.xpose.msra.mxu0 0.0
    %4486 = vmatprep.subr.mxu0 0.0
    %4487 = vmatpush1.xpose.msra.mxu0 0.0
    %4488 = vmatprep.subr.mxu0 0.0
    %4489 = vmatpush1.xpose.msra.mxu0 0.0
    %4490 = vmatprep.subr.mxu0 0.0
    %4491 = vmatpush1.xpose.msra.mxu0 0.0
    %4492 = vmatprep.subr.mxu0 0.0
    %4493 = vmatpush1.xpose.msra.mxu0 %v4460
    %4494 = vmatprep.subr.mxu0 0.0
    %4495 = vmatpush2.xpose.msra.mxu0 0.0
    %4496 = vmatprep.subr.mxu0 0.0
    %4497 = vmatpush2.xpose.msra.mxu0 0.0
    %4498 = vmatprep.subr.mxu0 0.0
    %4499 = vmatpush2.xpose.msra.mxu0 0.0
    %4500 = vmatprep.subr.mxu0 0.0
    %4501 = vmatpush2.xpose.msra.mxu0 0.0
    %4502 = vmatprep.subr.mxu0 0.0
    %4503 = vmatpush2.xpose.msra.mxu0 0.0
    %4504 = vmatprep.subr.mxu0 0.0
    %4505 = vmatpush2.xpose.msra.mxu0 0.0
    %4506 = vmatprep.subr.mxu0 0.0
    %4507 = vmatpush2.xpose.msra.mxu0 0.0
    %4508 = vmatprep.subr.mxu0 0.0
    %4509 = vmatpush2.xpose.msra.mxu0 0.0
    %4510 = vmatprep.subr.mxu0 0.0
    %4511 = vmatpush2.xpose.msra.mxu0 0.0
    %4512 = vmatprep.subr.mxu0 0.0
    %4513 = vmatpush2.xpose.msra.mxu0 0.0
    %4514 = vmatprep.subr.mxu0 0.0
    %4515 = vmatpush2.xpose.msra.mxu0 0.0
    %4516 = vmatprep.subr.mxu0 0.0
    %4517 = vmatpush2.xpose.msra.mxu0 0.0
    %4518 = vmatprep.subr.mxu0 0.0
    %4519 = vmatpush2.xpose.msra.mxu0 0.0
    %4520 = vmatprep.subr.mxu0 0.0
    %4521 = vmatpush2.xpose.msra.mxu0 0.0
    %4522 = vmatprep.subr.mxu0 0.0
    %4523 = vmatpush2.xpose.msra.mxu0 0.0
    %4524 = vmatprep.subr.mxu0 0.0
    %4525 = vmatpush2.xpose.msra.mxu0 0.0
    %4526 = vmatprep.mubr.f32.mxu0 0.0
    %4527 = vmatmul.mubr.f32.gmra.mxu0 %v4457
    %v4528 = vpop.f32.mrf.mxu0
    %v4529 = vadd.f32 0.0, %v4528
    %v4530 = vpop.f32.mrf.mxu0
    %4531 = vdwg.mxu0
    %v4533 = vsel %vm1083, %v4149, 0
    %v4536 = vsel %vm1083, %v4453, 0
    %4538 = vmatprep.subr.mxu0 0.0
    %4539 = vmatpush1.xpose.msra.mxu0 0.0
    %4540 = vmatprep.subr.mxu0 0.0
    %4541 = vmatpush1.xpose.msra.mxu0 0.0
    %4542 = vmatprep.subr.mxu0 0.0
    %4543 = vmatpush1.xpose.msra.mxu0 0.0
    %4544 = vmatprep.subr.mxu0 0.0
    %4545 = vmatpush1.xpose.msra.mxu0 0.0
    %4546 = vmatprep.subr.mxu0 0.0
    %4547 = vmatpush1.xpose.msra.mxu0 0.0
    %4548 = vmatprep.subr.mxu0 0.0
    %4549 = vmatpush1.xpose.msra.mxu0 0.0
    %4550 = vmatprep.subr.mxu0 0.0
    %4551 = vmatpush1.xpose.msra.mxu0 0.0
    %4552 = vmatprep.subr.mxu0 0.0
    %4553 = vmatpush1.xpose.msra.mxu0 0.0
    %4554 = vmatprep.subr.mxu0 0.0
    %4555 = vmatpush1.xpose.msra.mxu0 0.0
    %4556 = vmatprep.subr.mxu0 0.0
    %4557 = vmatpush1.xpose.msra.mxu0 0.0
    %4558 = vmatprep.subr.mxu0 0.0
    %4559 = vmatpush1.xpose.msra.mxu0 0.0
    %4560 = vmatprep.subr.mxu0 0.0
    %4561 = vmatpush1.xpose.msra.mxu0 0.0
    %4562 = vmatprep.subr.mxu0 0.0
    %4563 = vmatpush1.xpose.msra.mxu0 0.0
    %4564 = vmatprep.subr.mxu0 0.0
    %4565 = vmatpush1.xpose.msra.mxu0 0.0
    %4566 = vmatprep.subr.mxu0 0.0
    %4567 = vmatpush1.xpose.msra.mxu0 0.0
    %4568 = vmatprep.subr.mxu0 0.0
    %4569 = vmatpush1.xpose.msra.mxu0 %v4536
    %4570 = vmatprep.subr.mxu0 0.0
    %4571 = vmatpush2.xpose.msra.mxu0 0.0
    %4572 = vmatprep.subr.mxu0 0.0
    %4573 = vmatpush2.xpose.msra.mxu0 0.0
    %4574 = vmatprep.subr.mxu0 0.0
    %4575 = vmatpush2.xpose.msra.mxu0 0.0
    %4576 = vmatprep.subr.mxu0 0.0
    %4577 = vmatpush2.xpose.msra.mxu0 0.0
    %4578 = vmatprep.subr.mxu0 0.0
    %4579 = vmatpush2.xpose.msra.mxu0 0.0
    %4580 = vmatprep.subr.mxu0 0.0
    %4581 = vmatpush2.xpose.msra.mxu0 0.0
    %4582 = vmatprep.subr.mxu0 0.0
    %4583 = vmatpush2.xpose.msra.mxu0 0.0
    %4584 = vmatprep.subr.mxu0 0.0
    %4585 = vmatpush2.xpose.msra.mxu0 0.0
    %4586 = vmatprep.subr.mxu0 0.0
    %4587 = vmatpush2.xpose.msra.mxu0 0.0
    %4588 = vmatprep.subr.mxu0 0.0
    %4589 = vmatpush2.xpose.msra.mxu0 0.0
    %4590 = vmatprep.subr.mxu0 0.0
    %4591 = vmatpush2.xpose.msra.mxu0 0.0
    %4592 = vmatprep.subr.mxu0 0.0
    %4593 = vmatpush2.xpose.msra.mxu0 0.0
    %4594 = vmatprep.subr.mxu0 0.0
    %4595 = vmatpush2.xpose.msra.mxu0 0.0
    %4596 = vmatprep.subr.mxu0 0.0
    %4597 = vmatpush2.xpose.msra.mxu0 0.0
    %4598 = vmatprep.subr.mxu0 0.0
    %4599 = vmatpush2.xpose.msra.mxu0 0.0
    %4600 = vmatprep.subr.mxu0 0.0
    %4601 = vmatpush2.xpose.msra.mxu0 0.0
    %4602 = vmatprep.mubr.f32.mxu0 0.0
    %4603 = vmatmul.mubr.f32.gmra.mxu0 %v4533
    %v4604 = vpop.f32.mrf.mxu0
    %v4605 = vadd.f32 0.0, %v4604
    %v4606 = vpop.f32.mrf.mxu0
    %4607 = vdwg.mxu0
    %v4609 = vsel %vm1083, %v4150, 0
    %v4612 = vsel %vm1083, %v4454, 0
    %4614 = vmatprep.subr.mxu0 0.0
    %4615 = vmatpush1.xpose.msra.mxu0 0.0
    %4616 = vmatprep.subr.mxu0 0.0
    %4617 = vmatpush1.xpose.msra.mxu0 0.0
    %4618 = vmatprep.subr.mxu0 0.0
    %4619 = vmatpush1.xpose.msra.mxu0 0.0
    %4620 = vmatprep.subr.mxu0 0.0
    %4621 = vmatpush1.xpose.msra.mxu0 0.0
    %4622 = vmatprep.subr.mxu0 0.0
    %4623 = vmatpush1.xpose.msra.mxu0 0.0
    %4624 = vmatprep.subr.mxu0 0.0
    %4625 = vmatpush1.xpose.msra.mxu0 0.0
    %4626 = vmatprep.subr.mxu0 0.0
    %4627 = vmatpush1.xpose.msra.mxu0 0.0
    %4628 = vmatprep.subr.mxu0 0.0
    %4629 = vmatpush1.xpose.msra.mxu0 0.0
    %4630 = vmatprep.subr.mxu0 0.0
    %4631 = vmatpush1.xpose.msra.mxu0 0.0
    %4632 = vmatprep.subr.mxu0 0.0
    %4633 = vmatpush1.xpose.msra.mxu0 0.0
    %4634 = vmatprep.subr.mxu0 0.0
    %4635 = vmatpush1.xpose.msra.mxu0 0.0
    %4636 = vmatprep.subr.mxu0 0.0
    %4637 = vmatpush1.xpose.msra.mxu0 0.0
    %4638 = vmatprep.subr.mxu0 0.0
    %4639 = vmatpush1.xpose.msra.mxu0 0.0
    %4640 = vmatprep.subr.mxu0 0.0
    %4641 = vmatpush1.xpose.msra.mxu0 0.0
    %4642 = vmatprep.subr.mxu0 0.0
    %4643 = vmatpush1.xpose.msra.mxu0 0.0
    %4644 = vmatprep.subr.mxu0 0.0
    %4645 = vmatpush1.xpose.msra.mxu0 %v4612
    %4646 = vmatprep.subr.mxu0 0.0
    %4647 = vmatpush2.xpose.msra.mxu0 0.0
    %4648 = vmatprep.subr.mxu0 0.0
    %4649 = vmatpush2.xpose.msra.mxu0 0.0
    %4650 = vmatprep.subr.mxu0 0.0
    %4651 = vmatpush2.xpose.msra.mxu0 0.0
    %4652 = vmatprep.subr.mxu0 0.0
    %4653 = vmatpush2.xpose.msra.mxu0 0.0
    %4654 = vmatprep.subr.mxu0 0.0
    %4655 = vmatpush2.xpose.msra.mxu0 0.0
    %4656 = vmatprep.subr.mxu0 0.0
    %4657 = vmatpush2.xpose.msra.mxu0 0.0
    %4658 = vmatprep.subr.mxu0 0.0
    %4659 = vmatpush2.xpose.msra.mxu0 0.0
    %4660 = vmatprep.subr.mxu0 0.0
    %4661 = vmatpush2.xpose.msra.mxu0 0.0
    %4662 = vmatprep.subr.mxu0 0.0
    %4663 = vmatpush2.xpose.msra.mxu0 0.0
    %4664 = vmatprep.subr.mxu0 0.0
    %4665 = vmatpush2.xpose.msra.mxu0 0.0
    %4666 = vmatprep.subr.mxu0 0.0
    %4667 = vmatpush2.xpose.msra.mxu0 0.0
    %4668 = vmatprep.subr.mxu0 0.0
    %4669 = vmatpush2.xpose.msra.mxu0 0.0
    %4670 = vmatprep.subr.mxu0 0.0
    %4671 = vmatpush2.xpose.msra.mxu0 0.0
    %4672 = vmatprep.subr.mxu0 0.0
    %4673 = vmatpush2.xpose.msra.mxu0 0.0
    %4674 = vmatprep.subr.mxu0 0.0
    %4675 = vmatpush2.xpose.msra.mxu0 0.0
    %4676 = vmatprep.subr.mxu0 0.0
    %4677 = vmatpush2.xpose.msra.mxu0 0.0
    %4678 = vmatprep.mubr.f32.mxu0 0.0
    %4679 = vmatmul.mubr.f32.gmra.mxu0 %v4609
    %v4680 = vpop.f32.mrf.mxu0
    %v4681 = vadd.f32 0.0, %v4680
    %v4682 = vpop.f32.mrf.mxu0
    %4683 = vdwg.mxu0
    %v4685 = vsel %vm1083, %v4151, 0
    %v4688 = vsel %vm1083, %v4455, 0
    %4690 = vmatprep.subr.mxu0 0.0
    %4691 = vmatpush1.xpose.msra.mxu0 0.0
    %4692 = vmatprep.subr.mxu0 0.0
    %4693 = vmatpush1.xpose.msra.mxu0 0.0
    %4694 = vmatprep.subr.mxu0 0.0
    %4695 = vmatpush1.xpose.msra.mxu0 0.0
    %4696 = vmatprep.subr.mxu0 0.0
    %4697 = vmatpush1.xpose.msra.mxu0 0.0
    %4698 = vmatprep.subr.mxu0 0.0
    %4699 = vmatpush1.xpose.msra.mxu0 0.0
    %4700 = vmatprep.subr.mxu0 0.0
    %4701 = vmatpush1.xpose.msra.mxu0 0.0
    %4702 = vmatprep.subr.mxu0 0.0
    %4703 = vmatpush1.xpose.msra.mxu0 0.0
    %4704 = vmatprep.subr.mxu0 0.0
    %4705 = vmatpush1.xpose.msra.mxu0 0.0
    %4706 = vmatprep.subr.mxu0 0.0
    %4707 = vmatpush1.xpose.msra.mxu0 0.0
    %4708 = vmatprep.subr.mxu0 0.0
    %4709 = vmatpush1.xpose.msra.mxu0 0.0
    %4710 = vmatprep.subr.mxu0 0.0
    %4711 = vmatpush1.xpose.msra.mxu0 0.0
    %4712 = vmatprep.subr.mxu0 0.0
    %4713 = vmatpush1.xpose.msra.mxu0 0.0
    %4714 = vmatprep.subr.mxu0 0.0
    %4715 = vmatpush1.xpose.msra.mxu0 0.0
    %4716 = vmatprep.subr.mxu0 0.0
    %4717 = vmatpush1.xpose.msra.mxu0 0.0
    %4718 = vmatprep.subr.mxu0 0.0
    %4719 = vmatpush1.xpose.msra.mxu0 0.0
    %4720 = vmatprep.subr.mxu0 0.0
    %4721 = vmatpush1.xpose.msra.mxu0 %v4688
    %4722 = vmatprep.subr.mxu0 0.0
    %4723 = vmatpush2.xpose.msra.mxu0 0.0
    %4724 = vmatprep.subr.mxu0 0.0
    %4725 = vmatpush2.xpose.msra.mxu0 0.0
    %4726 = vmatprep.subr.mxu0 0.0
    %4727 = vmatpush2.xpose.msra.mxu0 0.0
    %4728 = vmatprep.subr.mxu0 0.0
    %4729 = vmatpush2.xpose.msra.mxu0 0.0
    %4730 = vmatprep.subr.mxu0 0.0
    %4731 = vmatpush2.xpose.msra.mxu0 0.0
    %4732 = vmatprep.subr.mxu0 0.0
    %4733 = vmatpush2.xpose.msra.mxu0 0.0
    %4734 = vmatprep.subr.mxu0 0.0
    %4735 = vmatpush2.xpose.msra.mxu0 0.0
    %4736 = vmatprep.subr.mxu0 0.0
    %4737 = vmatpush2.xpose.msra.mxu0 0.0
    %4738 = vmatprep.subr.mxu0 0.0
    %4739 = vmatpush2.xpose.msra.mxu0 0.0
    %4740 = vmatprep.subr.mxu0 0.0
    %4741 = vmatpush2.xpose.msra.mxu0 0.0
    %4742 = vmatprep.subr.mxu0 0.0
    %4743 = vmatpush2.xpose.msra.mxu0 0.0
    %4744 = vmatprep.subr.mxu0 0.0
    %4745 = vmatpush2.xpose.msra.mxu0 0.0
    %4746 = vmatprep.subr.mxu0 0.0
    %4747 = vmatpush2.xpose.msra.mxu0 0.0
    %4748 = vmatprep.subr.mxu0 0.0
    %4749 = vmatpush2.xpose.msra.mxu0 0.0
    %4750 = vmatprep.subr.mxu0 0.0
    %4751 = vmatpush2.xpose.msra.mxu0 0.0
    %4752 = vmatprep.subr.mxu0 0.0
    %4753 = vmatpush2.xpose.msra.mxu0 0.0
    %4754 = vmatprep.mubr.f32.mxu0 0.0
    %4755 = vmatmul.mubr.f32.gmra.mxu0 %v4685
    %v4756 = vpop.f32.mrf.mxu0
    %v4757 = vadd.f32 0.0, %v4756
    %v4758 = vpop.f32.mrf.mxu0
    %4759 = vdwg.mxu0
    %v4760 = vmul.f32 %v4529, 0.35355338
    %v4761 = vmul.f32 %v4605, 0.35355338
    %v4762 = vmul.f32 %v4681, 0.35355338
    %v4763 = vmul.f32 %v4757, 0.35355338
    %v4764 = vadd.f32 %v4760, %v76
    %v4765 = vadd.f32 %v4761, %v76
    %v4766 = vadd.f32 %v4762, %v76
    %v4767 = vadd.f32 %v4763, %v76
    %v4768 = vsel %vm1083, %v4764, -inf
    %4769 = vmax.xlane.f32.xlu0 %v4768
    %v4770 = vpop.xlane.xlu0 %4769
    %v4771 = vsel %vm1083, %v4765, -inf
    %4772 = vmax.xlane.f32.xlu0 %v4771
    %v4773 = vpop.xlane.xlu0 %4772
    %v4774 = vsel %vm1083, %v4766, -inf
    %4775 = vmax.xlane.f32.xlu0 %v4774
    %v4776 = vpop.xlane.xlu0 %4775
    %v4777 = vsel %vm1083, %v4767, -inf
    %4778 = vmax.xlane.f32.xlu0 %v4777
    %v4779 = vpop.xlane.xlu0 %4778
    %v4780 = vsub.f32 %v4764, %v4770
    %v4781 = vsub.f32 %v4765, %v4773
    %v4782 = vsub.f32 %v4766, %v4776
    %v4783 = vsub.f32 %v4767, %v4779
    %v4784 = vmul.f32 %v4780, 1.442695
    %v4785 = vpow.pop %v4784
    %v4786 = vmul.f32 %v4781, 1.442695
    %v4787 = vpow.pop %v4786
    %v4788 = vmul.f32 %v4782, 1.442695
    %v4789 = vpow.pop %v4788
    %v4790 = vmul.f32 %v4783, 1.442695
    %v4791 = vpow.pop %v4790
    %v4792 = vsel %vm1083, %v4785, 0.0
    %4793 = vadd.xlane.f32.xlu0 %v4792
    %v4794 = vpop.xlane.xlu0 %4793
    %v4795 = vsel %vm1083, %v4787, 0.0
    %4796 = vadd.xlane.f32.xlu0 %v4795
    %v4797 = vpop.xlane.xlu0 %4796
    %v4798 = vsel %vm1083, %v4789, 0.0
    %4799 = vadd.xlane.f32.xlu0 %v4798
    %v4800 = vpop.xlane.xlu0 %4799
    %v4801 = vsel %vm1083, %v4791, 0.0
    %4802 = vadd.xlane.f32.xlu0 %v4801
    %v4803 = vpop.xlane.xlu0 %4802
    %v4804 = vrcp.pop %v4794
    %v4805 = vmul.f32 %v4785, %v4804
    %v4806 = vrcp.pop %v4797
    %v4807 = vmul.f32 %v4787, %v4806
    %v4808 = vrcp.pop %v4800
    %v4809 = vmul.f32 %v4789, %v4808
    %v4810 = vrcp.pop %v4803
    %v4811 = vmul.f32 %v4791, %v4810
    %v4813 = vsel %vm1083, %v4805, 0
    %4815 = vmatprep.subr.mxu0 0.0
    %4816 = vmatpush1.msra.mxu0 0.0
    %4817 = vmatprep.subr.mxu0 0.0
    %4818 = vmatpush1.msra.mxu0 0.0
    %4819 = vmatprep.subr.mxu0 0.0
    %4820 = vmatpush1.msra.mxu0 0.0
    %4821 = vmatprep.subr.mxu0 0.0
    %4822 = vmatpush1.msra.mxu0 0.0
    %4823 = vmatprep.subr.mxu0 0.0
    %4824 = vmatpush1.msra.mxu0 0.0
    %4825 = vmatprep.subr.mxu0 0.0
    %4826 = vmatpush1.msra.mxu0 0.0
    %4827 = vmatprep.subr.mxu0 0.0
    %4828 = vmatpush1.msra.mxu0 0.0
    %4829 = vmatprep.subr.mxu0 0.0
    %4830 = vmatpush1.msra.mxu0 0.0
    %4831 = vmatprep.subr.mxu0 0.0
    %4832 = vmatpush1.msra.mxu0 0.0
    %4833 = vmatprep.subr.mxu0 0.0
    %4834 = vmatpush1.msra.mxu0 0.0
    %4835 = vmatprep.subr.mxu0 0.0
    %4836 = vmatpush1.msra.mxu0 0.0
    %4837 = vmatprep.subr.mxu0 0.0
    %4838 = vmatpush1.msra.mxu0 0.0
    %4839 = vmatprep.subr.mxu0 0.0
    %4840 = vmatpush1.msra.mxu0 0.0
    %4841 = vmatprep.subr.mxu0 0.0
    %4842 = vmatpush1.msra.mxu0 0.0
    %4843 = vmatprep.subr.mxu0 0.0
    %4844 = vmatpush1.msra.mxu0 0.0
    %4845 = vmatprep.subr.mxu0 0.0
    %4846 = vmatpush1.msra.mxu0 %v3635
    %4847 = vmatprep.subr.mxu0 0.0
    %4848 = vmatpush2.msra.mxu0 0.0
    %4849 = vmatprep.subr.mxu0 0.0
    %4850 = vmatpush2.msra.mxu0 0.0
    %4851 = vmatprep.subr.mxu0 0.0
    %4852 = vmatpush2.msra.mxu0 0.0
    %4853 = vmatprep.subr.mxu0 0.0
    %4854 = vmatpush2.msra.mxu0 0.0
    %4855 = vmatprep.subr.mxu0 0.0
    %4856 = vmatpush2.msra.mxu0 0.0
    %4857 = vmatprep.subr.mxu0 0.0
    %4858 = vmatpush2.msra.mxu0 0.0
    %4859 = vmatprep.subr.mxu0 0.0
    %4860 = vmatpush2.msra.mxu0 0.0
    %4861 = vmatprep.subr.mxu0 0.0
    %4862 = vmatpush2.msra.mxu0 0.0
    %4863 = vmatprep.subr.mxu0 0.0
    %4864 = vmatpush2.msra.mxu0 0.0
    %4865 = vmatprep.subr.mxu0 0.0
    %4866 = vmatpush2.msra.mxu0 0.0
    %4867 = vmatprep.subr.mxu0 0.0
    %4868 = vmatpush2.msra.mxu0 0.0
    %4869 = vmatprep.subr.mxu0 0.0
    %4870 = vmatpush2.msra.mxu0 0.0
    %4871 = vmatprep.subr.mxu0 0.0
    %4872 = vmatpush2.msra.mxu0 0.0
    %4873 = vmatprep.subr.mxu0 0.0
    %4874 = vmatpush2.msra.mxu0 0.0
    %4875 = vmatprep.subr.mxu0 0.0
    %4876 = vmatpush2.msra.mxu0 0.0
    %4877 = vmatprep.subr.mxu0 0.0
    %4878 = vmatpush2.msra.mxu0 0.0
    %4879 = vmatprep.mubr.f32.mxu0 0.0
    %4880 = vmatmul.mubr.f32.gmra.mxu0 %v4813
    %v4881 = vpop.f32.mrf.mxu0
    %v4882 = vadd.f32 0.0, %v4881
    %v4883 = vpop.f32.mrf.mxu0
    %4884 = vdwg.mxu0
    %v4886 = vsel %vm1083, %v4807, 0
    %4888 = vmatprep.subr.mxu0 0.0
    %4889 = vmatpush1.msra.mxu0 0.0
    %4890 = vmatprep.subr.mxu0 0.0
    %4891 = vmatpush1.msra.mxu0 0.0
    %4892 = vmatprep.subr.mxu0 0.0
    %4893 = vmatpush1.msra.mxu0 0.0
    %4894 = vmatprep.subr.mxu0 0.0
    %4895 = vmatpush1.msra.mxu0 0.0
    %4896 = vmatprep.subr.mxu0 0.0
    %4897 = vmatpush1.msra.mxu0 0.0
    %4898 = vmatprep.subr.mxu0 0.0
    %4899 = vmatpush1.msra.mxu0 0.0
    %4900 = vmatprep.subr.mxu0 0.0
    %4901 = vmatpush1.msra.mxu0 0.0
    %4902 = vmatprep.subr.mxu0 0.0
    %4903 = vmatpush1.msra.mxu0 0.0
    %4904 = vmatprep.subr.mxu0 0.0
    %4905 = vmatpush1.msra.mxu0 0.0
    %4906 = vmatprep.subr.mxu0 0.0
    %4907 = vmatpush1.msra.mxu0 0.0
    %4908 = vmatprep.subr.mxu0 0.0
    %4909 = vmatpush1.msra.mxu0 0.0
    %4910 = vmatprep.subr.mxu0 0.0
    %4911 = vmatpush1.msra.mxu0 0.0
    %4912 = vmatprep.subr.mxu0 0.0
    %4913 = vmatpush1.msra.mxu0 0.0
    %4914 = vmatprep.subr.mxu0 0.0
    %4915 = vmatpush1.msra.mxu0 0.0
    %4916 = vmatprep.subr.mxu0 0.0
    %4917 = vmatpush1.msra.mxu0 0.0
    %4918 = vmatprep.subr.mxu0 0.0
    %4919 = vmatpush1.msra.mxu0 %v3705
    %4920 = vmatprep.subr.mxu0 0.0
    %4921 = vmatpush2.msra.mxu0 0.0
    %4922 = vmatprep.subr.mxu0 0.0
    %4923 = vmatpush2.msra.mxu0 0.0
    %4924 = vmatprep.subr.mxu0 0.0
    %4925 = vmatpush2.msra.mxu0 0.0
    %4926 = vmatprep.subr.mxu0 0.0
    %4927 = vmatpush2.msra.mxu0 0.0
    %4928 = vmatprep.subr.mxu0 0.0
    %4929 = vmatpush2.msra.mxu0 0.0
    %4930 = vmatprep.subr.mxu0 0.0
    %4931 = vmatpush2.msra.mxu0 0.0
    %4932 = vmatprep.subr.mxu0 0.0
    %4933 = vmatpush2.msra.mxu0 0.0
    %4934 = vmatprep.subr.mxu0 0.0
    %4935 = vmatpush2.msra.mxu0 0.0
    %4936 = vmatprep.subr.mxu0 0.0
    %4937 = vmatpush2.msra.mxu0 0.0
    %4938 = vmatprep.subr.mxu0 0.0
    %4939 = vmatpush2.msra.mxu0 0.0
    %4940 = vmatprep.subr.mxu0 0.0
    %4941 = vmatpush2.msra.mxu0 0.0
    %4942 = vmatprep.subr.mxu0 0.0
    %4943 = vmatpush2.msra.mxu0 0.0
    %4944 = vmatprep.subr.mxu0 0.0
    %4945 = vmatpush2.msra.mxu0 0.0
    %4946 = vmatprep.subr.mxu0 0.0
    %4947 = vmatpush2.msra.mxu0 0.0
    %4948 = vmatprep.subr.mxu0 0.0
    %4949 = vmatpush2.msra.mxu0 0.0
    %4950 = vmatprep.subr.mxu0 0.0
    %4951 = vmatpush2.msra.mxu0 0.0
    %4952 = vmatprep.mubr.f32.mxu0 0.0
    %4953 = vmatmul.mubr.f32.gmra.mxu0 %v4886
    %v4954 = vpop.f32.mrf.mxu0
    %v4955 = vadd.f32 0.0, %v4954
    %v4956 = vpop.f32.mrf.mxu0
    %4957 = vdwg.mxu0
    %v4959 = vsel %vm1083, %v4809, 0
    %4961 = vmatprep.subr.mxu0 0.0
    %4962 = vmatpush1.msra.mxu0 0.0
    %4963 = vmatprep.subr.mxu0 0.0
    %4964 = vmatpush1.msra.mxu0 0.0
    %4965 = vmatprep.subr.mxu0 0.0
    %4966 = vmatpush1.msra.mxu0 0.0
    %4967 = vmatprep.subr.mxu0 0.0
    %4968 = vmatpush1.msra.mxu0 0.0
    %4969 = vmatprep.subr.mxu0 0.0
    %4970 = vmatpush1.msra.mxu0 0.0
    %4971 = vmatprep.subr.mxu0 0.0
    %4972 = vmatpush1.msra.mxu0 0.0
    %4973 = vmatprep.subr.mxu0 0.0
    %4974 = vmatpush1.msra.mxu0 0.0
    %4975 = vmatprep.subr.mxu0 0.0
    %4976 = vmatpush1.msra.mxu0 0.0
    %4977 = vmatprep.subr.mxu0 0.0
    %4978 = vmatpush1.msra.mxu0 0.0
    %4979 = vmatprep.subr.mxu0 0.0
    %4980 = vmatpush1.msra.mxu0 0.0
    %4981 = vmatprep.subr.mxu0 0.0
    %4982 = vmatpush1.msra.mxu0 0.0
    %4983 = vmatprep.subr.mxu0 0.0
    %4984 = vmatpush1.msra.mxu0 0.0
    %4985 = vmatprep.subr.mxu0 0.0
    %4986 = vmatpush1.msra.mxu0 0.0
    %4987 = vmatprep.subr.mxu0 0.0
    %4988 = vmatpush1.msra.mxu0 0.0
    %4989 = vmatprep.subr.mxu0 0.0
    %4990 = vmatpush1.msra.mxu0 0.0
    %4991 = vmatprep.subr.mxu0 0.0
    %4992 = vmatpush1.msra.mxu0 %v3775
    %4993 = vmatprep.subr.mxu0 0.0
    %4994 = vmatpush2.msra.mxu0 0.0
    %4995 = vmatprep.subr.mxu0 0.0
    %4996 = vmatpush2.msra.mxu0 0.0
    %4997 = vmatprep.subr.mxu0 0.0
    %4998 = vmatpush2.msra.mxu0 0.0
    %4999 = vmatprep.subr.mxu0 0.0
    %5000 = vmatpush2.msra.mxu0 0.0
    %5001 = vmatprep.subr.mxu0 0.0
    %5002 = vmatpush2.msra.mxu0 0.0
    %5003 = vmatprep.subr.mxu0 0.0
    %5004 = vmatpush2.msra.mxu0 0.0
    %5005 = vmatprep.subr.mxu0 0.0
    %5006 = vmatpush2.msra.mxu0 0.0
    %5007 = vmatprep.subr.mxu0 0.0
    %5008 = vmatpush2.msra.mxu0 0.0
    %5009 = vmatprep.subr.mxu0 0.0
    %5010 = vmatpush2.msra.mxu0 0.0
    %5011 = vmatprep.subr.mxu0 0.0
    %5012 = vmatpush2.msra.mxu0 0.0
    %5013 = vmatprep.subr.mxu0 0.0
    %5014 = vmatpush2.msra.mxu0 0.0
    %5015 = vmatprep.subr.mxu0 0.0
    %5016 = vmatpush2.msra.mxu0 0.0
    %5017 = vmatprep.subr.mxu0 0.0
    %5018 = vmatpush2.msra.mxu0 0.0
    %5019 = vmatprep.subr.mxu0 0.0
    %5020 = vmatpush2.msra.mxu0 0.0
    %5021 = vmatprep.subr.mxu0 0.0
    %5022 = vmatpush2.msra.mxu0 0.0
    %5023 = vmatprep.subr.mxu0 0.0
    %5024 = vmatpush2.msra.mxu0 0.0
    %5025 = vmatprep.mubr.f32.mxu0 0.0
    %5026 = vmatmul.mubr.f32.gmra.mxu0 %v4959
    %v5027 = vpop.f32.mrf.mxu0
    %v5028 = vadd.f32 0.0, %v5027
    %v5029 = vpop.f32.mrf.mxu0
    %5030 = vdwg.mxu0
    %v5032 = vsel %vm1083, %v4811, 0
    %5034 = vmatprep.subr.mxu0 0.0
    %5035 = vmatpush1.msra.mxu0 0.0
    %5036 = vmatprep.subr.mxu0 0.0
    %5037 = vmatpush1.msra.mxu0 0.0
    %5038 = vmatprep.subr.mxu0 0.0
    %5039 = vmatpush1.msra.mxu0 0.0
    %5040 = vmatprep.subr.mxu0 0.0
    %5041 = vmatpush1.msra.mxu0 0.0
    %5042 = vmatprep.subr.mxu0 0.0
    %5043 = vmatpush1.msra.mxu0 0.0
    %5044 = vmatprep.subr.mxu0 0.0
    %5045 = vmatpush1.msra.mxu0 0.0
    %5046 = vmatprep.subr.mxu0 0.0
    %5047 = vmatpush1.msra.mxu0 0.0
    %5048 = vmatprep.subr.mxu0 0.0
    %5049 = vmatpush1.msra.mxu0 0.0
    %5050 = vmatprep.subr.mxu0 0.0
    %5051 = vmatpush1.msra.mxu0 0.0
    %5052 = vmatprep.subr.mxu0 0.0
    %5053 = vmatpush1.msra.mxu0 0.0
    %5054 = vmatprep.subr.mxu0 0.0
    %5055 = vmatpush1.msra.mxu0 0.0
    %5056 = vmatprep.subr.mxu0 0.0
    %5057 = vmatpush1.msra.mxu0 0.0
    %5058 = vmatprep.subr.mxu0 0.0
    %5059 = vmatpush1.msra.mxu0 0.0
    %5060 = vmatprep.subr.mxu0 0.0
    %5061 = vmatpush1.msra.mxu0 0.0
    %5062 = vmatprep.subr.mxu0 0.0
    %5063 = vmatpush1.msra.mxu0 0.0
    %5064 = vmatprep.subr.mxu0 0.0
    %5065 = vmatpush1.msra.mxu0 %v3845
    %5066 = vmatprep.subr.mxu0 0.0
    %5067 = vmatpush2.msra.mxu0 0.0
    %5068 = vmatprep.subr.mxu0 0.0
    %5069 = vmatpush2.msra.mxu0 0.0
    %5070 = vmatprep.subr.mxu0 0.0
    %5071 = vmatpush2.msra.mxu0 0.0
    %5072 = vmatprep.subr.mxu0 0.0
    %5073 = vmatpush2.msra.mxu0 0.0
    %5074 = vmatprep.subr.mxu0 0.0
    %5075 = vmatpush2.msra.mxu0 0.0
    %5076 = vmatprep.subr.mxu0 0.0
    %5077 = vmatpush2.msra.mxu0 0.0
    %5078 = vmatprep.subr.mxu0 0.0
    %5079 = vmatpush2.msra.mxu0 0.0
    %5080 = vmatprep.subr.mxu0 0.0
    %5081 = vmatpush2.msra.mxu0 0.0
    %5082 = vmatprep.subr.mxu0 0.0
    %5083 = vmatpush2.msra.mxu0 0.0
    %5084 = vmatprep.subr.mxu0 0.0
    %5085 = vmatpush2.msra.mxu0 0.0
    %5086 = vmatprep.subr.mxu0 0.0
    %5087 = vmatpush2.msra.mxu0 0.0
    %5088 = vmatprep.subr.mxu0 0.0
    %5089 = vmatpush2.msra.mxu0 0.0
    %5090 = vmatprep.subr.mxu0 0.0
    %5091 = vmatpush2.msra.mxu0 0.0
    %5092 = vmatprep.subr.mxu0 0.0
    %5093 = vmatpush2.msra.mxu0 0.0
    %5094 = vmatprep.subr.mxu0 0.0
    %5095 = vmatpush2.msra.mxu0 0.0
    %5096 = vmatprep.subr.mxu0 0.0
    %5097 = vmatpush2.msra.mxu0 0.0
    %5098 = vmatprep.mubr.f32.mxu0 0.0
    %5099 = vmatmul.mubr.f32.gmra.mxu0 %v5032
    %v5100 = vpop.f32.mrf.mxu0
    %v5101 = vadd.f32 0.0, %v5100
    %v5102 = vpop.f32.mrf.mxu0
    %5103 = vdwg.mxu0
    %s5104 = scalar_lea.vmem %s13, 32
    %v5105 = vld [vmem:[%s5104] sm:$0xff]
    %v5106 = vld [vmem:[%s5104 + $0x8] sm:$0xff]
    %v5107 = vld [vmem:[%s5104 + $0x10] sm:$0xff]
    %v5108 = vld [vmem:[%s5104 + $0x18] sm:$0xff]
    %v5110 = vsel %vm1083, %v4882, 0
    %5112 = vmatprep.subr.mxu0 0.0
    %5113 = vmatpush1.msra.mxu0 0.0
    %5114 = vmatprep.subr.mxu0 0.0
    %5115 = vmatpush1.msra.mxu0 0.0
    %5116 = vmatprep.subr.mxu0 0.0
    %5117 = vmatpush1.msra.mxu0 0.0
    %5118 = vmatprep.subr.mxu0 0.0
    %5119 = vmatpush1.msra.mxu0 0.0
    %5120 = vmatprep.subr.mxu0 0.0
    %5121 = vmatpush1.msra.mxu0 0.0
    %5122 = vmatprep.subr.mxu0 0.0
    %5123 = vmatpush1.msra.mxu0 0.0
    %5124 = vmatprep.subr.mxu0 0.0
    %5125 = vmatpush1.msra.mxu0 0.0
    %5126 = vmatprep.subr.mxu0 0.0
    %5127 = vmatpush1.msra.mxu0 0.0
    %5128 = vmatprep.subr.mxu0 0.0
    %5129 = vmatpush1.msra.mxu0 0.0
    %5130 = vmatprep.subr.mxu0 0.0
    %5131 = vmatpush1.msra.mxu0 0.0
    %5132 = vmatprep.subr.mxu0 0.0
    %5133 = vmatpush1.msra.mxu0 0.0
    %5134 = vmatprep.subr.mxu0 0.0
    %5135 = vmatpush1.msra.mxu0 0.0
    %5136 = vmatprep.subr.mxu0 0.0
    %5137 = vmatpush1.msra.mxu0 0.0
    %5138 = vmatprep.subr.mxu0 0.0
    %5139 = vmatpush1.msra.mxu0 0.0
    %5140 = vmatprep.subr.mxu0 0.0
    %5141 = vmatpush1.msra.mxu0 0.0
    %5142 = vmatprep.subr.mxu0 0.0
    %5143 = vmatpush1.msra.mxu0 %v5105
    %5144 = vmatprep.subr.mxu0 0.0
    %5145 = vmatpush2.msra.mxu0 0.0
    %5146 = vmatprep.subr.mxu0 0.0
    %5147 = vmatpush2.msra.mxu0 0.0
    %5148 = vmatprep.subr.mxu0 0.0
    %5149 = vmatpush2.msra.mxu0 0.0
    %5150 = vmatprep.subr.mxu0 0.0
    %5151 = vmatpush2.msra.mxu0 0.0
    %5152 = vmatprep.subr.mxu0 0.0
    %5153 = vmatpush2.msra.mxu0 0.0
    %5154 = vmatprep.subr.mxu0 0.0
    %5155 = vmatpush2.msra.mxu0 0.0
    %5156 = vmatprep.subr.mxu0 0.0
    %5157 = vmatpush2.msra.mxu0 0.0
    %5158 = vmatprep.subr.mxu0 0.0
    %5159 = vmatpush2.msra.mxu0 0.0
    %5160 = vmatprep.subr.mxu0 0.0
    %5161 = vmatpush2.msra.mxu0 0.0
    %5162 = vmatprep.subr.mxu0 0.0
    %5163 = vmatpush2.msra.mxu0 0.0
    %5164 = vmatprep.subr.mxu0 0.0
    %5165 = vmatpush2.msra.mxu0 0.0
    %5166 = vmatprep.subr.mxu0 0.0
    %5167 = vmatpush2.msra.mxu0 0.0
    %5168 = vmatprep.subr.mxu0 0.0
    %5169 = vmatpush2.msra.mxu0 0.0
    %5170 = vmatprep.subr.mxu0 0.0
    %5171 = vmatpush2.msra.mxu0 0.0
    %5172 = vmatprep.subr.mxu0 0.0
    %5173 = vmatpush2.msra.mxu0 0.0
    %5174 = vmatprep.subr.mxu0 0.0
    %5175 = vmatpush2.msra.mxu0 0.0
    %5176 = vmatprep.mubr.f32.mxu0 0.0
    %5177 = vmatmul.mubr.f32.gmra.mxu0 %v5110
    %v5178 = vpop.f32.mrf.mxu0
    %v5179 = vadd.f32 0.0, %v5178
    %v5180 = vpop.f32.mrf.mxu0
    %5181 = vdwg.mxu0
    %v5183 = vsel %vm1083, %v4955, 0
    %5185 = vmatprep.subr.mxu0 0.0
    %5186 = vmatpush1.msra.mxu0 0.0
    %5187 = vmatprep.subr.mxu0 0.0
    %5188 = vmatpush1.msra.mxu0 0.0
    %5189 = vmatprep.subr.mxu0 0.0
    %5190 = vmatpush1.msra.mxu0 0.0
    %5191 = vmatprep.subr.mxu0 0.0
    %5192 = vmatpush1.msra.mxu0 0.0
    %5193 = vmatprep.subr.mxu0 0.0
    %5194 = vmatpush1.msra.mxu0 0.0
    %5195 = vmatprep.subr.mxu0 0.0
    %5196 = vmatpush1.msra.mxu0 0.0
    %5197 = vmatprep.subr.mxu0 0.0
    %5198 = vmatpush1.msra.mxu0 0.0
    %5199 = vmatprep.subr.mxu0 0.0
    %5200 = vmatpush1.msra.mxu0 0.0
    %5201 = vmatprep.subr.mxu0 0.0
    %5202 = vmatpush1.msra.mxu0 0.0
    %5203 = vmatprep.subr.mxu0 0.0
    %5204 = vmatpush1.msra.mxu0 0.0
    %5205 = vmatprep.subr.mxu0 0.0
    %5206 = vmatpush1.msra.mxu0 0.0
    %5207 = vmatprep.subr.mxu0 0.0
    %5208 = vmatpush1.msra.mxu0 0.0
    %5209 = vmatprep.subr.mxu0 0.0
    %5210 = vmatpush1.msra.mxu0 0.0
    %5211 = vmatprep.subr.mxu0 0.0
    %5212 = vmatpush1.msra.mxu0 0.0
    %5213 = vmatprep.subr.mxu0 0.0
    %5214 = vmatpush1.msra.mxu0 0.0
    %5215 = vmatprep.subr.mxu0 0.0
    %5216 = vmatpush1.msra.mxu0 %v5106
    %5217 = vmatprep.subr.mxu0 0.0
    %5218 = vmatpush2.msra.mxu0 0.0
    %5219 = vmatprep.subr.mxu0 0.0
    %5220 = vmatpush2.msra.mxu0 0.0
    %5221 = vmatprep.subr.mxu0 0.0
    %5222 = vmatpush2.msra.mxu0 0.0
    %5223 = vmatprep.subr.mxu0 0.0
    %5224 = vmatpush2.msra.mxu0 0.0
    %5225 = vmatprep.subr.mxu0 0.0
    %5226 = vmatpush2.msra.mxu0 0.0
    %5227 = vmatprep.subr.mxu0 0.0
    %5228 = vmatpush2.msra.mxu0 0.0
    %5229 = vmatprep.subr.mxu0 0.0
    %5230 = vmatpush2.msra.mxu0 0.0
    %5231 = vmatprep.subr.mxu0 0.0
    %5232 = vmatpush2.msra.mxu0 0.0
    %5233 = vmatprep.subr.mxu0 0.0
    %5234 = vmatpush2.msra.mxu0 0.0
    %5235 = vmatprep.subr.mxu0 0.0
    %5236 = vmatpush2.msra.mxu0 0.0
    %5237 = vmatprep.subr.mxu0 0.0
    %5238 = vmatpush2.msra.mxu0 0.0
    %5239 = vmatprep.subr.mxu0 0.0
    %5240 = vmatpush2.msra.mxu0 0.0
    %5241 = vmatprep.subr.mxu0 0.0
    %5242 = vmatpush2.msra.mxu0 0.0
    %5243 = vmatprep.subr.mxu0 0.0
    %5244 = vmatpush2.msra.mxu0 0.0
    %5245 = vmatprep.subr.mxu0 0.0
    %5246 = vmatpush2.msra.mxu0 0.0
    %5247 = vmatprep.subr.mxu0 0.0
    %5248 = vmatpush2.msra.mxu0 0.0
    %5249 = vmatprep.mubr.f32.mxu0 0.0
    %5250 = vmatmul.mubr.f32.gmra.mxu0 %v5183
    %v5251 = vpop.f32.mrf.mxu0
    %v5252 = vadd.f32 0.0, %v5251
    %v5253 = vpop.f32.mrf.mxu0
    %5254 = vdwg.mxu0
    %v5256 = vsel %vm1083, %v5028, 0
    %5258 = vmatprep.subr.mxu0 0.0
    %5259 = vmatpush1.msra.mxu0 0.0
    %5260 = vmatprep.subr.mxu0 0.0
    %5261 = vmatpush1.msra.mxu0 0.0
    %5262 = vmatprep.subr.mxu0 0.0
    %5263 = vmatpush1.msra.mxu0 0.0
    %5264 = vmatprep.subr.mxu0 0.0
    %5265 = vmatpush1.msra.mxu0 0.0
    %5266 = vmatprep.subr.mxu0 0.0
    %5267 = vmatpush1.msra.mxu0 0.0
    %5268 = vmatprep.subr.mxu0 0.0
    %5269 = vmatpush1.msra.mxu0 0.0
    %5270 = vmatprep.subr.mxu0 0.0
    %5271 = vmatpush1.msra.mxu0 0.0
    %5272 = vmatprep.subr.mxu0 0.0
    %5273 = vmatpush1.msra.mxu0 0.0
    %5274 = vmatprep.subr.mxu0 0.0
    %5275 = vmatpush1.msra.mxu0 0.0
    %5276 = vmatprep.subr.mxu0 0.0
    %5277 = vmatpush1.msra.mxu0 0.0
    %5278 = vmatprep.subr.mxu0 0.0
    %5279 = vmatpush1.msra.mxu0 0.0
    %5280 = vmatprep.subr.mxu0 0.0
    %5281 = vmatpush1.msra.mxu0 0.0
    %5282 = vmatprep.subr.mxu0 0.0
    %5283 = vmatpush1.msra.mxu0 0.0
    %5284 = vmatprep.subr.mxu0 0.0
    %5285 = vmatpush1.msra.mxu0 0.0
    %5286 = vmatprep.subr.mxu0 0.0
    %5287 = vmatpush1.msra.mxu0 0.0
    %5288 = vmatprep.subr.mxu0 0.0
    %5289 = vmatpush1.msra.mxu0 %v5107
    %5290 = vmatprep.subr.mxu0 0.0
    %5291 = vmatpush2.msra.mxu0 0.0
    %5292 = vmatprep.subr.mxu0 0.0
    %5293 = vmatpush2.msra.mxu0 0.0
    %5294 = vmatprep.subr.mxu0 0.0
    %5295 = vmatpush2.msra.mxu0 0.0
    %5296 = vmatprep.subr.mxu0 0.0
    %5297 = vmatpush2.msra.mxu0 0.0
    %5298 = vmatprep.subr.mxu0 0.0
    %5299 = vmatpush2.msra.mxu0 0.0
    %5300 = vmatprep.subr.mxu0 0.0
    %5301 = vmatpush2.msra.mxu0 0.0
    %5302 = vmatprep.subr.mxu0 0.0
    %5303 = vmatpush2.msra.mxu0 0.0
    %5304 = vmatprep.subr.mxu0 0.0
    %5305 = vmatpush2.msra.mxu0 0.0
    %5306 = vmatprep.subr.mxu0 0.0
    %5307 = vmatpush2.msra.mxu0 0.0
    %5308 = vmatprep.subr.mxu0 0.0
    %5309 = vmatpush2.msra.mxu0 0.0
    %5310 = vmatprep.subr.mxu0 0.0
    %5311 = vmatpush2.msra.mxu0 0.0
    %5312 = vmatprep.subr.mxu0 0.0
    %5313 = vmatpush2.msra.mxu0 0.0
    %5314 = vmatprep.subr.mxu0 0.0
    %5315 = vmatpush2.msra.mxu0 0.0
    %5316 = vmatprep.subr.mxu0 0.0
    %5317 = vmatpush2.msra.mxu0 0.0
    %5318 = vmatprep.subr.mxu0 0.0
    %5319 = vmatpush2.msra.mxu0 0.0
    %5320 = vmatprep.subr.mxu0 0.0
    %5321 = vmatpush2.msra.mxu0 0.0
    %5322 = vmatprep.mubr.f32.mxu0 0.0
    %5323 = vmatmul.mubr.f32.gmra.mxu0 %v5256
    %v5324 = vpop.f32.mrf.mxu0
    %v5325 = vadd.f32 0.0, %v5324
    %v5326 = vpop.f32.mrf.mxu0
    %5327 = vdwg.mxu0
    %v5329 = vsel %vm1083, %v5101, 0
    %5331 = vmatprep.subr.mxu0 0.0
    %5332 = vmatpush1.msra.mxu0 0.0
    %5333 = vmatprep.subr.mxu0 0.0
    %5334 = vmatpush1.msra.mxu0 0.0
    %5335 = vmatprep.subr.mxu0 0.0
    %5336 = vmatpush1.msra.mxu0 0.0
    %5337 = vmatprep.subr.mxu0 0.0
    %5338 = vmatpush1.msra.mxu0 0.0
    %5339 = vmatprep.subr.mxu0 0.0
    %5340 = vmatpush1.msra.mxu0 0.0
    %5341 = vmatprep.subr.mxu0 0.0
    %5342 = vmatpush1.msra.mxu0 0.0
    %5343 = vmatprep.subr.mxu0 0.0
    %5344 = vmatpush1.msra.mxu0 0.0
    %5345 = vmatprep.subr.mxu0 0.0
    %5346 = vmatpush1.msra.mxu0 0.0
    %5347 = vmatprep.subr.mxu0 0.0
    %5348 = vmatpush1.msra.mxu0 0.0
    %5349 = vmatprep.subr.mxu0 0.0
    %5350 = vmatpush1.msra.mxu0 0.0
    %5351 = vmatprep.subr.mxu0 0.0
    %5352 = vmatpush1.msra.mxu0 0.0
    %5353 = vmatprep.subr.mxu0 0.0
    %5354 = vmatpush1.msra.mxu0 0.0
    %5355 = vmatprep.subr.mxu0 0.0
    %5356 = vmatpush1.msra.mxu0 0.0
    %5357 = vmatprep.subr.mxu0 0.0
    %5358 = vmatpush1.msra.mxu0 0.0
    %5359 = vmatprep.subr.mxu0 0.0
    %5360 = vmatpush1.msra.mxu0 0.0
    %5361 = vmatprep.subr.mxu0 0.0
    %5362 = vmatpush1.msra.mxu0 %v5108
    %5363 = vmatprep.subr.mxu0 0.0
    %5364 = vmatpush2.msra.mxu0 0.0
    %5365 = vmatprep.subr.mxu0 0.0
    %5366 = vmatpush2.msra.mxu0 0.0
    %5367 = vmatprep.subr.mxu0 0.0
    %5368 = vmatpush2.msra.mxu0 0.0
    %5369 = vmatprep.subr.mxu0 0.0
    %5370 = vmatpush2.msra.mxu0 0.0
    %5371 = vmatprep.subr.mxu0 0.0
    %5372 = vmatpush2.msra.mxu0 0.0
    %5373 = vmatprep.subr.mxu0 0.0
    %5374 = vmatpush2.msra.mxu0 0.0
    %5375 = vmatprep.subr.mxu0 0.0
    %5376 = vmatpush2.msra.mxu0 0.0
    %5377 = vmatprep.subr.mxu0 0.0
    %5378 = vmatpush2.msra.mxu0 0.0
    %5379 = vmatprep.subr.mxu0 0.0
    %5380 = vmatpush2.msra.mxu0 0.0
    %5381 = vmatprep.subr.mxu0 0.0
    %5382 = vmatpush2.msra.mxu0 0.0
    %5383 = vmatprep.subr.mxu0 0.0
    %5384 = vmatpush2.msra.mxu0 0.0
    %5385 = vmatprep.subr.mxu0 0.0
    %5386 = vmatpush2.msra.mxu0 0.0
    %5387 = vmatprep.subr.mxu0 0.0
    %5388 = vmatpush2.msra.mxu0 0.0
    %5389 = vmatprep.subr.mxu0 0.0
    %5390 = vmatpush2.msra.mxu0 0.0
    %5391 = vmatprep.subr.mxu0 0.0
    %5392 = vmatpush2.msra.mxu0 0.0
    %5393 = vmatprep.subr.mxu0 0.0
    %5394 = vmatpush2.msra.mxu0 0.0
    %5395 = vmatprep.mubr.f32.mxu0 0.0
    %5396 = vmatmul.mubr.f32.gmra.mxu0 %v5329
    %v5397 = vpop.f32.mrf.mxu0
    %v5398 = vadd.f32 0.0, %v5397
    %v5399 = vpop.f32.mrf.mxu0
    %5400 = vdwg.mxu0
    %v5401 = vsel %vm79, %v5179, 0.0
    %v5402 = vsel %vm79, %v5252, 0.0
    %v5403 = vadd.f32 %v5401, %v5402
    %v5404 = vsel %vm79, %v5325, 0.0
    %v5405 = vadd.f32 %v5403, %v5404
    %v5406 = vsel %vm79, %v5398, 0.0
    %v5407 = vadd.f32 %v5405, %v5406
    %s5408 = scalar_lea.vmem %s14, 1
    %v5409 = vld [vmem:[%s5408] sm:$0x1]
    %v5411 = vlaneseq
    %v5412 = vshrl.u32 %v5411, 7
    %v5413 = vsub.s32 0, %v5412
    %v5414 = vrot.slane %v5409, %v5413
    %v5416 = vadd.f32 %v5407, %v5414
    %s5417 = scalar_lea.vmem %s15, 32
    %v5418 = vld [vmem:[%s5417] sm:$0xff]
    %v5419 = vld [vmem:[%s5417 + $0x8] sm:$0xff]
    %v5420 = vld [vmem:[%s5417 + $0x10] sm:$0xff]
    %v5421 = vld [vmem:[%s5417 + $0x18] sm:$0xff]
    %s5422 = scalar_lea.vmem %s16, 1
    %v5423 = vld [vmem:[%s5422] sm:$0x1]
    %v5425 = vlaneseq
    %v5426 = vshrl.u32 %v5425, 7
    %v5427 = vsub.s32 0, %v5426
    %v5428 = vrot.slane %v5423, %v5427
    %5430 = vmatprep.subr.mxu0 0.0
    %5431 = vmatpush1.msra.mxu0 0.0
    %5432 = vmatprep.subr.mxu0 0.0
    %5433 = vmatpush1.msra.mxu0 0.0
    %5434 = vmatprep.subr.mxu0 0.0
    %5435 = vmatpush1.msra.mxu0 0.0
    %5436 = vmatprep.subr.mxu0 0.0
    %5437 = vmatpush1.msra.mxu0 0.0
    %5438 = vmatprep.subr.mxu0 0.0
    %5439 = vmatpush1.msra.mxu0 0.0
    %5440 = vmatprep.subr.mxu0 0.0
    %5441 = vmatpush1.msra.mxu0 0.0
    %5442 = vmatprep.subr.mxu0 0.0
    %5443 = vmatpush1.msra.mxu0 0.0
    %5444 = vmatprep.subr.mxu0 0.0
    %5445 = vmatpush1.msra.mxu0 0.0
    %5446 = vmatprep.subr.mxu0 0.0
    %5447 = vmatpush1.msra.mxu0 0.0
    %5448 = vmatprep.subr.mxu0 0.0
    %5449 = vmatpush1.msra.mxu0 0.0
    %5450 = vmatprep.subr.mxu0 0.0
    %5451 = vmatpush1.msra.mxu0 0.0
    %5452 = vmatprep.subr.mxu0 0.0
    %5453 = vmatpush1.msra.mxu0 0.0
    %5454 = vmatprep.subr.mxu0 0.0
    %5455 = vmatpush1.msra.mxu0 %v5421
    %5456 = vmatprep.subr.mxu0 0.0
    %5457 = vmatpush1.msra.mxu0 %v5420
    %5458 = vmatprep.subr.mxu0 0.0
    %5459 = vmatpush1.msra.mxu0 %v5419
    %5460 = vmatprep.subr.mxu0 0.0
    %5461 = vmatpush1.msra.mxu0 %v5418
    %5462 = vmatprep.subr.mxu0 0.0
    %5463 = vmatpush2.msra.mxu0 0.0
    %5464 = vmatprep.subr.mxu0 0.0
    %5465 = vmatpush2.msra.mxu0 0.0
    %5466 = vmatprep.subr.mxu0 0.0
    %5467 = vmatpush2.msra.mxu0 0.0
    %5468 = vmatprep.subr.mxu0 0.0
    %5469 = vmatpush2.msra.mxu0 0.0
    %5470 = vmatprep.subr.mxu0 0.0
    %5471 = vmatpush2.msra.mxu0 0.0
    %5472 = vmatprep.subr.mxu0 0.0
    %5473 = vmatpush2.msra.mxu0 0.0
    %5474 = vmatprep.subr.mxu0 0.0
    %5475 = vmatpush2.msra.mxu0 0.0
    %5476 = vmatprep.subr.mxu0 0.0
    %5477 = vmatpush2.msra.mxu0 0.0
    %5478 = vmatprep.subr.mxu0 0.0
    %5479 = vmatpush2.msra.mxu0 0.0
    %5480 = vmatprep.subr.mxu0 0.0
    %5481 = vmatpush2.msra.mxu0 0.0
    %5482 = vmatprep.subr.mxu0 0.0
    %5483 = vmatpush2.msra.mxu0 0.0
    %5484 = vmatprep.subr.mxu0 0.0
    %5485 = vmatpush2.msra.mxu0 0.0
    %5486 = vmatprep.subr.mxu0 0.0
    %5487 = vmatpush2.msra.mxu0 0.0
    %5488 = vmatprep.subr.mxu0 0.0
    %5489 = vmatpush2.msra.mxu0 0.0
    %5490 = vmatprep.subr.mxu0 0.0
    %5491 = vmatpush2.msra.mxu0 0.0
    %5492 = vmatprep.subr.mxu0 0.0
    %5493 = vmatpush2.msra.mxu0 0.0
    %5494 = vmatprep.mubr.f32.mxu0 0.0
    %5495 = vmatmul.mubr.f32.gmra.mxu0 %v2914
    %v5496 = vpop.f32.mrf.mxu0
    %v5497 = vadd.f32 %v5428, %v5496
    %v5498 = vpop.f32.mrf.mxu0
    %5499 = vdwg.mxu0
    %v5500 = vmul.f32 %v5497, 0.5
    %v5501 = vmul.f32 %v5497, 0.044715
    %v5502 = vmul.f32 %v5501, %v5497
    %v5503 = vmul.f32 %v5502, %v5497
    %v5504 = vadd.f32 %v5497, %v5503
    %v5505 = vmul.f32 %v5504, 0.7978846
    %v5506 = vtanh.pop %v5505
    %v5507 = vadd.f32 %v5506, 1.0
    %v5508 = vmul.f32 %v5500, %v5507
    %s5509 = scalar_lea.vmem %s17, 128
    %v5510 = vld [vmem:[%s5509] sm:$0xff]
    %v5511 = vld [vmem:[%s5509 + $0x8] sm:$0xff]
    %v5512 = vld [vmem:[%s5509 + $0x10] sm:$0xff]
    %v5513 = vld [vmem:[%s5509 + $0x18] sm:$0xff]
    %v5514 = vld [vmem:[%s5509 + $0x20] sm:$0xff]
    %v5515 = vld [vmem:[%s5509 + $0x28] sm:$0xff]
    %v5516 = vld [vmem:[%s5509 + $0x30] sm:$0xff]
    %v5517 = vld [vmem:[%s5509 + $0x38] sm:$0xff]
    %v5518 = vld [vmem:[%s5509 + $0x40] sm:$0xff]
    %v5519 = vld [vmem:[%s5509 + $0x48] sm:$0xff]
    %v5520 = vld [vmem:[%s5509 + $0x50] sm:$0xff]
    %v5521 = vld [vmem:[%s5509 + $0x58] sm:$0xff]
    %v5522 = vld [vmem:[%s5509 + $0x60] sm:$0xff]
    %v5523 = vld [vmem:[%s5509 + $0x68] sm:$0xff]
    %v5524 = vld [vmem:[%s5509 + $0x70] sm:$0xff]
    %v5525 = vld [vmem:[%s5509 + $0x78] sm:$0xff]
    %s5526 = scalar_lea.vmem %s18, 1
    %v5527 = vld [vmem:[%s5526] sm:$0x1]
    %v5529 = vlaneseq
    %v5530 = vshrl.u32 %v5529, 7
    %v5531 = vsub.s32 0, %v5530
    %v5532 = vrot.slane %v5527, %v5531
    %5534 = vmatprep.subr.mxu0 0.0
    %5535 = vmatpush1.msra.mxu0 %v5525
    %5536 = vmatprep.subr.mxu0 0.0
    %5537 = vmatpush1.msra.mxu0 %v5524
    %5538 = vmatprep.subr.mxu0 0.0
    %5539 = vmatpush1.msra.mxu0 %v5523
    %5540 = vmatprep.subr.mxu0 0.0
    %5541 = vmatpush1.msra.mxu0 %v5522
    %5542 = vmatprep.subr.mxu0 0.0
    %5543 = vmatpush1.msra.mxu0 %v5521
    %5544 = vmatprep.subr.mxu0 0.0
    %5545 = vmatpush1.msra.mxu0 %v5520
    %5546 = vmatprep.subr.mxu0 0.0
    %5547 = vmatpush1.msra.mxu0 %v5519
    %5548 = vmatprep.subr.mxu0 0.0
    %5549 = vmatpush1.msra.mxu0 %v5518
    %5550 = vmatprep.subr.mxu0 0.0
    %5551 = vmatpush1.msra.mxu0 %v5517
    %5552 = vmatprep.subr.mxu0 0.0
    %5553 = vmatpush1.msra.mxu0 %v5516
    %5554 = vmatprep.subr.mxu0 0.0
    %5555 = vmatpush1.msra.mxu0 %v5515
    %5556 = vmatprep.subr.mxu0 0.0
    %5557 = vmatpush1.msra.mxu0 %v5514
    %5558 = vmatprep.subr.mxu0 0.0
    %5559 = vmatpush1.msra.mxu0 %v5513
    %5560 = vmatprep.subr.mxu0 0.0
    %5561 = vmatpush1.msra.mxu0 %v5512
    %5562 = vmatprep.subr.mxu0 0.0
    %5563 = vmatpush1.msra.mxu0 %v5511
    %5564 = vmatprep.subr.mxu0 0.0
    %5565 = vmatpush1.msra.mxu0 %v5510
    %5566 = vmatprep.subr.mxu0 0.0
    %5567 = vmatpush2.msra.mxu0 0.0
    %5568 = vmatprep.subr.mxu0 0.0
    %5569 = vmatpush2.msra.mxu0 0.0
    %5570 = vmatprep.subr.mxu0 0.0
    %5571 = vmatpush2.msra.mxu0 0.0
    %5572 = vmatprep.subr.mxu0 0.0
    %5573 = vmatpush2.msra.mxu0 0.0
    %5574 = vmatprep.subr.mxu0 0.0
    %5575 = vmatpush2.msra.mxu0 0.0
    %5576 = vmatprep.subr.mxu0 0.0
    %5577 = vmatpush2.msra.mxu0 0.0
    %5578 = vmatprep.subr.mxu0 0.0
    %5579 = vmatpush2.msra.mxu0 0.0
    %5580 = vmatprep.subr.mxu0 0.0
    %5581 = vmatpush2.msra.mxu0 0.0
    %5582 = vmatprep.subr.mxu0 0.0
    %5583 = vmatpush2.msra.mxu0 0.0
    %5584 = vmatprep.subr.mxu0 0.0
    %5585 = vmatpush2.msra.mxu0 0.0
    %5586 = vmatprep.subr.mxu0 0.0
    %5587 = vmatpush2.msra.mxu0 0.0
    %5588 = vmatprep.subr.mxu0 0.0
    %5589 = vmatpush2.msra.mxu0 0.0
    %5590 = vmatprep.subr.mxu0 0.0
    %5591 = vmatpush2.msra.mxu0 0.0
    %5592 = vmatprep.subr.mxu0 0.0
    %5593 = vmatpush2.msra.mxu0 0.0
    %5594 = vmatprep.subr.mxu0 0.0
    %5595 = vmatpush2.msra.mxu0 0.0
    %5596 = vmatprep.subr.mxu0 0.0
    %5597 = vmatpush2.msra.mxu0 0.0
    %5598 = vmatprep.mubr.f32.mxu0 0.0
    %5599 = vmatmul.mubr.f32.gmra.mxu0 %v5508
    %v5600 = vpop.f32.mrf.mxu0
    %v5601 = vadd.f32 %v5532, %v5600
    %v5602 = vpop.f32.mrf.mxu0
    %5603 = vdwg.mxu0
    %v5604 = vadd.f32 %v5416, %v5601
    %v5605 = vadd.f32 %v5604, %v2835
    %v5606 = vld [vmem:[%s19] sm:$0x1]
    %v5607 = vld [vmem:[%s20] sm:$0x1]
    %v5608 = vsel %vm79, %v5605, 0.0
    %5609 = vadd.xlane.f32.xlu0 %v5608
    %v5610 = vpop.xlane.xlu0 %5609
    %v5611 = vmul.f32 %v5610, %v83
    %v5612 = vsub.f32 %v5605, %v5611
    %v5613 = vmul.f32 %v5612, %v5612
    %v5614 = vsel %vm79, %v5613, 0.0
    %5615 = vadd.xlane.f32.xlu0 %v5614
    %v5616 = vpop.xlane.xlu0 %5615
    %v5617 = vmul.f32 %v5616, %v83
    %v5618 = vadd.f32 %v5617, 1e-05
    %v5619 = vrsqrt.pop %v5618
    %v5620 = vmul.f32 %v5612, %v5619
    %v5622 = vlaneseq
    %v5623 = vshrl.u32 %v5622, 7
    %v5624 = vsub.s32 0, %v5623
    %v5625 = vrot.slane %v5606, %v5624
    %v5627 = vmul.f32 %v5620, %v5625
    %v5629 = vlaneseq
    %v5630 = vshrl.u32 %v5629, 7
    %v5631 = vsub.s32 0, %v5630
    %v5632 = vrot.slane %v5607, %v5631
    %v5634 = vadd.f32 %v5627, %v5632
    %5635 = vst.msk [vmem:[#allocation2] sm:$0xff] %vm79, %v5634
    // Predicated region
    $region86: #{phi_model_forward.1} parent=1 // pred_check
      _
    $region87: #{phi_model_forward.1} parent=1 // pred_check_branch
      %5637 = sbr.rel (0) target = $region89
    $region88: #{phi_model_forward.1} parent=1 // pred_region
      %s5639 = ssub.s32 128, 128
      %5640 = vsyncadd [#allocation3], %s5639
      %s5642 = sshll.u32 [#allocation2], 4
      %s5643 = int_to_ptr.vmem [resolvable:$true] %s5642
      %5645 = dma.vmem_to_hbm [thread:$0]  %s5643, 128, %s21, [#allocation3]
    $region89: #{phi_model_forward.1} parent=1 // pred_fallthru
      _
    // Predicated region
    $region90: #{phi_model_forward.1} parent=1 // pred_check
      _
    $region91: #{phi_model_forward.1} parent=1 // pred_check_branch
      %5647 = sbr.rel (0) target = $region93
    $region92: #{phi_model_forward.1} parent=1 // pred_region
      %5648 = dma.done [#allocation3], 128
    $region93: #{phi_model_forward.1} parent=1 // pred_fallthru
      _
    %5649 = vsyncpa [#allocation3], 1

</llo_original>
